<compile_context>
chip_gen: v6e
topology: v6e:2x2x1
jax: 0.10.0
libtpu: 0.0.40
codegen_flags: <defaults>
</compile_context>

<pallas_src>
import functools
import math

import numpy as np
import jax
import jax.numpy as jnp
from jax.experimental import pallas as pl
from jax.experimental.pallas import tpu as pltpu

EMBED_DIM = 256
CH = (32, 64)           # channels=[32, 64]
GN_GROUPS = (4, 32, 4)  # gnorm1, gnorm2, tgnorm2
EPS = 1e-5


# ----------------------------- Pallas kernel --------------------------------
def _unet_kernel(TB, L2,
                 x_ref, femb_ref, yadd_ref,
                 we_ref, be_ref,
                 w1_ref, b1_ref,
                 wd_ref, bd_ref,
                 g1_ref, gb1_ref,
                 w2_ref, b2_ref, g2_ref, gb2_ref,
                 wt2_ref, bt2_ref, g3_ref, gb3_ref,
                 wt1a_ref, wt1b_ref,
                 out_ref):
    f32 = jnp.float32
    C1, C2 = CH
    BL = TB * L2

    def mm(a, b):
        return jnp.dot(a, b, preferred_element_type=f32)

    def silu(v):
        # sigmoid denominator reciprocal goes to the EUP slot (approx vrcp);
        # the VPU only does one mul + one add per element.
        return v * pl.reciprocal(1.0 + jnp.exp(-v), approx=True)

    def rows_from_batch(d):
        # (TB, C) per-batch values -> (TB*L2, C) rows (row r = b*L2 + l)
        C = d.shape[-1]
        return jnp.broadcast_to(d[:, None, :], (TB, L2, C)).reshape(BL, C)

    def group_norm(h, G, gamma, beta):
        # One-pass statistics: s1 = sum(h), s2 = sum(h*h); apply as h*scale + shift.
        # No centered full-size temporary is materialized.  Stats are f32.
        C = h.shape[-1]
        cg = C // G
        inv_n = 1.0 / float(L2 * cg)
        hr = h.reshape(TB, L2, C)
        s1 = jnp.sum(hr, axis=1)                                        # (TB, C)
        s2 = jnp.sum(hr * hr, axis=1)                                   # (TB, C)
        mean_g = jnp.sum(s1.reshape(TB, G, cg), axis=2) * inv_n         # (TB, G)
        ex2_g = jnp.sum(s2.reshape(TB, G, cg), axis=2) * inv_n          # (TB, G)
        var_g = ex2_g - mean_g * mean_g
        rstd_g = jax.lax.rsqrt(var_g + EPS)                             # (TB, G)
        mean_c = jnp.broadcast_to(mean_g[:, :, None], (TB, G, cg)).reshape(TB, C)
        rstd_c = jnp.broadcast_to(rstd_g[:, :, None], (TB, G, cg)).reshape(TB, C)
        scale_c = rstd_c * gamma                                        # (TB, C)
        shift_c = beta - mean_c * scale_c                               # (TB, C)
        return h * rows_from_batch(scale_c) + rows_from_batch(shift_c)

    # --- time embedding: Linear(E, E) + SiLU (+ label embedding add) ---
    temb = silu(mm(femb_ref[...], we_ref[...]) + be_ref[...]) + yadd_ref[...]   # (TB, E)

    # --- fused Dense projections: one (E,128) matmul for dense1/dense2/dense3 ---
    dense = mm(temb, wd_ref[...]) + bd_ref[...]                                  # (TB, 128)
    d1 = rows_from_batch(dense[:, 0:C1])
    d2 = rows_from_batch(dense[:, C1:C1 + C2])
    d3 = rows_from_batch(dense[:, C1 + C2:C1 + C2 + C1])

    # --- encoder 1: Conv1d(1->32, k=2, s=2) as (BL,2)x(2,32) + Dense + GN(4) + SiLU ---
    h1 = mm(x_ref[...], w1_ref[...]) + b1_ref[...] + d1
    h1 = silu(group_norm(h1, GN_GROUPS[0], g1_ref[...], gb1_ref[...]))

    # --- encoder 2: Conv1d(32->64, k=1) + Dense + GN(32) + SiLU ---
    h2 = mm(h1, w2_ref[...]) + b2_ref[...] + d2
    h2 = silu(group_norm(h2, GN_GROUPS[1], g2_ref[...], gb2_ref[...]))

    # --- decoder: ConvTranspose1d(64->32, k=1) + Dense + GN(4) + SiLU ---
    h3 = mm(h2, wt2_ref[...]) + bt2_ref[...] + d3
    h3 = silu(group_norm(h3, GN_GROUPS[2], g3_ref[...], gb3_ref[...]))

    # --- skip + final ConvTranspose1d(64->1, k=2, s=1): split-weight matmul, no concat.
    # Emits both taps as (BL, 2); the +1 shift / overlap-add is tiny wrapper glue.
    out_ref[...] = mm(h1, wt1a_ref[...]) + mm(h3, wt1b_ref[...])


# --------------------------- chip-aware tile sizing ---------------------------
def _tpu_budget():
    vmem_cap = 64 << 20   # conservative default (v7x per-TC VMEM)
    num_tc = 1
    try:
        info = pltpu.get_tpu_info()
        vmem_cap = int(getattr(info, "vmem_capacity_bytes", vmem_cap))
    except Exception:
        pass
    try:
        kind = jax.devices()[0].device_kind.lower()
        if "v7" in kind or "7x" in kind:
            num_tc = 2
    except Exception:
        pass
    return vmem_cap, num_tc


def _pick_tile_batch(B, L2, vmem_cap, num_tc):
    # Valid TB values keep whole batches per tile (GroupNorm locality) and satisfy the
    # (8,128) block constraint on the (TB, E) embedding tiles: TB == B or TB % 8 == 0.
    budget = max(vmem_cap // 2, 8 << 20)
    per_batch = L2 * 512 * 10 + EMBED_DIM * 4 * 4   # lane-padded f32 live set per batch
    divs = [d for d in range(B, 0, -1) if B % d == 0 and (d == B or d % 8 == 0)]
    fitting = [d for d in divs if d * per_batch <= budget] or [divs[-1]]
    if num_tc > 1:
        # Prefer >= num_tc grid steps so the "parallel" axis shards across TensorCores.
        sharded = [d for d in fitting if B // d >= num_tc]
        if sharded:
            return sharded[0]
    return fitting[0]


# ------------------------------ JAX wrapper ----------------------------------
def unet_forward(x, t, y, params):
    """x: (B, 1, L) float32, t: (B,), y: (B,) int or None. Returns (B, 1, L//2 + 1)."""
    B, cin, L = x.shape
    assert cin == 1 and L % 2 == 0
    L2 = L // 2
    f32 = jnp.float32
    p = params
    C1, C2 = CH
    E = EMBED_DIM

    vmem_cap, num_tc = _tpu_budget()
    TB = _pick_tile_batch(B, L2, vmem_cap, num_tc)
    n_tiles = B // TB

    # Contiguous reshape puts the two stride-2 conv taps in the trailing dim.
    x_pairs = x.reshape(B * L2, 2).astype(f32)

    # Gaussian Fourier features (tiny transcendental glue).
    xproj = t.astype(f32)[:, None] * p["wf"][None, :] * (2.0 * math.pi)
    femb = jnp.concatenate([jnp.sin(xproj), jnp.cos(xproj)], axis=-1)          # (B, E)

    # Label embedding with -1 masking (glue gather).
    if y is None:
        y_add = jnp.zeros((B, E), f32)
    else:
        yi = y.astype(jnp.int32)
        valid = yi != -1
        emb = p["label_embed"][jnp.clip(yi, 0, p["label_embed"].shape[0] - 1)]
        y_add = jnp.where(valid[:, None], jax.nn.silu(emb), 0.0).astype(f32)

    # Fuse the three Dense projections into one (E, 128) weight.
    wd_all = jnp.concatenate([p["wd1"].T, p["wd2"].T, p["wd3"].T], axis=1)     # (E, 128)
    bd_all = jnp.concatenate([p["bd1"], p["bd2"], p["bd3"]])[None, :]          # (1, 128)

    w1 = p["w1"][:, 0, :].T      # (2, C1)  stride-2 conv taps as matmul weight
    w2 = p["w2"][:, :, 0].T      # (C1, C2)
    wt2 = p["wt2"][:, :, 0]      # (C2, C1) ConvTranspose1d weight is (in, out, k)
    wt1a = p["wt1"][:C1, 0, :]   # (C1, 2)  final-conv weight split: h1 channels
    wt1b = p["wt1"][C1:, 0, :]   # (C1, 2)                            h3 channels

    inputs = [
        x_pairs, femb, y_add,
        p["we"].T, p["be"][None, :],
        w1, p["b1"][None, :],
        wd_all, bd_all,
        p["g1"][None, :], p["gb1"][None, :],
        w2, p["b2"][None, :], p["g2"][None, :], p["gb2"][None, :],
        wt2, p["bt2"][None, :], p["g3"][None, :], p["gb3"][None, :],
        wt1a, wt1b,
    ]

    def full_spec(shape):
        # Small weights: full array, resident in VMEM (constant block index => no re-DMA).
        return pl.BlockSpec(shape, lambda i: (0,) * len(shape))

    in_specs = [
        pl.BlockSpec((TB * L2, 2), lambda i: (i, 0)),   # x pairs (per-tile rows)
        pl.BlockSpec((TB, E), lambda i: (i, 0)),        # femb
        pl.BlockSpec((TB, E), lambda i: (i, 0)),        # y_add
    ] + [full_spec(a.shape) for a in inputs[3:]]

    out_specs = pl.BlockSpec((TB * L2, 2), lambda i: (i, 0))

    # VMEM budget: lane-padded activation live set (double-buffered in/out) + weights.
    act_bytes = TB * L2 * 512 * 10 + TB * E * 4 * 4
    weight_bytes = 4 * sum(int(np.prod(a.shape)) for a in inputs[3:])
    vmem_bytes = int(min(max(2 * act_bytes + 2 * weight_bytes + (4 << 20), 16 << 20),
                         (vmem_cap * 9) // 10))

    kernel = functools.partial(_unet_kernel, TB, L2)
    v = pl.pallas_call(
        kernel,
        out_shape=jax.ShapeDtypeStruct((B * L2, 2), f32),
        grid=(n_tiles,),
        in_specs=in_specs,
        out_specs=out_specs,
        compiler_params=pltpu.CompilerParams(
            dimension_semantics=("parallel",),
            vmem_limit_bytes=vmem_bytes),
    )(*inputs)

    # Overlap-add of the two k=2 transposed-conv taps + output bias (tiny XLA glue).
    v = v.reshape(B, L2, 2)
    out = (jnp.pad(v[:, :, 0], ((0, 0), (0, 1)))
           + jnp.pad(v[:, :, 1], ((0, 0), (1, 0)))
           + p["bt1"][0])
    return out[:, None, :]


# --------------------------- deterministic params ----------------------------
def init_params(key):
    C1, C2 = CH
    E = EMBED_DIM
    keys = iter(jax.random.split(key, 32))

    def rn(shape, s):
        return (jax.random.normal(next(keys), shape) * s).astype(jnp.float32)

    return {
        "wf": rn((E // 2,), 30.0),                 # GaussianFourierProjection.W (scale=30)
        "we": rn((E, E), 0.05), "be": rn((E,), 0.05),
        "label_embed": rn((2, E), 0.5),
        "w1": rn((C1, 1, 2), 0.5), "b1": rn((C1,), 0.1),
        "wd1": rn((C1, E), 0.05), "bd1": rn((C1,), 0.05),
        "g1": 1.0 + rn((C1,), 0.1), "gb1": rn((C1,), 0.1),
        "w2": rn((C2, C1, 1), 0.1), "b2": rn((C2,), 0.1),
        "wd2": rn((C2, E), 0.05), "bd2": rn((C2,), 0.05),
        "g2": 1.0 + rn((C2,), 0.1), "gb2": rn((C2,), 0.1),
        "wt2": rn((C2, C1, 1), 0.1), "bt2": rn((C1,), 0.1),   # ConvTranspose1d weight (in,out,k)
        "wd3": rn((C1, E), 0.05), "bd3": rn((C1,), 0.05),
        "g3": 1.0 + rn((C1,), 0.1), "gb3": rn((C1,), 0.1),
        "wt1": rn((C2, 1, 2), 0.1), "bt1": rn((1,), 0.1),
    }


# ---------------------------- numpy reference --------------------------------
def reference_forward(x, t, y, params):
    p = {k: np.asarray(v, np.float64) for k, v in params.items()}
    x = np.asarray(x, np.float64)
    t = np.asarray(t, np.float64)
    B, _, L = x.shape
    L2 = L // 2

    def silu(v):
        return v / (1.0 + np.exp(-v))

    def gn(h, G, gamma, beta):
        Bh, C, Lh = h.shape
        hr = h.reshape(Bh, G, (C // G) * Lh)
        m = hr.mean(axis=-1, keepdims=True)
        v = hr.var(axis=-1, keepdims=True)
        hn = ((hr - m) / np.sqrt(v + EPS)).reshape(Bh, C, Lh)
        return hn * gamma[None, :, None] + beta[None, :, None]

    xproj = t[:, None] * p["wf"][None, :] * 2.0 * np.pi
    femb = np.concatenate([np.sin(xproj), np.cos(xproj)], axis=-1)
    temb = silu(femb @ p["we"].T + p["be"])
    if y is not None:
        yl = np.asarray(y).astype(np.int64)
        valid = yl != -1
        yemb = np.zeros_like(temb)
        if valid.any():
            yemb[valid] = silu(p["label_embed"][yl[valid]])
        temb = temb + yemb

    xr = x[:, 0, :].reshape(B, L2, 2)
    h1 = np.einsum("blk,ck->bcl", xr, p["w1"][:, 0, :]) + p["b1"][None, :, None]
    h1 = h1 + (temb @ p["wd1"].T + p["bd1"])[:, :, None]
    h1 = silu(gn(h1, GN_GROUPS[0], p["g1"], p["gb1"]))

    h2 = np.einsum("bcl,dc->bdl", h1, p["w2"][:, :, 0]) + p["b2"][None, :, None]
    h2 = h2 + (temb @ p["wd2"].T + p["bd2"])[:, :, None]
    h2 = silu(gn(h2, GN_GROUPS[1], p["g2"], p["gb2"]))

    h3 = np.einsum("bcl,cd->bdl", h2, p["wt2"][:, :, 0]) + p["bt2"][None, :, None]
    h3 = h3 + (temb @ p["wd3"].T + p["bd3"])[:, :, None]
    h3 = silu(gn(h3, GN_GROUPS[2], p["g3"], p["gb3"]))

    h4 = np.concatenate([h1, h3], axis=1)
    v0 = np.einsum("bcl,c->bl", h4, p["wt1"][:, 0, 0])
    v1 = np.einsum("bcl,c->bl", h4, p["wt1"][:, 0, 1])
    out = np.zeros((B, L2 + 1))
    out[:, :L2] += v0
    out[:, 1:] += v1
    out = out + p["bt1"][0]
    return out[:, None, :]


# ---------------------------------- main --------------------------------------
if __name__ == "__main__":
    key = jax.random.PRNGKey(0)
    kp, kx, kt = jax.random.split(key, 3)
    params = init_params(kp)

    B, L = 2, 16
    x = jax.random.normal(kx, (B, 1, L), dtype=jnp.float32)
    t = jax.random.uniform(kt, (B,), dtype=jnp.float32)
    y = jnp.array([1, -1], dtype=jnp.int32)   # second entry masked out (== -1)

    out = unet_forward(x, t, y, params)
    out = jax.block_until_ready(out)

    ref = reference_forward(x, t, y, params)
    assert out.shape == (B, 1, L // 2 + 1), out.shape
    np.testing.assert_allclose(np.asarray(out, np.float64), ref, rtol=2e-2, atol=2e-2)

    print("KERNEL_OK")
</pallas_src>

<mosaic_0001>
module attributes {stable_mosaic.version = 11 : i64} {
  func.func @_unet_kernel(%arg0: i32, %arg1: memref<16x2xf32, #tpu.memory_space<vmem>>, %arg2: memref<2x256xf32, #tpu.memory_space<vmem>>, %arg3: memref<2x256xf32, #tpu.memory_space<vmem>>, %arg4: memref<256x256xf32, #tpu.memory_space<vmem>>, %arg5: memref<1x256xf32, #tpu.memory_space<vmem>>, %arg6: memref<2x32xf32, #tpu.memory_space<vmem>>, %arg7: memref<1x32xf32, #tpu.memory_space<vmem>>, %arg8: memref<256x128xf32, #tpu.memory_space<vmem>>, %arg9: memref<1x128xf32, #tpu.memory_space<vmem>>, %arg10: memref<1x32xf32, #tpu.memory_space<vmem>>, %arg11: memref<1x32xf32, #tpu.memory_space<vmem>>, %arg12: memref<32x64xf32, #tpu.memory_space<vmem>>, %arg13: memref<1x64xf32, #tpu.memory_space<vmem>>, %arg14: memref<1x64xf32, #tpu.memory_space<vmem>>, %arg15: memref<1x64xf32, #tpu.memory_space<vmem>>, %arg16: memref<64x32xf32, #tpu.memory_space<vmem>>, %arg17: memref<1x32xf32, #tpu.memory_space<vmem>>, %arg18: memref<1x32xf32, #tpu.memory_space<vmem>>, %arg19: memref<1x32xf32, #tpu.memory_space<vmem>>, %arg20: memref<32x2xf32, #tpu.memory_space<vmem>>, %arg21: memref<32x2xf32, #tpu.memory_space<vmem>>, %arg22: memref<16x2xf32, #tpu.memory_space<vmem>>) attributes {dimension_semantics = [#tpu.dimension_semantics<parallel>], iteration_bounds = array<i64: 1>, scalar_prefetch = 0 : i64, scratch_operands = 0 : i64, tpu.core_type = #tpu.core_type<tc>, window_params = [{transform_indices = @transform_0, window_bounds = array<i64: 16, 2>}, {transform_indices = @transform_1, window_bounds = array<i64: 2, 256>}, {transform_indices = @transform_2, window_bounds = array<i64: 2, 256>}, {pipeline_mode = #tpu.pipeline_mode<synchronous>, transform_indices = @transform_3, window_bounds = array<i64: 256, 256>}, {pipeline_mode = #tpu.pipeline_mode<synchronous>, transform_indices = @transform_4, window_bounds = array<i64: 1, 256>}, {pipeline_mode = #tpu.pipeline_mode<synchronous>, transform_indices = @transform_5, window_bounds = array<i64: 2, 32>}, {pipeline_mode = #tpu.pipeline_mode<synchronous>, transform_indices = @transform_6, window_bounds = array<i64: 1, 32>}, {pipeline_mode = #tpu.pipeline_mode<synchronous>, transform_indices = @transform_7, window_bounds = array<i64: 256, 128>}, {pipeline_mode = #tpu.pipeline_mode<synchronous>, transform_indices = @transform_8, window_bounds = array<i64: 1, 128>}, {pipeline_mode = #tpu.pipeline_mode<synchronous>, transform_indices = @transform_9, window_bounds = array<i64: 1, 32>}, {pipeline_mode = #tpu.pipeline_mode<synchronous>, transform_indices = @transform_10, window_bounds = array<i64: 1, 32>}, {pipeline_mode = #tpu.pipeline_mode<synchronous>, transform_indices = @transform_11, window_bounds = array<i64: 32, 64>}, {pipeline_mode = #tpu.pipeline_mode<synchronous>, transform_indices = @transform_12, window_bounds = array<i64: 1, 64>}, {pipeline_mode = #tpu.pipeline_mode<synchronous>, transform_indices = @transform_13, window_bounds = array<i64: 1, 64>}, {pipeline_mode = #tpu.pipeline_mode<synchronous>, transform_indices = @transform_14, window_bounds = array<i64: 1, 64>}, {pipeline_mode = #tpu.pipeline_mode<synchronous>, transform_indices = @transform_15, window_bounds = array<i64: 64, 32>}, {pipeline_mode = #tpu.pipeline_mode<synchronous>, transform_indices = @transform_16, window_bounds = array<i64: 1, 32>}, {pipeline_mode = #tpu.pipeline_mode<synchronous>, transform_indices = @transform_17, window_bounds = array<i64: 1, 32>}, {pipeline_mode = #tpu.pipeline_mode<synchronous>, transform_indices = @transform_18, window_bounds = array<i64: 1, 32>}, {pipeline_mode = #tpu.pipeline_mode<synchronous>, transform_indices = @transform_19, window_bounds = array<i64: 32, 2>}, {pipeline_mode = #tpu.pipeline_mode<synchronous>, transform_indices = @transform_20, window_bounds = array<i64: 32, 2>}, {transform_indices = @transform_21, window_bounds = array<i64: 16, 2>}]} {
    %c0 = arith.constant 0 : index
    %c0_0 = arith.constant 0 : index
    %0 = vector.load %arg2[%c0, %c0_0] : memref<2x256xf32, #tpu.memory_space<vmem>>, vector<2x256xf32>
    %c0_1 = arith.constant 0 : index
    %c0_2 = arith.constant 0 : index
    %1 = vector.load %arg4[%c0_1, %c0_2] : memref<256x256xf32, #tpu.memory_space<vmem>>, vector<256x256xf32>
    %cst = arith.constant dense<0.000000e+00> : vector<2x256xf32>
    %2 = tpu.matmul %0, %1, %cst {dimension_numbers = #tpu.dot_dimension_numbers<[1], [0], [0], [1], [0, 0, 1, 1], [], []>} : vector<2x256xf32>, vector<256x256xf32>, vector<2x256xf32> -> vector<2x256xf32>
    %c0_3 = arith.constant 0 : index
    %c0_4 = arith.constant 0 : index
    %3 = vector.load %arg5[%c0_3, %c0_4] : memref<1x256xf32, #tpu.memory_space<vmem>>, vector<1x256xf32>
    %4 = vector.broadcast %3 : vector<1x256xf32> to vector<2x256xf32>
    %5 = arith.addf %2, %4 : vector<2x256xf32>
    %cst_5 = arith.constant 0.000000e+00 : f32
    %6 = vector.broadcast %cst_5 : f32 to vector<2x256xf32>
    %7 = arith.subf %6, %5 : vector<2x256xf32>
    %8 = math.exp %7 : vector<2x256xf32>
    %cst_6 = arith.constant 1.000000e+00 : f32
    %9 = vector.broadcast %cst_6 : f32 to vector<2x256xf32>
    %10 = arith.addf %9, %8 : vector<2x256xf32>
    %11 = tpu.reciprocal %10 {approx = true} : vector<2x256xf32> -> vector<2x256xf32>
    %12 = arith.mulf %5, %11 : vector<2x256xf32>
    %c0_7 = arith.constant 0 : index
    %c0_8 = arith.constant 0 : index
    %13 = vector.load %arg3[%c0_7, %c0_8] : memref<2x256xf32, #tpu.memory_space<vmem>>, vector<2x256xf32>
    %14 = arith.addf %12, %13 : vector<2x256xf32>
    %c0_9 = arith.constant 0 : index
    %c0_10 = arith.constant 0 : index
    %15 = vector.load %arg8[%c0_9, %c0_10] : memref<256x128xf32, #tpu.memory_space<vmem>>, vector<256x128xf32>
    %cst_11 = arith.constant dense<0.000000e+00> : vector<2x128xf32>
    %16 = tpu.matmul %14, %15, %cst_11 {dimension_numbers = #tpu.dot_dimension_numbers<[1], [0], [0], [1], [0, 0, 1, 1], [], []>} : vector<2x256xf32>, vector<256x128xf32>, vector<2x128xf32> -> vector<2x128xf32>
    %c0_12 = arith.constant 0 : index
    %c0_13 = arith.constant 0 : index
    %17 = vector.load %arg9[%c0_12, %c0_13] : memref<1x128xf32, #tpu.memory_space<vmem>>, vector<1x128xf32>
    %18 = vector.broadcast %17 : vector<1x128xf32> to vector<2x128xf32>
    %19 = arith.addf %16, %18 : vector<2x128xf32>
    %20 = vector.extract_strided_slice %19 {offsets = [0, 0], sizes = [2, 32], strides = [1, 1]} : vector<2x128xf32> to vector<2x32xf32>
    %21 = vector.shape_cast %20 : vector<2x32xf32> to vector<2x1x32xf32>
    %22 = vector.shape_cast %21 : vector<2x1x32xf32> to vector<2x1x32xf32>
    %23 = vector.broadcast %22 : vector<2x1x32xf32> to vector<2x8x32xf32>
    %24 = vector.shape_cast %23 : vector<2x8x32xf32> to vector<16x32xf32>
    %25 = vector.extract_strided_slice %19 {offsets = [0, 32], sizes = [2, 64], strides = [1, 1]} : vector<2x128xf32> to vector<2x64xf32>
    %26 = vector.shape_cast %25 : vector<2x64xf32> to vector<2x1x64xf32>
    %27 = vector.shape_cast %26 : vector<2x1x64xf32> to vector<2x1x64xf32>
    %28 = vector.broadcast %27 : vector<2x1x64xf32> to vector<2x8x64xf32>
    %29 = vector.shape_cast %28 : vector<2x8x64xf32> to vector<16x64xf32>
    %30 = vector.extract_strided_slice %19 {offsets = [0, 96], sizes = [2, 32], strides = [1, 1]} : vector<2x128xf32> to vector<2x32xf32>
    %31 = vector.shape_cast %30 : vector<2x32xf32> to vector<2x1x32xf32>
    %32 = vector.shape_cast %31 : vector<2x1x32xf32> to vector<2x1x32xf32>
    %33 = vector.broadcast %32 : vector<2x1x32xf32> to vector<2x8x32xf32>
    %34 = vector.shape_cast %33 : vector<2x8x32xf32> to vector<16x32xf32>
    %c0_14 = arith.constant 0 : index
    %c0_15 = arith.constant 0 : index
    %35 = vector.load %arg1[%c0_14, %c0_15] : memref<16x2xf32, #tpu.memory_space<vmem>>, vector<16x2xf32>
    %c0_16 = arith.constant 0 : index
    %c0_17 = arith.constant 0 : index
    %36 = vector.load %arg6[%c0_16, %c0_17] : memref<2x32xf32, #tpu.memory_space<vmem>>, vector<2x32xf32>
    %cst_18 = arith.constant dense<0.000000e+00> : vector<16x32xf32>
    %37 = tpu.matmul %35, %36, %cst_18 {dimension_numbers = #tpu.dot_dimension_numbers<[1], [0], [0], [1], [0, 0, 1, 1], [], []>} : vector<16x2xf32>, vector<2x32xf32>, vector<16x32xf32> -> vector<16x32xf32>
    %c0_19 = arith.constant 0 : index
    %c0_20 = arith.constant 0 : index
    %38 = vector.load %arg7[%c0_19, %c0_20] : memref<1x32xf32, #tpu.memory_space<vmem>>, vector<1x32xf32>
    %39 = vector.broadcast %38 : vector<1x32xf32> to vector<16x32xf32>
    %40 = arith.addf %37, %39 : vector<16x32xf32>
    %41 = arith.addf %40, %24 : vector<16x32xf32>
    %c0_21 = arith.constant 0 : index
    %c0_22 = arith.constant 0 : index
    %42 = vector.load %arg10[%c0_21, %c0_22] : memref<1x32xf32, #tpu.memory_space<vmem>>, vector<1x32xf32>
    %c0_23 = arith.constant 0 : index
    %c0_24 = arith.constant 0 : index
    %43 = vector.load %arg11[%c0_23, %c0_24] : memref<1x32xf32, #tpu.memory_space<vmem>>, vector<1x32xf32>
    %44 = vector.shape_cast %41 : vector<16x32xf32> to vector<2x8x32xf32>
    %cst_25 = arith.constant dense<0.000000e+00> : vector<2x32xf32>
    %45 = vector.multi_reduction <add>, %44, %cst_25 [1] : vector<2x8x32xf32> to vector<2x32xf32>
    %46 = arith.mulf %44, %44 : vector<2x8x32xf32>
    %cst_26 = arith.constant dense<0.000000e+00> : vector<2x32xf32>
    %47 = vector.multi_reduction <add>, %46, %cst_26 [1] : vector<2x8x32xf32> to vector<2x32xf32>
    %48 = vector.shape_cast %45 : vector<2x32xf32> to vector<2x4x8xf32>
    %cst_27 = arith.constant dense<0.000000e+00> : vector<2x4xf32>
    %49 = vector.multi_reduction <add>, %48, %cst_27 [2] : vector<2x4x8xf32> to vector<2x4xf32>
    %cst_28 = arith.constant 1.562500e-02 : f32
    %50 = vector.broadcast %cst_28 : f32 to vector<2x4xf32>
    %51 = arith.mulf %49, %50 : vector<2x4xf32>
    %52 = vector.shape_cast %47 : vector<2x32xf32> to vector<2x4x8xf32>
    %cst_29 = arith.constant dense<0.000000e+00> : vector<2x4xf32>
    %53 = vector.multi_reduction <add>, %52, %cst_29 [2] : vector<2x4x8xf32> to vector<2x4xf32>
    %cst_30 = arith.constant 1.562500e-02 : f32
    %54 = vector.broadcast %cst_30 : f32 to vector<2x4xf32>
    %55 = arith.mulf %53, %54 : vector<2x4xf32>
    %56 = arith.mulf %51, %51 : vector<2x4xf32>
    %57 = arith.subf %55, %56 : vector<2x4xf32>
    %cst_31 = arith.constant 9.99999974E-6 : f32
    %58 = vector.broadcast %cst_31 : f32 to vector<2x4xf32>
    %59 = arith.addf %57, %58 : vector<2x4xf32>
    %60 = math.rsqrt %59 : vector<2x4xf32>
    %61 = vector.shape_cast %51 : vector<2x4xf32> to vector<2x4x1xf32>
    %62 = vector.shape_cast %61 : vector<2x4x1xf32> to vector<2x4x1xf32>
    %63 = vector.broadcast %62 : vector<2x4x1xf32> to vector<2x4x8xf32>
    %64 = vector.shape_cast %63 : vector<2x4x8xf32> to vector<2x32xf32>
    %65 = vector.shape_cast %60 : vector<2x4xf32> to vector<2x4x1xf32>
    %66 = vector.shape_cast %65 : vector<2x4x1xf32> to vector<2x4x1xf32>
    %67 = vector.broadcast %66 : vector<2x4x1xf32> to vector<2x4x8xf32>
    %68 = vector.shape_cast %67 : vector<2x4x8xf32> to vector<2x32xf32>
    %69 = vector.broadcast %42 : vector<1x32xf32> to vector<2x32xf32>
    %70 = arith.mulf %68, %69 : vector<2x32xf32>
    %71 = arith.mulf %64, %70 : vector<2x32xf32>
    %72 = vector.broadcast %43 : vector<1x32xf32> to vector<2x32xf32>
    %73 = arith.subf %72, %71 : vector<2x32xf32>
    %74 = vector.shape_cast %70 : vector<2x32xf32> to vector<2x1x32xf32>
    %75 = vector.shape_cast %74 : vector<2x1x32xf32> to vector<2x1x32xf32>
    %76 = vector.broadcast %75 : vector<2x1x32xf32> to vector<2x8x32xf32>
    %77 = vector.shape_cast %76 : vector<2x8x32xf32> to vector<16x32xf32>
    %78 = arith.mulf %41, %77 : vector<16x32xf32>
    %79 = vector.shape_cast %73 : vector<2x32xf32> to vector<2x1x32xf32>
    %80 = vector.shape_cast %79 : vector<2x1x32xf32> to vector<2x1x32xf32>
    %81 = vector.broadcast %80 : vector<2x1x32xf32> to vector<2x8x32xf32>
    %82 = vector.shape_cast %81 : vector<2x8x32xf32> to vector<16x32xf32>
    %83 = arith.addf %78, %82 : vector<16x32xf32>
    %cst_32 = arith.constant 0.000000e+00 : f32
    %84 = vector.broadcast %cst_32 : f32 to vector<16x32xf32>
    %85 = arith.subf %84, %83 : vector<16x32xf32>
    %86 = math.exp %85 : vector<16x32xf32>
    %cst_33 = arith.constant 1.000000e+00 : f32
    %87 = vector.broadcast %cst_33 : f32 to vector<16x32xf32>
    %88 = arith.addf %87, %86 : vector<16x32xf32>
    %89 = tpu.reciprocal %88 {approx = true} : vector<16x32xf32> -> vector<16x32xf32>
    %90 = arith.mulf %83, %89 : vector<16x32xf32>
    %c0_34 = arith.constant 0 : index
    %c0_35 = arith.constant 0 : index
    %91 = vector.load %arg12[%c0_34, %c0_35] : memref<32x64xf32, #tpu.memory_space<vmem>>, vector<32x64xf32>
    %cst_36 = arith.constant dense<0.000000e+00> : vector<16x64xf32>
    %92 = tpu.matmul %90, %91, %cst_36 {dimension_numbers = #tpu.dot_dimension_numbers<[1], [0], [0], [1], [0, 0, 1, 1], [], []>} : vector<16x32xf32>, vector<32x64xf32>, vector<16x64xf32> -> vector<16x64xf32>
    %c0_37 = arith.constant 0 : index
    %c0_38 = arith.constant 0 : index
    %93 = vector.load %arg13[%c0_37, %c0_38] : memref<1x64xf32, #tpu.memory_space<vmem>>, vector<1x64xf32>
    %94 = vector.broadcast %93 : vector<1x64xf32> to vector<16x64xf32>
    %95 = arith.addf %92, %94 : vector<16x64xf32>
    %96 = arith.addf %95, %29 : vector<16x64xf32>
    %c0_39 = arith.constant 0 : index
    %c0_40 = arith.constant 0 : index
    %97 = vector.load %arg14[%c0_39, %c0_40] : memref<1x64xf32, #tpu.memory_space<vmem>>, vector<1x64xf32>
    %c0_41 = arith.constant 0 : index
    %c0_42 = arith.constant 0 : index
    %98 = vector.load %arg15[%c0_41, %c0_42] : memref<1x64xf32, #tpu.memory_space<vmem>>, vector<1x64xf32>
    %99 = vector.shape_cast %96 : vector<16x64xf32> to vector<2x8x64xf32>
    %cst_43 = arith.constant dense<0.000000e+00> : vector<2x64xf32>
    %100 = vector.multi_reduction <add>, %99, %cst_43 [1] : vector<2x8x64xf32> to vector<2x64xf32>
    %101 = arith.mulf %99, %99 : vector<2x8x64xf32>
    %cst_44 = arith.constant dense<0.000000e+00> : vector<2x64xf32>
    %102 = vector.multi_reduction <add>, %101, %cst_44 [1] : vector<2x8x64xf32> to vector<2x64xf32>
    %103 = vector.shape_cast %100 : vector<2x64xf32> to vector<2x32x2xf32>
    %cst_45 = arith.constant dense<0.000000e+00> : vector<2x32xf32>
    %104 = vector.multi_reduction <add>, %103, %cst_45 [2] : vector<2x32x2xf32> to vector<2x32xf32>
    %cst_46 = arith.constant 6.250000e-02 : f32
    %105 = vector.broadcast %cst_46 : f32 to vector<2x32xf32>
    %106 = arith.mulf %104, %105 : vector<2x32xf32>
    %107 = vector.shape_cast %102 : vector<2x64xf32> to vector<2x32x2xf32>
    %cst_47 = arith.constant dense<0.000000e+00> : vector<2x32xf32>
    %108 = vector.multi_reduction <add>, %107, %cst_47 [2] : vector<2x32x2xf32> to vector<2x32xf32>
    %cst_48 = arith.constant 6.250000e-02 : f32
    %109 = vector.broadcast %cst_48 : f32 to vector<2x32xf32>
    %110 = arith.mulf %108, %109 : vector<2x32xf32>
    %111 = arith.mulf %106, %106 : vector<2x32xf32>
    %112 = arith.subf %110, %111 : vector<2x32xf32>
    %cst_49 = arith.constant 9.99999974E-6 : f32
    %113 = vector.broadcast %cst_49 : f32 to vector<2x32xf32>
    %114 = arith.addf %112, %113 : vector<2x32xf32>
    %115 = math.rsqrt %114 : vector<2x32xf32>
    %116 = vector.shape_cast %106 : vector<2x32xf32> to vector<2x32x1xf32>
    %117 = vector.shape_cast %116 : vector<2x32x1xf32> to vector<2x32x1xf32>
    %118 = vector.broadcast %117 : vector<2x32x1xf32> to vector<2x32x2xf32>
    %119 = vector.shape_cast %118 : vector<2x32x2xf32> to vector<2x64xf32>
    %120 = vector.shape_cast %115 : vector<2x32xf32> to vector<2x32x1xf32>
    %121 = vector.shape_cast %120 : vector<2x32x1xf32> to vector<2x32x1xf32>
    %122 = vector.broadcast %121 : vector<2x32x1xf32> to vector<2x32x2xf32>
    %123 = vector.shape_cast %122 : vector<2x32x2xf32> to vector<2x64xf32>
    %124 = vector.broadcast %97 : vector<1x64xf32> to vector<2x64xf32>
    %125 = arith.mulf %123, %124 : vector<2x64xf32>
    %126 = arith.mulf %119, %125 : vector<2x64xf32>
    %127 = vector.broadcast %98 : vector<1x64xf32> to vector<2x64xf32>
    %128 = arith.subf %127, %126 : vector<2x64xf32>
    %129 = vector.shape_cast %125 : vector<2x64xf32> to vector<2x1x64xf32>
    %130 = vector.shape_cast %129 : vector<2x1x64xf32> to vector<2x1x64xf32>
    %131 = vector.broadcast %130 : vector<2x1x64xf32> to vector<2x8x64xf32>
    %132 = vector.shape_cast %131 : vector<2x8x64xf32> to vector<16x64xf32>
    %133 = arith.mulf %96, %132 : vector<16x64xf32>
    %134 = vector.shape_cast %128 : vector<2x64xf32> to vector<2x1x64xf32>
    %135 = vector.shape_cast %134 : vector<2x1x64xf32> to vector<2x1x64xf32>
    %136 = vector.broadcast %135 : vector<2x1x64xf32> to vector<2x8x64xf32>
    %137 = vector.shape_cast %136 : vector<2x8x64xf32> to vector<16x64xf32>
    %138 = arith.addf %133, %137 : vector<16x64xf32>
    %cst_50 = arith.constant 0.000000e+00 : f32
    %139 = vector.broadcast %cst_50 : f32 to vector<16x64xf32>
    %140 = arith.subf %139, %138 : vector<16x64xf32>
    %141 = math.exp %140 : vector<16x64xf32>
    %cst_51 = arith.constant 1.000000e+00 : f32
    %142 = vector.broadcast %cst_51 : f32 to vector<16x64xf32>
    %143 = arith.addf %142, %141 : vector<16x64xf32>
    %144 = tpu.reciprocal %143 {approx = true} : vector<16x64xf32> -> vector<16x64xf32>
    %145 = arith.mulf %138, %144 : vector<16x64xf32>
    %c0_52 = arith.constant 0 : index
    %c0_53 = arith.constant 0 : index
    %146 = vector.load %arg16[%c0_52, %c0_53] : memref<64x32xf32, #tpu.memory_space<vmem>>, vector<64x32xf32>
    %cst_54 = arith.constant dense<0.000000e+00> : vector<16x32xf32>
    %147 = tpu.matmul %145, %146, %cst_54 {dimension_numbers = #tpu.dot_dimension_numbers<[1], [0], [0], [1], [0, 0, 1, 1], [], []>} : vector<16x64xf32>, vector<64x32xf32>, vector<16x32xf32> -> vector<16x32xf32>
    %c0_55 = arith.constant 0 : index
    %c0_56 = arith.constant 0 : index
    %148 = vector.load %arg17[%c0_55, %c0_56] : memref<1x32xf32, #tpu.memory_space<vmem>>, vector<1x32xf32>
    %149 = vector.broadcast %148 : vector<1x32xf32> to vector<16x32xf32>
    %150 = arith.addf %147, %149 : vector<16x32xf32>
    %151 = arith.addf %150, %34 : vector<16x32xf32>
    %c0_57 = arith.constant 0 : index
    %c0_58 = arith.constant 0 : index
    %152 = vector.load %arg18[%c0_57, %c0_58] : memref<1x32xf32, #tpu.memory_space<vmem>>, vector<1x32xf32>
    %c0_59 = arith.constant 0 : index
    %c0_60 = arith.constant 0 : index
    %153 = vector.load %arg19[%c0_59, %c0_60] : memref<1x32xf32, #tpu.memory_space<vmem>>, vector<1x32xf32>
    %154 = vector.shape_cast %151 : vector<16x32xf32> to vector<2x8x32xf32>
    %cst_61 = arith.constant dense<0.000000e+00> : vector<2x32xf32>
    %155 = vector.multi_reduction <add>, %154, %cst_61 [1] : vector<2x8x32xf32> to vector<2x32xf32>
    %156 = arith.mulf %154, %154 : vector<2x8x32xf32>
    %cst_62 = arith.constant dense<0.000000e+00> : vector<2x32xf32>
    %157 = vector.multi_reduction <add>, %156, %cst_62 [1] : vector<2x8x32xf32> to vector<2x32xf32>
    %158 = vector.shape_cast %155 : vector<2x32xf32> to vector<2x4x8xf32>
    %cst_63 = arith.constant dense<0.000000e+00> : vector<2x4xf32>
    %159 = vector.multi_reduction <add>, %158, %cst_63 [2] : vector<2x4x8xf32> to vector<2x4xf32>
    %cst_64 = arith.constant 1.562500e-02 : f32
    %160 = vector.broadcast %cst_64 : f32 to vector<2x4xf32>
    %161 = arith.mulf %159, %160 : vector<2x4xf32>
    %162 = vector.shape_cast %157 : vector<2x32xf32> to vector<2x4x8xf32>
    %cst_65 = arith.constant dense<0.000000e+00> : vector<2x4xf32>
    %163 = vector.multi_reduction <add>, %162, %cst_65 [2] : vector<2x4x8xf32> to vector<2x4xf32>
    %cst_66 = arith.constant 1.562500e-02 : f32
    %164 = vector.broadcast %cst_66 : f32 to vector<2x4xf32>
    %165 = arith.mulf %163, %164 : vector<2x4xf32>
    %166 = arith.mulf %161, %161 : vector<2x4xf32>
    %167 = arith.subf %165, %166 : vector<2x4xf32>
    %cst_67 = arith.constant 9.99999974E-6 : f32
    %168 = vector.broadcast %cst_67 : f32 to vector<2x4xf32>
    %169 = arith.addf %167, %168 : vector<2x4xf32>
    %170 = math.rsqrt %169 : vector<2x4xf32>
    %171 = vector.shape_cast %161 : vector<2x4xf32> to vector<2x4x1xf32>
    %172 = vector.shape_cast %171 : vector<2x4x1xf32> to vector<2x4x1xf32>
    %173 = vector.broadcast %172 : vector<2x4x1xf32> to vector<2x4x8xf32>
    %174 = vector.shape_cast %173 : vector<2x4x8xf32> to vector<2x32xf32>
    %175 = vector.shape_cast %170 : vector<2x4xf32> to vector<2x4x1xf32>
    %176 = vector.shape_cast %175 : vector<2x4x1xf32> to vector<2x4x1xf32>
    %177 = vector.broadcast %176 : vector<2x4x1xf32> to vector<2x4x8xf32>
    %178 = vector.shape_cast %177 : vector<2x4x8xf32> to vector<2x32xf32>
    %179 = vector.broadcast %152 : vector<1x32xf32> to vector<2x32xf32>
    %180 = arith.mulf %178, %179 : vector<2x32xf32>
    %181 = arith.mulf %174, %180 : vector<2x32xf32>
    %182 = vector.broadcast %153 : vector<1x32xf32> to vector<2x32xf32>
    %183 = arith.subf %182, %181 : vector<2x32xf32>
    %184 = vector.shape_cast %180 : vector<2x32xf32> to vector<2x1x32xf32>
    %185 = vector.shape_cast %184 : vector<2x1x32xf32> to vector<2x1x32xf32>
    %186 = vector.broadcast %185 : vector<2x1x32xf32> to vector<2x8x32xf32>
    %187 = vector.shape_cast %186 : vector<2x8x32xf32> to vector<16x32xf32>
    %188 = arith.mulf %151, %187 : vector<16x32xf32>
    %189 = vector.shape_cast %183 : vector<2x32xf32> to vector<2x1x32xf32>
    %190 = vector.shape_cast %189 : vector<2x1x32xf32> to vector<2x1x32xf32>
    %191 = vector.broadcast %190 : vector<2x1x32xf32> to vector<2x8x32xf32>
    %192 = vector.shape_cast %191 : vector<2x8x32xf32> to vector<16x32xf32>
    %193 = arith.addf %188, %192 : vector<16x32xf32>
    %cst_68 = arith.constant 0.000000e+00 : f32
    %194 = vector.broadcast %cst_68 : f32 to vector<16x32xf32>
    %195 = arith.subf %194, %193 : vector<16x32xf32>
    %196 = math.exp %195 : vector<16x32xf32>
    %cst_69 = arith.constant 1.000000e+00 : f32
    %197 = vector.broadcast %cst_69 : f32 to vector<16x32xf32>
    %198 = arith.addf %197, %196 : vector<16x32xf32>
    %199 = tpu.reciprocal %198 {approx = true} : vector<16x32xf32> -> vector<16x32xf32>
    %200 = arith.mulf %193, %199 : vector<16x32xf32>
    %c0_70 = arith.constant 0 : index
    %c0_71 = arith.constant 0 : index
    %201 = vector.load %arg20[%c0_70, %c0_71] : memref<32x2xf32, #tpu.memory_space<vmem>>, vector<32x2xf32>
    %cst_72 = arith.constant dense<0.000000e+00> : vector<16x2xf32>
    %202 = tpu.matmul %90, %201, %cst_72 {dimension_numbers = #tpu.dot_dimension_numbers<[1], [0], [0], [1], [0, 0, 1, 1], [], []>} : vector<16x32xf32>, vector<32x2xf32>, vector<16x2xf32> -> vector<16x2xf32>
    %c0_73 = arith.constant 0 : index
    %c0_74 = arith.constant 0 : index
    %203 = vector.load %arg21[%c0_73, %c0_74] : memref<32x2xf32, #tpu.memory_space<vmem>>, vector<32x2xf32>
    %cst_75 = arith.constant dense<0.000000e+00> : vector<16x2xf32>
    %204 = tpu.matmul %200, %203, %cst_75 {dimension_numbers = #tpu.dot_dimension_numbers<[1], [0], [0], [1], [0, 0, 1, 1], [], []>} : vector<16x32xf32>, vector<32x2xf32>, vector<16x2xf32> -> vector<16x2xf32>
    %205 = arith.addf %202, %204 : vector<16x2xf32>
    %c0_76 = arith.constant 0 : index
    %c0_77 = arith.constant 0 : index
    %206 = vector.load %arg22[%c0_76, %c0_77] : memref<16x2xf32, #tpu.memory_space<vmem>>, vector<16x2xf32>
    tpu.vector_store %arg22[%c0_76, %c0_77], %205 {strides = array<i32>} : memref<16x2xf32, #tpu.memory_space<vmem>>, vector<16x2xf32>,
    return
  }
  func.func @transform_0(%arg0: i32) -> (i32, i32) {
    %c0_i32 = arith.constant 0 : i32
    %c0_i32_0 = arith.constant 0 : i32
    return %arg0, %c0_i32 : i32, i32
  }
  func.func @transform_1(%arg0: i32) -> (i32, i32) {
    %c0_i32 = arith.constant 0 : i32
    %c0_i32_0 = arith.constant 0 : i32
    return %arg0, %c0_i32 : i32, i32
  }
  func.func @transform_2(%arg0: i32) -> (i32, i32) {
    %c0_i32 = arith.constant 0 : i32
    %c0_i32_0 = arith.constant 0 : i32
    return %arg0, %c0_i32 : i32, i32
  }
  func.func @transform_3(%arg0: i32) -> (i32, i32) {
    %c0_i32 = arith.constant 0 : i32
    %c0_i32_0 = arith.constant 0 : i32
    %c0_i32_1 = arith.constant 0 : i32
    return %c0_i32, %c0_i32_0 : i32, i32
  }
  func.func @transform_4(%arg0: i32) -> (i32, i32) {
    %c0_i32 = arith.constant 0 : i32
    %c0_i32_0 = arith.constant 0 : i32
    %c0_i32_1 = arith.constant 0 : i32
    return %c0_i32, %c0_i32_0 : i32, i32
  }
  func.func @transform_5(%arg0: i32) -> (i32, i32) {
    %c0_i32 = arith.constant 0 : i32
    %c0_i32_0 = arith.constant 0 : i32
    %c0_i32_1 = arith.constant 0 : i32
    return %c0_i32, %c0_i32_0 : i32, i32
  }
  func.func @transform_6(%arg0: i32) -> (i32, i32) {
    %c0_i32 = arith.constant 0 : i32
    %c0_i32_0 = arith.constant 0 : i32
    %c0_i32_1 = arith.constant 0 : i32
    return %c0_i32, %c0_i32_0 : i32, i32
  }
  func.func @transform_7(%arg0: i32) -> (i32, i32) {
    %c0_i32 = arith.constant 0 : i32
    %c0_i32_0 = arith.constant 0 : i32
    %c0_i32_1 = arith.constant 0 : i32
    return %c0_i32, %c0_i32_0 : i32, i32
  }
  func.func @transform_8(%arg0: i32) -> (i32, i32) {
    %c0_i32 = arith.constant 0 : i32
    %c0_i32_0 = arith.constant 0 : i32
    %c0_i32_1 = arith.constant 0 : i32
    return %c0_i32, %c0_i32_0 : i32, i32
  }
  func.func @transform_9(%arg0: i32) -> (i32, i32) {
    %c0_i32 = arith.constant 0 : i32
    %c0_i32_0 = arith.constant 0 : i32
    %c0_i32_1 = arith.constant 0 : i32
    return %c0_i32, %c0_i32_0 : i32, i32
  }
  func.func @transform_10(%arg0: i32) -> (i32, i32) {
    %c0_i32 = arith.constant 0 : i32
    %c0_i32_0 = arith.constant 0 : i32
    %c0_i32_1 = arith.constant 0 : i32
    return %c0_i32, %c0_i32_0 : i32, i32
  }
  func.func @transform_11(%arg0: i32) -> (i32, i32) {
    %c0_i32 = arith.constant 0 : i32
    %c0_i32_0 = arith.constant 0 : i32
    %c0_i32_1 = arith.constant 0 : i32
    return %c0_i32, %c0_i32_0 : i32, i32
  }
  func.func @transform_12(%arg0: i32) -> (i32, i32) {
    %c0_i32 = arith.constant 0 : i32
    %c0_i32_0 = arith.constant 0 : i32
    %c0_i32_1 = arith.constant 0 : i32
    return %c0_i32, %c0_i32_0 : i32, i32
  }
  func.func @transform_13(%arg0: i32) -> (i32, i32) {
    %c0_i32 = arith.constant 0 : i32
    %c0_i32_0 = arith.constant 0 : i32
    %c0_i32_1 = arith.constant 0 : i32
    return %c0_i32, %c0_i32_0 : i32, i32
  }
  func.func @transform_14(%arg0: i32) -> (i32, i32) {
    %c0_i32 = arith.constant 0 : i32
    %c0_i32_0 = arith.constant 0 : i32
    %c0_i32_1 = arith.constant 0 : i32
    return %c0_i32, %c0_i32_0 : i32, i32
  }
  func.func @transform_15(%arg0: i32) -> (i32, i32) {
    %c0_i32 = arith.constant 0 : i32
    %c0_i32_0 = arith.constant 0 : i32
    %c0_i32_1 = arith.constant 0 : i32
    return %c0_i32, %c0_i32_0 : i32, i32
  }
  func.func @transform_16(%arg0: i32) -> (i32, i32) {
    %c0_i32 = arith.constant 0 : i32
    %c0_i32_0 = arith.constant 0 : i32
    %c0_i32_1 = arith.constant 0 : i32
    return %c0_i32, %c0_i32_0 : i32, i32
  }
  func.func @transform_17(%arg0: i32) -> (i32, i32) {
    %c0_i32 = arith.constant 0 : i32
    %c0_i32_0 = arith.constant 0 : i32
    %c0_i32_1 = arith.constant 0 : i32
    return %c0_i32, %c0_i32_0 : i32, i32
  }
  func.func @transform_18(%arg0: i32) -> (i32, i32) {
    %c0_i32 = arith.constant 0 : i32
    %c0_i32_0 = arith.constant 0 : i32
    %c0_i32_1 = arith.constant 0 : i32
    return %c0_i32, %c0_i32_0 : i32, i32
  }
  func.func @transform_19(%arg0: i32) -> (i32, i32) {
    %c0_i32 = arith.constant 0 : i32
    %c0_i32_0 = arith.constant 0 : i32
    %c0_i32_1 = arith.constant 0 : i32
    return %c0_i32, %c0_i32_0 : i32, i32
  }
  func.func @transform_20(%arg0: i32) -> (i32, i32) {
    %c0_i32 = arith.constant 0 : i32
    %c0_i32_0 = arith.constant 0 : i32
    %c0_i32_1 = arith.constant 0 : i32
    return %c0_i32, %c0_i32_0 : i32, i32
  }
  func.func @transform_21(%arg0: i32) -> (i32, i32) {
    %c0_i32 = arith.constant 0 : i32
    %c0_i32_0 = arith.constant 0 : i32
    return %arg0, %c0_i32 : i32, i32
  }
}

</mosaic_0001>

<llo_original>
// kernel: tpu_custom_call.1
$region0: #{tpu_custom_call.1}
  #allocation0 [shape = 'u32[]', space=smem, size = 0x4, offset = 0x4, fixed_abs, tag = 'smem constant byte address 0x4 - core index']
  #allocation1 [shape = 'u32[144,128]{1,0:T(1,128)}', space=vmem, size = 0x12000, scoped, tag = 'internal scratch']
  %s0 = inlined_call_operand.vmem [shape: f32[16,2], index: 0, kind: input, shape index: {}]
  %s1 = inlined_call_operand.vmem [shape: f32[2,256], index: 1, kind: input, shape index: {}]
  %s2 = inlined_call_operand.vmem [shape: f32[2,256], index: 2, kind: input, shape index: {}]
  %s3 = inlined_call_operand.hbm [shape: f32[256,256], index: 3, kind: input, shape index: {}]
  %s4 = inlined_call_operand.vmem [shape: f32[1,256], index: 4, kind: input, shape index: {}]
  %s5 = inlined_call_operand.vmem [shape: f32[2,32], index: 5, kind: input, shape index: {}]
  %s6 = inlined_call_operand.vmem [shape: f32[1,32], index: 6, kind: input, shape index: {}]
  %s7 = inlined_call_operand.hbm [shape: f32[256,128], index: 7, kind: input, shape index: {}]
  %s8 = inlined_call_operand.vmem [shape: f32[1,128], index: 8, kind: input, shape index: {}]
  %s9 = inlined_call_operand.vmem [shape: f32[1,32], index: 9, kind: input, shape index: {}]
  %s10 = inlined_call_operand.vmem [shape: f32[1,32], index: 10, kind: input, shape index: {}]
  %s11 = inlined_call_operand.vmem [shape: f32[32,64], index: 11, kind: input, shape index: {}]
  %s12 = inlined_call_operand.vmem [shape: f32[1,64], index: 12, kind: input, shape index: {}]
  %s13 = inlined_call_operand.vmem [shape: f32[1,64], index: 13, kind: input, shape index: {}]
  %s14 = inlined_call_operand.vmem [shape: f32[1,64], index: 14, kind: input, shape index: {}]
  %s15 = inlined_call_operand.vmem [shape: f32[64,32], index: 15, kind: input, shape index: {}]
  %s16 = inlined_call_operand.vmem [shape: f32[1,32], index: 16, kind: input, shape index: {}]
  %s17 = inlined_call_operand.vmem [shape: f32[1,32], index: 17, kind: input, shape index: {}]
  %s18 = inlined_call_operand.vmem [shape: f32[1,32], index: 18, kind: input, shape index: {}]
  %s19 = inlined_call_operand.vmem [shape: f32[32,2], index: 19, kind: input, shape index: {}]
  %s20 = inlined_call_operand.vmem [shape: f32[32,2], index: 20, kind: input, shape index: {}]
  %s21 = inlined_call_operand.vmem [shape: f32[16,2], index: 21, kind: output, shape index: {}]
  %s22 = sld [smem:[#allocation0]]
  $region102: #{tpu_custom_call.1} parent=0
    _
  %s24 = ssub.s32 1, %s22
  %s25 = scalar_select 0, %s24, %s22
  $region1: #{tpu_custom_call.1} parent=0
    #allocation2 [shape = 'u8[262144]{0}', space=vmem, size = 0x40000, scoped, tag = 'input window, operand 3, single buffered']
    #allocation3 [shape = 's32[1]{0}', space=sflag, size = 0x4, scoped, tag = 'scoped memory for tpu_custom_call.1']
    #allocation4 [shape = 'u8[131072]{0}', space=vmem, size = 0x20000, scoped, tag = 'input window, operand 7, single buffered']
    #allocation5 [shape = 's32[1]{0}', space=sflag, size = 0x4, scoped, tag = 'scoped memory for tpu_custom_call.1']
    %26 = vsyncpa [#allocation3], 0
    %27 = vsyncpa [#allocation5], 0
    // Predicated region
    $region2: #{tpu_custom_call.1} parent=1 // pred_check
      _
    $region3: #{tpu_custom_call.1} parent=1 // pred_check_branch
      %29 = sbr.rel (0) target = $region5
    $region4: #{tpu_custom_call.1} parent=1 // pred_region
      _
    $region5: #{tpu_custom_call.1} parent=1 // pred_fallthru
      _
    // Predicated region
    $region6: #{tpu_custom_call.1} parent=1 // pred_check
      _
    $region7: #{tpu_custom_call.1} parent=1 // pred_check_branch
      %31 = sbr.rel (0) target = $region9
    $region8: #{tpu_custom_call.1} parent=1 // pred_region
      _
    $region9: #{tpu_custom_call.1} parent=1 // pred_fallthru
      _
    // Predicated region
    $region10: #{tpu_custom_call.1} parent=1 // pred_check
      _
    $region11: #{tpu_custom_call.1} parent=1 // pred_check_branch
      %33 = sbr.rel (0) target = $region13
    $region12: #{tpu_custom_call.1} parent=1 // pred_region
      _
    $region13: #{tpu_custom_call.1} parent=1 // pred_fallthru
      _
    // Predicated region
    $region14: #{tpu_custom_call.1} parent=1 // pred_check
      _
    $region15: #{tpu_custom_call.1} parent=1 // pred_check_branch
      %35 = sbr.rel (0) target = $region17
    $region16: #{tpu_custom_call.1} parent=1 // pred_region
      %s37 = ssub.s32 8192, 8192
      %38 = vsyncadd [#allocation3], %s37
      %s39 = sshll.u32 [#allocation2], 4
      %s40 = int_to_ptr.vmem [resolvable:$true] %s39
      %45 = dma.hbm_to_vmem [thread:$0]  %s3, 8192, %s40, [#allocation3], 256, 256, 16
    $region17: #{tpu_custom_call.1} parent=1 // pred_fallthru
      _
    // Predicated region
    $region18: #{tpu_custom_call.1} parent=1 // pred_check
      _
    $region19: #{tpu_custom_call.1} parent=1 // pred_check_branch
      %47 = sbr.rel (0) target = $region21
    $region20: #{tpu_custom_call.1} parent=1 // pred_region
      _
    $region21: #{tpu_custom_call.1} parent=1 // pred_fallthru
      _
    // Predicated region
    $region22: #{tpu_custom_call.1} parent=1 // pred_check
      _
    $region23: #{tpu_custom_call.1} parent=1 // pred_check_branch
      %49 = sbr.rel (0) target = $region25
    $region24: #{tpu_custom_call.1} parent=1 // pred_region
      _
    $region25: #{tpu_custom_call.1} parent=1 // pred_fallthru
      _
    // Predicated region
    $region26: #{tpu_custom_call.1} parent=1 // pred_check
      _
    $region27: #{tpu_custom_call.1} parent=1 // pred_check_branch
      %51 = sbr.rel (0) target = $region29
    $region28: #{tpu_custom_call.1} parent=1 // pred_region
      _
    $region29: #{tpu_custom_call.1} parent=1 // pred_fallthru
      _
    // Predicated region
    $region30: #{tpu_custom_call.1} parent=1 // pred_check
      _
    $region31: #{tpu_custom_call.1} parent=1 // pred_check_branch
      %53 = sbr.rel (0) target = $region33
    $region32: #{tpu_custom_call.1} parent=1 // pred_region
      %s55 = ssub.s32 4096, 4096
      %56 = vsyncadd [#allocation5], %s55
      %s57 = sshll.u32 [#allocation4], 4
      %s58 = int_to_ptr.vmem [resolvable:$true] %s57
      %63 = dma.hbm_to_vmem [thread:$0]  %s7, 4096, %s58, [#allocation5], 128, 128, 8
    $region33: #{tpu_custom_call.1} parent=1 // pred_fallthru
      _
    // Predicated region
    $region34: #{tpu_custom_call.1} parent=1 // pred_check
      _
    $region35: #{tpu_custom_call.1} parent=1 // pred_check_branch
      %65 = sbr.rel (0) target = $region37
    $region36: #{tpu_custom_call.1} parent=1 // pred_region
      _
    $region37: #{tpu_custom_call.1} parent=1 // pred_fallthru
      _
    // Predicated region
    $region38: #{tpu_custom_call.1} parent=1 // pred_check
      _
    $region39: #{tpu_custom_call.1} parent=1 // pred_check_branch
      %67 = sbr.rel (0) target = $region41
    $region40: #{tpu_custom_call.1} parent=1 // pred_region
      _
    $region41: #{tpu_custom_call.1} parent=1 // pred_fallthru
      _
    // Predicated region
    $region42: #{tpu_custom_call.1} parent=1 // pred_check
      _
    $region43: #{tpu_custom_call.1} parent=1 // pred_check_branch
      %69 = sbr.rel (0) target = $region45
    $region44: #{tpu_custom_call.1} parent=1 // pred_region
      _
    $region45: #{tpu_custom_call.1} parent=1 // pred_fallthru
      _
    // Predicated region
    $region46: #{tpu_custom_call.1} parent=1 // pred_check
      _
    $region47: #{tpu_custom_call.1} parent=1 // pred_check_branch
      %71 = sbr.rel (0) target = $region49
    $region48: #{tpu_custom_call.1} parent=1 // pred_region
      _
    $region49: #{tpu_custom_call.1} parent=1 // pred_fallthru
      _
    // Predicated region
    $region50: #{tpu_custom_call.1} parent=1 // pred_check
      _
    $region51: #{tpu_custom_call.1} parent=1 // pred_check_branch
      %73 = sbr.rel (0) target = $region53
    $region52: #{tpu_custom_call.1} parent=1 // pred_region
      _
    $region53: #{tpu_custom_call.1} parent=1 // pred_fallthru
      _
    // Predicated region
    $region54: #{tpu_custom_call.1} parent=1 // pred_check
      _
    $region55: #{tpu_custom_call.1} parent=1 // pred_check_branch
      %75 = sbr.rel (0) target = $region57
    $region56: #{tpu_custom_call.1} parent=1 // pred_region
      _
    $region57: #{tpu_custom_call.1} parent=1 // pred_fallthru
      _
    // Predicated region
    $region58: #{tpu_custom_call.1} parent=1 // pred_check
      _
    $region59: #{tpu_custom_call.1} parent=1 // pred_check_branch
      %77 = sbr.rel (0) target = $region61
    $region60: #{tpu_custom_call.1} parent=1 // pred_region
      _
    $region61: #{tpu_custom_call.1} parent=1 // pred_fallthru
      _
    // Predicated region
    $region62: #{tpu_custom_call.1} parent=1 // pred_check
      _
    $region63: #{tpu_custom_call.1} parent=1 // pred_check_branch
      %79 = sbr.rel (0) target = $region65
    $region64: #{tpu_custom_call.1} parent=1 // pred_region
      _
    $region65: #{tpu_custom_call.1} parent=1 // pred_fallthru
      _
    // Predicated region
    $region66: #{tpu_custom_call.1} parent=1 // pred_check
      _
    $region67: #{tpu_custom_call.1} parent=1 // pred_check_branch
      %81 = sbr.rel (0) target = $region69
    $region68: #{tpu_custom_call.1} parent=1 // pred_region
      _
    $region69: #{tpu_custom_call.1} parent=1 // pred_fallthru
      _
    // Predicated region
    $region70: #{tpu_custom_call.1} parent=1 // pred_check
      _
    $region71: #{tpu_custom_call.1} parent=1 // pred_check_branch
      %83 = sbr.rel (0) target = $region73
    $region72: #{tpu_custom_call.1} parent=1 // pred_region
      _
    $region73: #{tpu_custom_call.1} parent=1 // pred_fallthru
      _
    // Predicated region
    $region74: #{tpu_custom_call.1} parent=1 // pred_check
      _
    $region75: #{tpu_custom_call.1} parent=1 // pred_check_branch
      %85 = sbr.rel (0) target = $region77
    $region76: #{tpu_custom_call.1} parent=1 // pred_region
      _
    $region77: #{tpu_custom_call.1} parent=1 // pred_fallthru
      _
    // Predicated region
    $region78: #{tpu_custom_call.1} parent=1 // pred_check
      _
    $region79: #{tpu_custom_call.1} parent=1 // pred_check_branch
      %87 = sbr.rel (0) target = $region81
    $region80: #{tpu_custom_call.1} parent=1 // pred_region
      _
    $region81: #{tpu_custom_call.1} parent=1 // pred_fallthru
      _
    // Predicated region
    $region82: #{tpu_custom_call.1} parent=1 // pred_check
      _
    $region83: #{tpu_custom_call.1} parent=1 // pred_check_branch
      %89 = sbr.rel (0) target = $region85
    $region84: #{tpu_custom_call.1} parent=1 // pred_region
      _
    $region85: #{tpu_custom_call.1} parent=1 // pred_fallthru
      _
    // Predicated region
    $region86: #{tpu_custom_call.1} parent=1 // pred_check
      _
    $region87: #{tpu_custom_call.1} parent=1 // pred_check_branch
      %91 = sbr.rel (0) target = $region89
    $region88: #{tpu_custom_call.1} parent=1 // pred_region
      %92 = dma.done [#allocation3], 8192
    $region89: #{tpu_custom_call.1} parent=1 // pred_fallthru
      _
    // Predicated region
    $region90: #{tpu_custom_call.1} parent=1 // pred_check
      _
    $region91: #{tpu_custom_call.1} parent=1 // pred_check_branch
      %94 = sbr.rel (0) target = $region93
    $region92: #{tpu_custom_call.1} parent=1 // pred_region
      %95 = dma.done [#allocation5], 4096
    $region93: #{tpu_custom_call.1} parent=1 // pred_fallthru
      _
    %v96 = vld [vmem:[%s1] sm:$0xf]
    %v97 = vld [vmem:[#allocation2] sm:$0xff]
    %v98 = vld [vmem:[#allocation2 + $0x8] sm:$0xff]
    %v99 = vld [vmem:[#allocation2 + $0x10] sm:$0xff]
    %v100 = vld [vmem:[#allocation2 + $0x18] sm:$0xff]
    %v101 = vld [vmem:[#allocation2 + $0x20] sm:$0xff]
    %v102 = vld [vmem:[#allocation2 + $0x28] sm:$0xff]
    %v103 = vld [vmem:[#allocation2 + $0x30] sm:$0xff]
    %v104 = vld [vmem:[#allocation2 + $0x38] sm:$0xff]
    %v105 = vld [vmem:[#allocation2 + $0x40] sm:$0xff]
    %v106 = vld [vmem:[#allocation2 + $0x48] sm:$0xff]
    %v107 = vld [vmem:[#allocation2 + $0x50] sm:$0xff]
    %v108 = vld [vmem:[#allocation2 + $0x58] sm:$0xff]
    %v109 = vld [vmem:[#allocation2 + $0x60] sm:$0xff]
    %v110 = vld [vmem:[#allocation2 + $0x68] sm:$0xff]
    %v111 = vld [vmem:[#allocation2 + $0x70] sm:$0xff]
    %v112 = vld [vmem:[#allocation2 + $0x78] sm:$0xff]
    %v113 = vld [vmem:[#allocation2 + $0x80] sm:$0xff]
    %v114 = vld [vmem:[#allocation2 + $0x88] sm:$0xff]
    %v115 = vld [vmem:[#allocation2 + $0x90] sm:$0xff]
    %v116 = vld [vmem:[#allocation2 + $0x98] sm:$0xff]
    %v117 = vld [vmem:[#allocation2 + $0xa0] sm:$0xff]
    %v118 = vld [vmem:[#allocation2 + $0xa8] sm:$0xff]
    %v119 = vld [vmem:[#allocation2 + $0xb0] sm:$0xff]
    %v120 = vld [vmem:[#allocation2 + $0xb8] sm:$0xff]
    %v121 = vld [vmem:[#allocation2 + $0xc0] sm:$0xff]
    %v122 = vld [vmem:[#allocation2 + $0xc8] sm:$0xff]
    %v123 = vld [vmem:[#allocation2 + $0xd0] sm:$0xff]
    %v124 = vld [vmem:[#allocation2 + $0xd8] sm:$0xff]
    %v125 = vld [vmem:[#allocation2 + $0xe0] sm:$0xff]
    %v126 = vld [vmem:[#allocation2 + $0xe8] sm:$0xff]
    %v127 = vld [vmem:[#allocation2 + $0xf0] sm:$0xff]
    %v128 = vld [vmem:[#allocation2 + $0xf8] sm:$0xff]
    %v129 = vld [vmem:[#allocation2 + $0x100] sm:$0xff]
    %v130 = vld [vmem:[#allocation2 + $0x108] sm:$0xff]
    %v131 = vld [vmem:[#allocation2 + $0x110] sm:$0xff]
    %v132 = vld [vmem:[#allocation2 + $0x118] sm:$0xff]
    %v133 = vld [vmem:[#allocation2 + $0x120] sm:$0xff]
    %v134 = vld [vmem:[#allocation2 + $0x128] sm:$0xff]
    %v135 = vld [vmem:[#allocation2 + $0x130] sm:$0xff]
    %v136 = vld [vmem:[#allocation2 + $0x138] sm:$0xff]
    %v137 = vld [vmem:[#allocation2 + $0x140] sm:$0xff]
    %v138 = vld [vmem:[#allocation2 + $0x148] sm:$0xff]
    %v139 = vld [vmem:[#allocation2 + $0x150] sm:$0xff]
    %v140 = vld [vmem:[#allocation2 + $0x158] sm:$0xff]
    %v141 = vld [vmem:[#allocation2 + $0x160] sm:$0xff]
    %v142 = vld [vmem:[#allocation2 + $0x168] sm:$0xff]
    %v143 = vld [vmem:[#allocation2 + $0x170] sm:$0xff]
    %v144 = vld [vmem:[#allocation2 + $0x178] sm:$0xff]
    %v145 = vld [vmem:[#allocation2 + $0x180] sm:$0xff]
    %v146 = vld [vmem:[#allocation2 + $0x188] sm:$0xff]
    %v147 = vld [vmem:[#allocation2 + $0x190] sm:$0xff]
    %v148 = vld [vmem:[#allocation2 + $0x198] sm:$0xff]
    %v149 = vld [vmem:[#allocation2 + $0x1a0] sm:$0xff]
    %v150 = vld [vmem:[#allocation2 + $0x1a8] sm:$0xff]
    %v151 = vld [vmem:[#allocation2 + $0x1b0] sm:$0xff]
    %v152 = vld [vmem:[#allocation2 + $0x1b8] sm:$0xff]
    %v153 = vld [vmem:[#allocation2 + $0x1c0] sm:$0xff]
    %v154 = vld [vmem:[#allocation2 + $0x1c8] sm:$0xff]
    %v155 = vld [vmem:[#allocation2 + $0x1d0] sm:$0xff]
    %v156 = vld [vmem:[#allocation2 + $0x1d8] sm:$0xff]
    %v157 = vld [vmem:[#allocation2 + $0x1e0] sm:$0xff]
    %v158 = vld [vmem:[#allocation2 + $0x1e8] sm:$0xff]
    %v159 = vld [vmem:[#allocation2 + $0x1f0] sm:$0xff]
    %v160 = vld [vmem:[#allocation2 + $0x1f8] sm:$0xff]
    %v161 = vld [vmem:[%s4] sm:$0x3]
    %v163 = vlaneseq
    %v164 = vshrl.u32 %v163, 7
    %v165 = vsub.s32 0, %v164
    %v166 = vrot.slane %v161, %v165
    %v167 = vlaneseq
    %v168 = vshrl.u32 %v167, 7
    %v169 = vsub.s32 1, %v168
    %v170 = vrot.slane %v161, %v169
    %v175 = vunpack.c.l.s4 1983009808
    %v176 = vunpack.c.0.s8 %v175
    %v177 = vlaneseq
    %v178 = vshrl.u32 %v177, 7
    %v179 = vsub.s32 %v176, %v178
    %v180 = vrot.slane %v96, %v179
    %v181 = vcombine.high %v180, %v180
    %184 = vmatprep.subr.mxu0 %v128
    %185 = vmatpush1.msra.mxu0 %v127
    %186 = vmatprep.subr.mxu0 %v126
    %187 = vmatpush1.msra.mxu0 %v125
    %188 = vmatprep.subr.mxu0 %v124
    %189 = vmatpush1.msra.mxu0 %v123
    %190 = vmatprep.subr.mxu0 %v122
    %191 = vmatpush1.msra.mxu0 %v121
    %192 = vmatprep.subr.mxu0 %v120
    %193 = vmatpush1.msra.mxu0 %v119
    %194 = vmatprep.subr.mxu0 %v118
    %195 = vmatpush1.msra.mxu0 %v117
    %196 = vmatprep.subr.mxu0 %v116
    %197 = vmatpush1.msra.mxu0 %v115
    %198 = vmatprep.subr.mxu0 %v114
    %199 = vmatpush1.msra.mxu0 %v113
    %200 = vmatprep.subr.mxu0 %v112
    %201 = vmatpush1.msra.mxu0 %v111
    %202 = vmatprep.subr.mxu0 %v110
    %203 = vmatpush1.msra.mxu0 %v109
    %204 = vmatprep.subr.mxu0 %v108
    %205 = vmatpush1.msra.mxu0 %v107
    %206 = vmatprep.subr.mxu0 %v106
    %207 = vmatpush1.msra.mxu0 %v105
    %208 = vmatprep.subr.mxu0 %v104
    %209 = vmatpush1.msra.mxu0 %v103
    %210 = vmatprep.subr.mxu0 %v102
    %211 = vmatpush1.msra.mxu0 %v101
    %212 = vmatprep.subr.mxu0 %v100
    %213 = vmatpush1.msra.mxu0 %v99
    %214 = vmatprep.subr.mxu0 %v98
    %215 = vmatpush1.msra.mxu0 %v97
    %216 = vmatprep.subr.mxu0 %v160
    %217 = vmatpush2.msra.mxu0 %v159
    %218 = vmatprep.subr.mxu0 %v158
    %219 = vmatpush2.msra.mxu0 %v157
    %220 = vmatprep.subr.mxu0 %v156
    %221 = vmatpush2.msra.mxu0 %v155
    %222 = vmatprep.subr.mxu0 %v154
    %223 = vmatpush2.msra.mxu0 %v153
    %224 = vmatprep.subr.mxu0 %v152
    %225 = vmatpush2.msra.mxu0 %v151
    %226 = vmatprep.subr.mxu0 %v150
    %227 = vmatpush2.msra.mxu0 %v149
    %228 = vmatprep.subr.mxu0 %v148
    %229 = vmatpush2.msra.mxu0 %v147
    %230 = vmatprep.subr.mxu0 %v146
    %231 = vmatpush2.msra.mxu0 %v145
    %232 = vmatprep.subr.mxu0 %v144
    %233 = vmatpush2.msra.mxu0 %v143
    %234 = vmatprep.subr.mxu0 %v142
    %235 = vmatpush2.msra.mxu0 %v141
    %236 = vmatprep.subr.mxu0 %v140
    %237 = vmatpush2.msra.mxu0 %v139
    %238 = vmatprep.subr.mxu0 %v138
    %239 = vmatpush2.msra.mxu0 %v137
    %240 = vmatprep.subr.mxu0 %v136
    %241 = vmatpush2.msra.mxu0 %v135
    %242 = vmatprep.subr.mxu0 %v134
    %243 = vmatpush2.msra.mxu0 %v133
    %244 = vmatprep.subr.mxu0 %v132
    %245 = vmatpush2.msra.mxu0 %v131
    %246 = vmatprep.subr.mxu0 %v130
    %247 = vmatpush2.msra.mxu0 %v129
    %248 = vmatprep.mubr.f32.mxu0 %v181
    %249 = vmatmul.mubr.f32.gmra.mxu0 %v180
    %v250 = vpop.f32.mrf.mxu0
    %v251 = vadd.f32 %v166, %v250
    %v252 = vpop.f32.mrf.mxu0
    %v253 = vadd.f32 %v170, %v252
    %254 = vdwg.mxu0
    %v255 = vsub.f32 0.0, %v251
    %v256 = vsub.f32 0.0, %v253
    %v257 = vmul.f32 %v255, 1.442695
    %v258 = vpow.pop %v257
    %v259 = vmul.f32 %v256, 1.442695
    %v260 = vpow.pop %v259
    %v261 = vadd.f32 %v258, 1.0
    %v262 = vadd.f32 %v260, 1.0
    %v263 = vrcp.pop %v261
    %v264 = vrcp.pop %v262
    %v265 = vmul.f32 %v251, %v263
    %v266 = vmul.f32 %v253, %v264
    %v267 = vld [vmem:[%s2] sm:$0xf]
    %v270 = vunpack.c.l.s4 1983009808
    %v271 = vunpack.c.0.s8 %v270
    %v272 = vlaneseq
    %v273 = vshrl.u32 %v272, 7
    %v274 = vsub.s32 %v271, %v273
    %v275 = vrot.slane %v267, %v274
    %v276 = vcombine.high %v275, %v275
    %v279 = vadd.f32 %v265, %v275
    %v280 = vadd.f32 %v266, %v276
    %v281 = vld [vmem:[#allocation4] sm:$0xff]
    %v282 = vld [vmem:[#allocation4 + $0x8] sm:$0xff]
    %v283 = vld [vmem:[#allocation4 + $0x10] sm:$0xff]
    %v284 = vld [vmem:[#allocation4 + $0x18] sm:$0xff]
    %v285 = vld [vmem:[#allocation4 + $0x20] sm:$0xff]
    %v286 = vld [vmem:[#allocation4 + $0x28] sm:$0xff]
    %v287 = vld [vmem:[#allocation4 + $0x30] sm:$0xff]
    %v288 = vld [vmem:[#allocation4 + $0x38] sm:$0xff]
    %v289 = vld [vmem:[#allocation4 + $0x40] sm:$0xff]
    %v290 = vld [vmem:[#allocation4 + $0x48] sm:$0xff]
    %v291 = vld [vmem:[#allocation4 + $0x50] sm:$0xff]
    %v292 = vld [vmem:[#allocation4 + $0x58] sm:$0xff]
    %v293 = vld [vmem:[#allocation4 + $0x60] sm:$0xff]
    %v294 = vld [vmem:[#allocation4 + $0x68] sm:$0xff]
    %v295 = vld [vmem:[#allocation4 + $0x70] sm:$0xff]
    %v296 = vld [vmem:[#allocation4 + $0x78] sm:$0xff]
    %v297 = vld [vmem:[#allocation4 + $0x80] sm:$0xff]
    %v298 = vld [vmem:[#allocation4 + $0x88] sm:$0xff]
    %v299 = vld [vmem:[#allocation4 + $0x90] sm:$0xff]
    %v300 = vld [vmem:[#allocation4 + $0x98] sm:$0xff]
    %v301 = vld [vmem:[#allocation4 + $0xa0] sm:$0xff]
    %v302 = vld [vmem:[#allocation4 + $0xa8] sm:$0xff]
    %v303 = vld [vmem:[#allocation4 + $0xb0] sm:$0xff]
    %v304 = vld [vmem:[#allocation4 + $0xb8] sm:$0xff]
    %v305 = vld [vmem:[#allocation4 + $0xc0] sm:$0xff]
    %v306 = vld [vmem:[#allocation4 + $0xc8] sm:$0xff]
    %v307 = vld [vmem:[#allocation4 + $0xd0] sm:$0xff]
    %v308 = vld [vmem:[#allocation4 + $0xd8] sm:$0xff]
    %v309 = vld [vmem:[#allocation4 + $0xe0] sm:$0xff]
    %v310 = vld [vmem:[#allocation4 + $0xe8] sm:$0xff]
    %v311 = vld [vmem:[#allocation4 + $0xf0] sm:$0xff]
    %v312 = vld [vmem:[#allocation4 + $0xf8] sm:$0xff]
    %v313 = vld [vmem:[%s8] sm:$0x1]
    %v315 = vlaneseq
    %v316 = vshrl.u32 %v315, 7
    %v317 = vsub.s32 0, %v316
    %v318 = vrot.slane %v313, %v317
    %320 = vmatprep.subr.mxu0 0.0
    %321 = vmatpush1.msra.mxu0 %v296
    %322 = vmatprep.subr.mxu0 0.0
    %323 = vmatpush1.msra.mxu0 %v295
    %324 = vmatprep.subr.mxu0 0.0
    %325 = vmatpush1.msra.mxu0 %v294
    %326 = vmatprep.subr.mxu0 0.0
    %327 = vmatpush1.msra.mxu0 %v293
    %328 = vmatprep.subr.mxu0 0.0
    %329 = vmatpush1.msra.mxu0 %v292
    %330 = vmatprep.subr.mxu0 0.0
    %331 = vmatpush1.msra.mxu0 %v291
    %332 = vmatprep.subr.mxu0 0.0
    %333 = vmatpush1.msra.mxu0 %v290
    %334 = vmatprep.subr.mxu0 0.0
    %335 = vmatpush1.msra.mxu0 %v289
    %336 = vmatprep.subr.mxu0 0.0
    %337 = vmatpush1.msra.mxu0 %v288
    %338 = vmatprep.subr.mxu0 0.0
    %339 = vmatpush1.msra.mxu0 %v287
    %340 = vmatprep.subr.mxu0 0.0
    %341 = vmatpush1.msra.mxu0 %v286
    %342 = vmatprep.subr.mxu0 0.0
    %343 = vmatpush1.msra.mxu0 %v285
    %344 = vmatprep.subr.mxu0 0.0
    %345 = vmatpush1.msra.mxu0 %v284
    %346 = vmatprep.subr.mxu0 0.0
    %347 = vmatpush1.msra.mxu0 %v283
    %348 = vmatprep.subr.mxu0 0.0
    %349 = vmatpush1.msra.mxu0 %v282
    %350 = vmatprep.subr.mxu0 0.0
    %351 = vmatpush1.msra.mxu0 %v281
    %352 = vmatprep.subr.mxu0 0.0
    %353 = vmatpush2.msra.mxu0 %v312
    %354 = vmatprep.subr.mxu0 0.0
    %355 = vmatpush2.msra.mxu0 %v311
    %356 = vmatprep.subr.mxu0 0.0
    %357 = vmatpush2.msra.mxu0 %v310
    %358 = vmatprep.subr.mxu0 0.0
    %359 = vmatpush2.msra.mxu0 %v309
    %360 = vmatprep.subr.mxu0 0.0
    %361 = vmatpush2.msra.mxu0 %v308
    %362 = vmatprep.subr.mxu0 0.0
    %363 = vmatpush2.msra.mxu0 %v307
    %364 = vmatprep.subr.mxu0 0.0
    %365 = vmatpush2.msra.mxu0 %v306
    %366 = vmatprep.subr.mxu0 0.0
    %367 = vmatpush2.msra.mxu0 %v305
    %368 = vmatprep.subr.mxu0 0.0
    %369 = vmatpush2.msra.mxu0 %v304
    %370 = vmatprep.subr.mxu0 0.0
    %371 = vmatpush2.msra.mxu0 %v303
    %372 = vmatprep.subr.mxu0 0.0
    %373 = vmatpush2.msra.mxu0 %v302
    %374 = vmatprep.subr.mxu0 0.0
    %375 = vmatpush2.msra.mxu0 %v301
    %376 = vmatprep.subr.mxu0 0.0
    %377 = vmatpush2.msra.mxu0 %v300
    %378 = vmatprep.subr.mxu0 0.0
    %379 = vmatpush2.msra.mxu0 %v299
    %380 = vmatprep.subr.mxu0 0.0
    %381 = vmatpush2.msra.mxu0 %v298
    %382 = vmatprep.subr.mxu0 0.0
    %383 = vmatpush2.msra.mxu0 %v297
    %384 = vmatprep.mubr.f32.mxu0 %v280
    %385 = vmatmul.mubr.f32.gmra.mxu0 %v279
    %v386 = vpop.f32.mrf.mxu0
    %v387 = vadd.f32 %v318, %v386
    %v388 = vpop.f32.mrf.mxu0
    %389 = vdwg.mxu0
    %v392 = vunpack.c.l.s4 1966171168
    %v393 = vunpack.c.0.s8 %v392
    %v394 = vlaneseq
    %v395 = vshrl.u32 %v394, 7
    %v396 = vsub.s32 %v393, %v395
    %v397 = vrot.slane %v387, %v396
    %v398 = vcombine.high %v397, %v397
    %v400 = vunpack.c.l.s4 1966171168
    %v401 = vunpack.c.0.s8 %v400
    %v402 = vlaneseq
    %v403 = vshrl.u32 %v402, 7
    %v404 = vsub.s32 %v401, %v403
    %v405 = vrot.slane %v397, %v404
    %v407 = vunpack.c.l.s4 1966171168
    %v408 = vunpack.c.0.s8 %v407
    %v409 = vlaneseq
    %v410 = vshrl.u32 %v409, 7
    %v411 = vsub.s32 %v408, %v410
    %v412 = vrot.slane %v398, %v411
    %v413 = vlaneseq
    %v414 = vshrl.u32 %v413, 7
    %v415 = vsub.s32 0, %v414
    %v416 = vrot.slane %v405, %v415
    %v417 = vlaneseq
    %v418 = vshrl.u32 %v417, 7
    %v419 = vsub.s32 0, %v418
    %v420 = vrot.slane %v412, %v419
    %v423 = vld [vmem:[%s0] sm:$0xff]
    %v424 = vld [vmem:[%s0 + $0x8] sm:$0xff]
    %v425 = vld [vmem:[%s5] sm:$0x3]
    %v426 = vld [vmem:[%s6] sm:$0x1]
    %v428 = vlaneseq
    %v429 = vshrl.u32 %v428, 7
    %v430 = vsub.s32 0, %v429
    %v431 = vrot.slane %v426, %v430
    %vm433 = vcmask 15360
    %v435 = vsel %vm433, %v423, 0
    %v438 = vsel %vm433, %v424, 0
    %vm440 = vcmask 1041408
    %v442 = vsel %vm440, %v425, 0
    %444 = vmatprep.subr.mxu0 0.0
    %445 = vmatpush1.msra.mxu0 0.0
    %446 = vmatprep.subr.mxu0 0.0
    %447 = vmatpush1.msra.mxu0 0.0
    %448 = vmatprep.subr.mxu0 0.0
    %449 = vmatpush1.msra.mxu0 0.0
    %450 = vmatprep.subr.mxu0 0.0
    %451 = vmatpush1.msra.mxu0 0.0
    %452 = vmatprep.subr.mxu0 0.0
    %453 = vmatpush1.msra.mxu0 0.0
    %454 = vmatprep.subr.mxu0 0.0
    %455 = vmatpush1.msra.mxu0 0.0
    %456 = vmatprep.subr.mxu0 0.0
    %457 = vmatpush1.msra.mxu0 0.0
    %458 = vmatprep.subr.mxu0 0.0
    %459 = vmatpush1.msra.mxu0 0.0
    %460 = vmatprep.subr.mxu0 0.0
    %461 = vmatpush1.msra.mxu0 0.0
    %462 = vmatprep.subr.mxu0 0.0
    %463 = vmatpush1.msra.mxu0 0.0
    %464 = vmatprep.subr.mxu0 0.0
    %465 = vmatpush1.msra.mxu0 0.0
    %466 = vmatprep.subr.mxu0 0.0
    %467 = vmatpush1.msra.mxu0 0.0
    %468 = vmatprep.subr.mxu0 0.0
    %469 = vmatpush1.msra.mxu0 0.0
    %470 = vmatprep.subr.mxu0 0.0
    %471 = vmatpush1.msra.mxu0 0.0
    %472 = vmatprep.subr.mxu0 0.0
    %473 = vmatpush1.msra.mxu0 0.0
    %474 = vmatprep.subr.mxu0 0.0
    %475 = vmatpush1.msra.mxu0 %v442
    %476 = vmatprep.subr.mxu0 0.0
    %477 = vmatpush2.msra.mxu0 0.0
    %478 = vmatprep.subr.mxu0 0.0
    %479 = vmatpush2.msra.mxu0 0.0
    %480 = vmatprep.subr.mxu0 0.0
    %481 = vmatpush2.msra.mxu0 0.0
    %482 = vmatprep.subr.mxu0 0.0
    %483 = vmatpush2.msra.mxu0 0.0
    %484 = vmatprep.subr.mxu0 0.0
    %485 = vmatpush2.msra.mxu0 0.0
    %486 = vmatprep.subr.mxu0 0.0
    %487 = vmatpush2.msra.mxu0 0.0
    %488 = vmatprep.subr.mxu0 0.0
    %489 = vmatpush2.msra.mxu0 0.0
    %490 = vmatprep.subr.mxu0 0.0
    %491 = vmatpush2.msra.mxu0 0.0
    %492 = vmatprep.subr.mxu0 0.0
    %493 = vmatpush2.msra.mxu0 0.0
    %494 = vmatprep.subr.mxu0 0.0
    %495 = vmatpush2.msra.mxu0 0.0
    %496 = vmatprep.subr.mxu0 0.0
    %497 = vmatpush2.msra.mxu0 0.0
    %498 = vmatprep.subr.mxu0 0.0
    %499 = vmatpush2.msra.mxu0 0.0
    %500 = vmatprep.subr.mxu0 0.0
    %501 = vmatpush2.msra.mxu0 0.0
    %502 = vmatprep.subr.mxu0 0.0
    %503 = vmatpush2.msra.mxu0 0.0
    %504 = vmatprep.subr.mxu0 0.0
    %505 = vmatpush2.msra.mxu0 0.0
    %506 = vmatprep.subr.mxu0 0.0
    %507 = vmatpush2.msra.mxu0 0.0
    %508 = vmatprep.mubr.f32.mxu0 0.0
    %509 = vmatmul.mubr.f32.gmra.mxu0 %v435
    %v510 = vpop.f32.mrf.mxu0
    %v511 = vadd.f32 %v431, %v510
    %v512 = vpop.f32.mrf.mxu0
    %513 = vmatprep.mubr.f32.mxu0 0.0
    %514 = vmatmul.mubr.f32.gmra.mxu0 %v438
    %v515 = vpop.f32.mrf.mxu0
    %v516 = vadd.f32 %v431, %v515
    %v517 = vpop.f32.mrf.mxu0
    %518 = vdwg.mxu0
    %v519 = vadd.f32 %v511, %v416
    %v520 = vadd.f32 %v516, %v420
    %v521 = vld [vmem:[%s9] sm:$0x1]
    %v522 = vld [vmem:[%s10] sm:$0x1]
    %vm523 = vcmask 261120
    %v524 = vsel %vm523, %v519, 0.0
    %v525 = vrot.slane %v524, 4
    %v526 = vadd.f32 %v524, %v525
    %v527 = vrot.slane %v526, 2
    %v528 = vadd.f32 %v526, %v527
    %v529 = vrot.slane %v528, 1
    %v530 = vadd.f32 %v528, %v529
    %v531 = vsel %vm523, %v520, 0.0
    %v532 = vrot.slane %v531, 4
    %v533 = vadd.f32 %v531, %v532
    %v534 = vrot.slane %v533, 2
    %v535 = vadd.f32 %v533, %v534
    %v536 = vrot.slane %v535, 1
    %v537 = vadd.f32 %v535, %v536
    %v538 = vmul.f32 %v519, %v519
    %v539 = vmul.f32 %v520, %v520
    %v540 = vsel %vm523, %v538, 0.0
    %v541 = vrot.slane %v540, 4
    %v542 = vadd.f32 %v540, %v541
    %v543 = vrot.slane %v542, 2
    %v544 = vadd.f32 %v542, %v543
    %v545 = vrot.slane %v544, 1
    %v546 = vadd.f32 %v544, %v545
    %v547 = vsel %vm523, %v539, 0.0
    %v548 = vrot.slane %v547, 4
    %v549 = vadd.f32 %v547, %v548
    %v550 = vrot.slane %v549, 2
    %v551 = vadd.f32 %v549, %v550
    %v552 = vrot.slane %v551, 1
    %v553 = vadd.f32 %v551, %v552
    %556 = vrot.lane.b32.xlu0 %v530, 120
    %v557 = vpop.permute.xlu0 %556
    %558 = vrot.lane.b32.xlu0 %v537, 120
    %v559 = vpop.permute.xlu0 %558
    %560 = vrot.lane.b32.xlu0 %v530, 112
    %v561 = vpop.permute.xlu0 %560
    %562 = vrot.lane.b32.xlu0 %v537, 112
    %v563 = vpop.permute.xlu0 %562
    %564 = vrot.lane.b32.xlu0 %v530, 104
    %v565 = vpop.permute.xlu0 %564
    %566 = vrot.lane.b32.xlu0 %v537, 104
    %v567 = vpop.permute.xlu0 %566
    %v568 = vrot.slane %v537, 7
    %vm569 = vcmask 1041409
    %v570 = vsel %vm569, %v568, %v530
    %v571 = vrot.slane %v559, 7
    %v572 = vsel %vm569, %v571, %v557
    %v573 = vrot.slane %v563, 7
    %v574 = vsel %vm569, %v573, %v561
    %v575 = vrot.slane %v567, 7
    %v576 = vsel %vm569, %v575, %v565
    %v581 = vcombine.low %v570, %v574
    %v583 = vunpack.c.l.s4 1983009808
    %v584 = vunpack.c.0.s8 %v583
    %v585 = vlaneseq
    %v586 = vshrl.u32 %v585, 7
    %v587 = vsub.s32 %v584, %v586
    %v588 = vrot.slane %v581, %v587
    %v589 = vcombine.low %v572, %v576
    %v591 = vunpack.c.l.s4 1983009808
    %v592 = vunpack.c.0.s8 %v591
    %v593 = vlaneseq
    %v594 = vshrl.u32 %v593, 7
    %v595 = vsub.s32 %v592, %v594
    %v596 = vrot.slane %v589, %v595
    %v597 = vcombine.low %v588, %v596
    %v599 = vunpack.c.l.s4 1934713408
    %v600 = vunpack.c.0.s8 %v599
    %v601 = vlaneseq
    %v602 = vshrl.u32 %v601, 7
    %v603 = vsub.s32 %v600, %v602
    %v604 = vrot.slane %v597, %v603
    %v605 = vcombine.high %v604, 0.0
    %vm606 = vcmask 60416
    %v607 = vsel %vm606, %v604, 0.0
    %608 = vadd.xlane.f32.xlu0 %v607
    %v609 = vpop.xlane.xlu0 %608
    %v610 = vsel %vm606, %v605, 0.0
    %611 = vadd.xlane.f32.xlu0 %v610
    %v612 = vpop.xlane.xlu0 %611
    %v613 = vmul.f32 %v609, 0.015625
    %v614 = vmul.f32 %v612, 0.015625
    %617 = vrot.lane.b32.xlu0 %v546, 120
    %v618 = vpop.permute.xlu0 %617
    %619 = vrot.lane.b32.xlu0 %v553, 120
    %v620 = vpop.permute.xlu0 %619
    %621 = vrot.lane.b32.xlu0 %v546, 112
    %v622 = vpop.permute.xlu0 %621
    %623 = vrot.lane.b32.xlu0 %v553, 112
    %v624 = vpop.permute.xlu0 %623
    %625 = vrot.lane.b32.xlu0 %v546, 104
    %v626 = vpop.permute.xlu0 %625
    %627 = vrot.lane.b32.xlu0 %v553, 104
    %v628 = vpop.permute.xlu0 %627
    %v629 = vrot.slane %v553, 7
    %v630 = vsel %vm569, %v629, %v546
    %v631 = vrot.slane %v620, 7
    %v632 = vsel %vm569, %v631, %v618
    %v633 = vrot.slane %v624, 7
    %v634 = vsel %vm569, %v633, %v622
    %v635 = vrot.slane %v628, 7
    %v636 = vsel %vm569, %v635, %v626
    %v641 = vcombine.low %v630, %v634
    %v643 = vunpack.c.l.s4 1983009808
    %v644 = vunpack.c.0.s8 %v643
    %v645 = vlaneseq
    %v646 = vshrl.u32 %v645, 7
    %v647 = vsub.s32 %v644, %v646
    %v648 = vrot.slane %v641, %v647
    %v649 = vcombine.low %v632, %v636
    %v651 = vunpack.c.l.s4 1983009808
    %v652 = vunpack.c.0.s8 %v651
    %v653 = vlaneseq
    %v654 = vshrl.u32 %v653, 7
    %v655 = vsub.s32 %v652, %v654
    %v656 = vrot.slane %v649, %v655
    %v657 = vcombine.low %v648, %v656
    %v659 = vunpack.c.l.s4 1934713408
    %v660 = vunpack.c.0.s8 %v659
    %v661 = vlaneseq
    %v662 = vshrl.u32 %v661, 7
    %v663 = vsub.s32 %v660, %v662
    %v664 = vrot.slane %v657, %v663
    %v665 = vcombine.high %v664, 0.0
    %v666 = vsel %vm606, %v664, 0.0
    %667 = vadd.xlane.f32.xlu0 %v666
    %v668 = vpop.xlane.xlu0 %667
    %v669 = vsel %vm606, %v665, 0.0
    %670 = vadd.xlane.f32.xlu0 %v669
    %v671 = vpop.xlane.xlu0 %670
    %v672 = vmul.f32 %v668, 0.015625
    %v673 = vmul.f32 %v671, 0.015625
    %v674 = vmul.f32 %v613, %v613
    %v675 = vmul.f32 %v614, %v614
    %v676 = vsub.f32 %v672, %v674
    %v677 = vsub.f32 %v673, %v675
    %v678 = vadd.f32 %v676, 1e-05
    %v679 = vadd.f32 %v677, 1e-05
    %v681 = vunpack.c.l.s4 1983009808
    %v682 = vunpack.c.0.s8 %v681
    %v683 = vlaneseq
    %v684 = vshrl.u32 %v683, 7
    %v685 = vsub.s32 %v682, %v684
    %v686 = vrot.slane %v613, %v685
    %v688 = vunpack.c.l.s4 1983009808
    %v689 = vunpack.c.0.s8 %v688
    %v690 = vlaneseq
    %v691 = vshrl.u32 %v690, 7
    %v692 = vsub.s32 %v689, %v691
    %v693 = vrot.slane %v614, %v692
    %v694 = vcombine.low %v686, %v693
    %v695 = vcombine.high %v686, %v693
    %v697 = vunpack.c.l.s4 1934713408
    %v698 = vunpack.c.0.s8 %v697
    %v699 = vlaneseq
    %v700 = vshrl.u32 %v699, 7
    %v701 = vsub.s32 %v698, %v700
    %v702 = vrot.slane %v694, %v701
    %v704 = vunpack.c.l.s4 1934713408
    %v705 = vunpack.c.0.s8 %v704
    %v706 = vlaneseq
    %v707 = vshrl.u32 %v706, 7
    %v708 = vsub.s32 %v705, %v707
    %v709 = vrot.slane %v695, %v708
    %v710 = vcombine.high %v702, 0.0
    %v711 = vcombine.high %v709, 0.0
    %713 = vrot.lane.b32.xlu0 %v710, 8
    %v714 = vpop.permute.xlu0 %713
    %717 = vrot.lane.b32.xlu0 %v709, 16
    %v718 = vpop.permute.xlu0 %717
    %721 = vrot.lane.b32.xlu0 %v711, 24
    %v722 = vpop.permute.xlu0 %721
    %vm724 = vcmask 64512
    %v725 = vsel %vm724, %v702, %v714
    %vm726 = vcmask 130048
    %v727 = vsel %vm726, %v725, %v718
    %vm728 = vcmask 195584
    %v729 = vsel %vm728, %v727, %v722
    %v730 = vrsqrt.pop %v678
    %v732 = vunpack.c.l.s4 1983009808
    %v733 = vunpack.c.0.s8 %v732
    %v734 = vlaneseq
    %v735 = vshrl.u32 %v734, 7
    %v736 = vsub.s32 %v733, %v735
    %v737 = vrot.slane %v730, %v736
    %v738 = vrsqrt.pop %v679
    %v740 = vunpack.c.l.s4 1983009808
    %v741 = vunpack.c.0.s8 %v740
    %v742 = vlaneseq
    %v743 = vshrl.u32 %v742, 7
    %v744 = vsub.s32 %v741, %v743
    %v745 = vrot.slane %v738, %v744
    %v746 = vcombine.low %v737, %v745
    %v747 = vcombine.high %v737, %v745
    %v749 = vunpack.c.l.s4 1934713408
    %v750 = vunpack.c.0.s8 %v749
    %v751 = vlaneseq
    %v752 = vshrl.u32 %v751, 7
    %v753 = vsub.s32 %v750, %v752
    %v754 = vrot.slane %v746, %v753
    %v756 = vunpack.c.l.s4 1934713408
    %v757 = vunpack.c.0.s8 %v756
    %v758 = vlaneseq
    %v759 = vshrl.u32 %v758, 7
    %v760 = vsub.s32 %v757, %v759
    %v761 = vrot.slane %v747, %v760
    %v762 = vcombine.high %v754, 0.0
    %v763 = vcombine.high %v761, 0.0
    %765 = vrot.lane.b32.xlu0 %v762, 8
    %v766 = vpop.permute.xlu0 %765
    %769 = vrot.lane.b32.xlu0 %v761, 16
    %v770 = vpop.permute.xlu0 %769
    %773 = vrot.lane.b32.xlu0 %v763, 24
    %v774 = vpop.permute.xlu0 %773
    %v776 = vsel %vm724, %v754, %v766
    %v777 = vsel %vm726, %v776, %v770
    %v778 = vsel %vm728, %v777, %v774
    %v780 = vlaneseq
    %v781 = vshrl.u32 %v780, 7
    %v782 = vsub.s32 0, %v781
    %v783 = vrot.slane %v521, %v782
    %v785 = vmul.f32 %v778, %v783
    %v786 = vmul.f32 %v729, %v785
    %v788 = vlaneseq
    %v789 = vshrl.u32 %v788, 7
    %v790 = vsub.s32 0, %v789
    %v791 = vrot.slane %v522, %v790
    %v793 = vsub.f32 %v791, %v786
    %v796 = vunpack.c.l.s4 1966171168
    %v797 = vunpack.c.0.s8 %v796
    %v798 = vlaneseq
    %v799 = vshrl.u32 %v798, 7
    %v800 = vsub.s32 %v797, %v799
    %v801 = vrot.slane %v785, %v800
    %v802 = vcombine.high %v801, %v801
    %v804 = vunpack.c.l.s4 1966171168
    %v805 = vunpack.c.0.s8 %v804
    %v806 = vlaneseq
    %v807 = vshrl.u32 %v806, 7
    %v808 = vsub.s32 %v805, %v807
    %v809 = vrot.slane %v801, %v808
    %v811 = vunpack.c.l.s4 1966171168
    %v812 = vunpack.c.0.s8 %v811
    %v813 = vlaneseq
    %v814 = vshrl.u32 %v813, 7
    %v815 = vsub.s32 %v812, %v814
    %v816 = vrot.slane %v802, %v815
    %v817 = vlaneseq
    %v818 = vshrl.u32 %v817, 7
    %v819 = vsub.s32 0, %v818
    %v820 = vrot.slane %v809, %v819
    %v821 = vlaneseq
    %v822 = vshrl.u32 %v821, 7
    %v823 = vsub.s32 0, %v822
    %v824 = vrot.slane %v816, %v823
    %v827 = vmul.f32 %v519, %v820
    %v828 = vmul.f32 %v520, %v824
    %v831 = vunpack.c.l.s4 1966171168
    %v832 = vunpack.c.0.s8 %v831
    %v833 = vlaneseq
    %v834 = vshrl.u32 %v833, 7
    %v835 = vsub.s32 %v832, %v834
    %v836 = vrot.slane %v793, %v835
    %v837 = vcombine.high %v836, %v836
    %v839 = vunpack.c.l.s4 1966171168
    %v840 = vunpack.c.0.s8 %v839
    %v841 = vlaneseq
    %v842 = vshrl.u32 %v841, 7
    %v843 = vsub.s32 %v840, %v842
    %v844 = vrot.slane %v836, %v843
    %v846 = vunpack.c.l.s4 1966171168
    %v847 = vunpack.c.0.s8 %v846
    %v848 = vlaneseq
    %v849 = vshrl.u32 %v848, 7
    %v850 = vsub.s32 %v847, %v849
    %v851 = vrot.slane %v837, %v850
    %v852 = vlaneseq
    %v853 = vshrl.u32 %v852, 7
    %v854 = vsub.s32 0, %v853
    %v855 = vrot.slane %v844, %v854
    %v856 = vlaneseq
    %v857 = vshrl.u32 %v856, 7
    %v858 = vsub.s32 0, %v857
    %v859 = vrot.slane %v851, %v858
    %v862 = vadd.f32 %v827, %v855
    %v863 = vadd.f32 %v828, %v859
    %v864 = vsub.f32 0.0, %v862
    %v865 = vsub.f32 0.0, %v863
    %v866 = vmul.f32 %v864, 1.442695
    %v867 = vpow.pop %v866
    %v868 = vmul.f32 %v865, 1.442695
    %v869 = vpow.pop %v868
    %v870 = vadd.f32 %v867, 1.0
    %v871 = vadd.f32 %v869, 1.0
    %v872 = vrcp.pop %v870
    %v873 = vrcp.pop %v871
    %v874 = vmul.f32 %v862, %v872
    %v875 = vmul.f32 %v863, %v873
    %v876 = vld [vmem:[%s11] sm:$0xff]
    %v877 = vld [vmem:[%s11 + $0x8] sm:$0xff]
    %v878 = vld [vmem:[%s11 + $0x10] sm:$0xff]
    %v879 = vld [vmem:[%s11 + $0x18] sm:$0xff]
    %v880 = vld [vmem:[%s12] sm:$0x1]
    %v882 = vlaneseq
    %v883 = vshrl.u32 %v882, 7
    %v884 = vsub.s32 0, %v883
    %v885 = vrot.slane %v880, %v884
    %v888 = vsel %vm523, %v874, 0
    %v891 = vsel %vm523, %v875, 0
    %893 = vmatprep.subr.mxu0 0.0
    %894 = vmatpush1.msra.mxu0 0.0
    %895 = vmatprep.subr.mxu0 0.0
    %896 = vmatpush1.msra.mxu0 0.0
    %897 = vmatprep.subr.mxu0 0.0
    %898 = vmatpush1.msra.mxu0 0.0
    %899 = vmatprep.subr.mxu0 0.0
    %900 = vmatpush1.msra.mxu0 0.0
    %901 = vmatprep.subr.mxu0 0.0
    %902 = vmatpush1.msra.mxu0 0.0
    %903 = vmatprep.subr.mxu0 0.0
    %904 = vmatpush1.msra.mxu0 0.0
    %905 = vmatprep.subr.mxu0 0.0
    %906 = vmatpush1.msra.mxu0 0.0
    %907 = vmatprep.subr.mxu0 0.0
    %908 = vmatpush1.msra.mxu0 0.0
    %909 = vmatprep.subr.mxu0 0.0
    %910 = vmatpush1.msra.mxu0 0.0
    %911 = vmatprep.subr.mxu0 0.0
    %912 = vmatpush1.msra.mxu0 0.0
    %913 = vmatprep.subr.mxu0 0.0
    %914 = vmatpush1.msra.mxu0 0.0
    %915 = vmatprep.subr.mxu0 0.0
    %916 = vmatpush1.msra.mxu0 0.0
    %917 = vmatprep.subr.mxu0 0.0
    %918 = vmatpush1.msra.mxu0 %v879
    %919 = vmatprep.subr.mxu0 0.0
    %920 = vmatpush1.msra.mxu0 %v878
    %921 = vmatprep.subr.mxu0 0.0
    %922 = vmatpush1.msra.mxu0 %v877
    %923 = vmatprep.subr.mxu0 0.0
    %924 = vmatpush1.msra.mxu0 %v876
    %925 = vmatprep.subr.mxu0 0.0
    %926 = vmatpush2.msra.mxu0 0.0
    %927 = vmatprep.subr.mxu0 0.0
    %928 = vmatpush2.msra.mxu0 0.0
    %929 = vmatprep.subr.mxu0 0.0
    %930 = vmatpush2.msra.mxu0 0.0
    %931 = vmatprep.subr.mxu0 0.0
    %932 = vmatpush2.msra.mxu0 0.0
    %933 = vmatprep.subr.mxu0 0.0
    %934 = vmatpush2.msra.mxu0 0.0
    %935 = vmatprep.subr.mxu0 0.0
    %936 = vmatpush2.msra.mxu0 0.0
    %937 = vmatprep.subr.mxu0 0.0
    %938 = vmatpush2.msra.mxu0 0.0
    %939 = vmatprep.subr.mxu0 0.0
    %940 = vmatpush2.msra.mxu0 0.0
    %941 = vmatprep.subr.mxu0 0.0
    %942 = vmatpush2.msra.mxu0 0.0
    %943 = vmatprep.subr.mxu0 0.0
    %944 = vmatpush2.msra.mxu0 0.0
    %945 = vmatprep.subr.mxu0 0.0
    %946 = vmatpush2.msra.mxu0 0.0
    %947 = vmatprep.subr.mxu0 0.0
    %948 = vmatpush2.msra.mxu0 0.0
    %949 = vmatprep.subr.mxu0 0.0
    %950 = vmatpush2.msra.mxu0 0.0
    %951 = vmatprep.subr.mxu0 0.0
    %952 = vmatpush2.msra.mxu0 0.0
    %953 = vmatprep.subr.mxu0 0.0
    %954 = vmatpush2.msra.mxu0 0.0
    %955 = vmatprep.subr.mxu0 0.0
    %956 = vmatpush2.msra.mxu0 0.0
    %957 = vmatprep.mubr.f32.mxu0 0.0
    %958 = vmatmul.mubr.f32.gmra.mxu0 %v888
    %v959 = vpop.f32.mrf.mxu0
    %v960 = vadd.f32 %v885, %v959
    %v961 = vpop.f32.mrf.mxu0
    %962 = vmatprep.mubr.f32.mxu0 0.0
    %963 = vmatmul.mubr.f32.gmra.mxu0 %v891
    %v964 = vpop.f32.mrf.mxu0
    %v965 = vadd.f32 %v885, %v964
    %v966 = vpop.f32.mrf.mxu0
    %967 = vdwg.mxu0
    %968 = vrot.lane.b32.xlu0 %v416, 96
    %v969 = vpop.permute.xlu0 %968
    %970 = vrot.lane.b32.xlu0 %v420, 96
    %v971 = vpop.permute.xlu0 %970
    %v974 = vadd.f32 %v960, %v969
    %v975 = vadd.f32 %v965, %v971
    %v976 = vld [vmem:[%s13] sm:$0x1]
    %v977 = vld [vmem:[%s14] sm:$0x1]
    %vm978 = vcmask 523264
    %v979 = vsel %vm978, %v974, 0.0
    %v980 = vrot.slane %v979, 4
    %v981 = vadd.f32 %v979, %v980
    %v982 = vrot.slane %v981, 2
    %v983 = vadd.f32 %v981, %v982
    %v984 = vrot.slane %v983, 1
    %v985 = vadd.f32 %v983, %v984
    %v986 = vsel %vm978, %v975, 0.0
    %v987 = vrot.slane %v986, 4
    %v988 = vadd.f32 %v986, %v987
    %v989 = vrot.slane %v988, 2
    %v990 = vadd.f32 %v988, %v989
    %v991 = vrot.slane %v990, 1
    %v992 = vadd.f32 %v990, %v991
    %v993 = vmul.f32 %v974, %v974
    %v994 = vmul.f32 %v975, %v975
    %v995 = vsel %vm978, %v993, 0.0
    %v996 = vrot.slane %v995, 4
    %v997 = vadd.f32 %v995, %v996
    %v998 = vrot.slane %v997, 2
    %v999 = vadd.f32 %v997, %v998
    %v1000 = vrot.slane %v999, 1
    %v1001 = vadd.f32 %v999, %v1000
    %v1002 = vsel %vm978, %v994, 0.0
    %v1003 = vrot.slane %v1002, 4
    %v1004 = vadd.f32 %v1002, %v1003
    %v1005 = vrot.slane %v1004, 2
    %v1006 = vadd.f32 %v1004, %v1005
    %v1007 = vrot.slane %v1006, 1
    %v1008 = vadd.f32 %v1006, %v1007
    %1011 = vrot.lane.b32.xlu0 %v985, 126
    %v1012 = vpop.permute.xlu0 %1011
    %1013 = vrot.lane.b32.xlu0 %v992, 126
    %v1014 = vpop.permute.xlu0 %1013
    %1015 = vrot.lane.b32.xlu0 %v985, 124
    %v1016 = vpop.permute.xlu0 %1015
    %1017 = vrot.lane.b32.xlu0 %v992, 124
    %v1018 = vpop.permute.xlu0 %1017
    %1019 = vrot.lane.b32.xlu0 %v985, 122
    %v1020 = vpop.permute.xlu0 %1019
    %1021 = vrot.lane.b32.xlu0 %v992, 122
    %v1022 = vpop.permute.xlu0 %1021
    %1023 = vrot.lane.b32.xlu0 %v985, 120
    %v1024 = vpop.permute.xlu0 %1023
    %1025 = vrot.lane.b32.xlu0 %v992, 120
    %v1026 = vpop.permute.xlu0 %1025
    %1027 = vrot.lane.b32.xlu0 %v985, 118
    %v1028 = vpop.permute.xlu0 %1027
    %1029 = vrot.lane.b32.xlu0 %v992, 118
    %v1030 = vpop.permute.xlu0 %1029
    %1031 = vrot.lane.b32.xlu0 %v985, 116
    %v1032 = vpop.permute.xlu0 %1031
    %1033 = vrot.lane.b32.xlu0 %v992, 116
    %v1034 = vpop.permute.xlu0 %1033
    %1035 = vrot.lane.b32.xlu0 %v985, 114
    %v1036 = vpop.permute.xlu0 %1035
    %1037 = vrot.lane.b32.xlu0 %v992, 114
    %v1038 = vpop.permute.xlu0 %1037
    %1039 = vrot.lane.b32.xlu0 %v985, 112
    %v1040 = vpop.permute.xlu0 %1039
    %1041 = vrot.lane.b32.xlu0 %v992, 112
    %v1042 = vpop.permute.xlu0 %1041
    %1043 = vrot.lane.b32.xlu0 %v985, 110
    %v1044 = vpop.permute.xlu0 %1043
    %1045 = vrot.lane.b32.xlu0 %v992, 110
    %v1046 = vpop.permute.xlu0 %1045
    %1047 = vrot.lane.b32.xlu0 %v985, 108
    %v1048 = vpop.permute.xlu0 %1047
    %1049 = vrot.lane.b32.xlu0 %v992, 108
    %v1050 = vpop.permute.xlu0 %1049
    %1051 = vrot.lane.b32.xlu0 %v985, 106
    %v1052 = vpop.permute.xlu0 %1051
    %1053 = vrot.lane.b32.xlu0 %v992, 106
    %v1054 = vpop.permute.xlu0 %1053
    %1055 = vrot.lane.b32.xlu0 %v985, 104
    %v1056 = vpop.permute.xlu0 %1055
    %1057 = vrot.lane.b32.xlu0 %v992, 104
    %v1058 = vpop.permute.xlu0 %1057
    %1059 = vrot.lane.b32.xlu0 %v985, 102
    %v1060 = vpop.permute.xlu0 %1059
    %1061 = vrot.lane.b32.xlu0 %v992, 102
    %v1062 = vpop.permute.xlu0 %1061
    %1063 = vrot.lane.b32.xlu0 %v985, 100
    %v1064 = vpop.permute.xlu0 %1063
    %1065 = vrot.lane.b32.xlu0 %v992, 100
    %v1066 = vpop.permute.xlu0 %1065
    %1067 = vrot.lane.b32.xlu0 %v985, 98
    %v1068 = vpop.permute.xlu0 %1067
    %1069 = vrot.lane.b32.xlu0 %v992, 98
    %v1070 = vpop.permute.xlu0 %1069
    %1071 = vrot.lane.b32.xlu0 %v985, 96
    %v1072 = vpop.permute.xlu0 %1071
    %1073 = vrot.lane.b32.xlu0 %v992, 96
    %v1074 = vpop.permute.xlu0 %1073
    %1075 = vrot.lane.b32.xlu0 %v985, 94
    %v1076 = vpop.permute.xlu0 %1075
    %1077 = vrot.lane.b32.xlu0 %v992, 94
    %v1078 = vpop.permute.xlu0 %1077
    %1079 = vrot.lane.b32.xlu0 %v985, 92
    %v1080 = vpop.permute.xlu0 %1079
    %1081 = vrot.lane.b32.xlu0 %v992, 92
    %v1082 = vpop.permute.xlu0 %1081
    %1083 = vrot.lane.b32.xlu0 %v985, 90
    %v1084 = vpop.permute.xlu0 %1083
    %1085 = vrot.lane.b32.xlu0 %v992, 90
    %v1086 = vpop.permute.xlu0 %1085
    %1087 = vrot.lane.b32.xlu0 %v985, 88
    %v1088 = vpop.permute.xlu0 %1087
    %1089 = vrot.lane.b32.xlu0 %v992, 88
    %v1090 = vpop.permute.xlu0 %1089
    %1091 = vrot.lane.b32.xlu0 %v985, 86
    %v1092 = vpop.permute.xlu0 %1091
    %1093 = vrot.lane.b32.xlu0 %v992, 86
    %v1094 = vpop.permute.xlu0 %1093
    %1095 = vrot.lane.b32.xlu0 %v985, 84
    %v1096 = vpop.permute.xlu0 %1095
    %1097 = vrot.lane.b32.xlu0 %v992, 84
    %v1098 = vpop.permute.xlu0 %1097
    %1099 = vrot.lane.b32.xlu0 %v985, 82
    %v1100 = vpop.permute.xlu0 %1099
    %1101 = vrot.lane.b32.xlu0 %v992, 82
    %v1102 = vpop.permute.xlu0 %1101
    %1103 = vrot.lane.b32.xlu0 %v985, 80
    %v1104 = vpop.permute.xlu0 %1103
    %1105 = vrot.lane.b32.xlu0 %v992, 80
    %v1106 = vpop.permute.xlu0 %1105
    %1107 = vrot.lane.b32.xlu0 %v985, 78
    %v1108 = vpop.permute.xlu0 %1107
    %1109 = vrot.lane.b32.xlu0 %v992, 78
    %v1110 = vpop.permute.xlu0 %1109
    %1111 = vrot.lane.b32.xlu0 %v985, 76
    %v1112 = vpop.permute.xlu0 %1111
    %1113 = vrot.lane.b32.xlu0 %v992, 76
    %v1114 = vpop.permute.xlu0 %1113
    %1115 = vrot.lane.b32.xlu0 %v985, 74
    %v1116 = vpop.permute.xlu0 %1115
    %1117 = vrot.lane.b32.xlu0 %v992, 74
    %v1118 = vpop.permute.xlu0 %1117
    %1119 = vrot.lane.b32.xlu0 %v985, 72
    %v1120 = vpop.permute.xlu0 %1119
    %1121 = vrot.lane.b32.xlu0 %v992, 72
    %v1122 = vpop.permute.xlu0 %1121
    %1123 = vrot.lane.b32.xlu0 %v985, 70
    %v1124 = vpop.permute.xlu0 %1123
    %1125 = vrot.lane.b32.xlu0 %v992, 70
    %v1126 = vpop.permute.xlu0 %1125
    %1127 = vrot.lane.b32.xlu0 %v985, 68
    %v1128 = vpop.permute.xlu0 %1127
    %1129 = vrot.lane.b32.xlu0 %v992, 68
    %v1130 = vpop.permute.xlu0 %1129
    %1131 = vrot.lane.b32.xlu0 %v985, 66
    %v1132 = vpop.permute.xlu0 %1131
    %1133 = vrot.lane.b32.xlu0 %v992, 66
    %v1134 = vpop.permute.xlu0 %1133
    %v1135 = vrot.slane %v992, 7
    %v1136 = vsel %vm569, %v1135, %v985
    %v1137 = vrot.slane %v1014, 7
    %v1138 = vsel %vm569, %v1137, %v1012
    %v1139 = vrot.slane %v1018, 7
    %v1140 = vsel %vm569, %v1139, %v1016
    %v1141 = vrot.slane %v1022, 7
    %v1142 = vsel %vm569, %v1141, %v1020
    %v1143 = vrot.slane %v1026, 7
    %v1144 = vsel %vm569, %v1143, %v1024
    %v1145 = vrot.slane %v1030, 7
    %v1146 = vsel %vm569, %v1145, %v1028
    %v1147 = vrot.slane %v1034, 7
    %v1148 = vsel %vm569, %v1147, %v1032
    %v1149 = vrot.slane %v1038, 7
    %v1150 = vsel %vm569, %v1149, %v1036
    %v1151 = vrot.slane %v1042, 7
    %v1152 = vsel %vm569, %v1151, %v1040
    %v1153 = vrot.slane %v1046, 7
    %v1154 = vsel %vm569, %v1153, %v1044
    %v1155 = vrot.slane %v1050, 7
    %v1156 = vsel %vm569, %v1155, %v1048
    %v1157 = vrot.slane %v1054, 7
    %v1158 = vsel %vm569, %v1157, %v1052
    %v1159 = vrot.slane %v1058, 7
    %v1160 = vsel %vm569, %v1159, %v1056
    %v1161 = vrot.slane %v1062, 7
    %v1162 = vsel %vm569, %v1161, %v1060
    %v1163 = vrot.slane %v1066, 7
    %v1164 = vsel %vm569, %v1163, %v1064
    %v1165 = vrot.slane %v1070, 7
    %v1166 = vsel %vm569, %v1165, %v1068
    %v1167 = vrot.slane %v1074, 7
    %v1168 = vsel %vm569, %v1167, %v1072
    %v1169 = vrot.slane %v1078, 7
    %v1170 = vsel %vm569, %v1169, %v1076
    %v1171 = vrot.slane %v1082, 7
    %v1172 = vsel %vm569, %v1171, %v1080
    %v1173 = vrot.slane %v1086, 7
    %v1174 = vsel %vm569, %v1173, %v1084
    %v1175 = vrot.slane %v1090, 7
    %v1176 = vsel %vm569, %v1175, %v1088
    %v1177 = vrot.slane %v1094, 7
    %v1178 = vsel %vm569, %v1177, %v1092
    %v1179 = vrot.slane %v1098, 7
    %v1180 = vsel %vm569, %v1179, %v1096
    %v1181 = vrot.slane %v1102, 7
    %v1182 = vsel %vm569, %v1181, %v1100
    %v1183 = vrot.slane %v1106, 7
    %v1184 = vsel %vm569, %v1183, %v1104
    %v1185 = vrot.slane %v1110, 7
    %v1186 = vsel %vm569, %v1185, %v1108
    %v1187 = vrot.slane %v1114, 7
    %v1188 = vsel %vm569, %v1187, %v1112
    %v1189 = vrot.slane %v1118, 7
    %v1190 = vsel %vm569, %v1189, %v1116
    %v1191 = vrot.slane %v1122, 7
    %v1192 = vsel %vm569, %v1191, %v1120
    %v1193 = vrot.slane %v1126, 7
    %v1194 = vsel %vm569, %v1193, %v1124
    %v1195 = vrot.slane %v1130, 7
    %v1196 = vsel %vm569, %v1195, %v1128
    %v1197 = vrot.slane %v1134, 7
    %v1198 = vsel %vm569, %v1197, %v1132
    %v1231 = vcombine.low %v1136, %v1140
    %v1233 = vunpack.c.l.s4 1983009808
    %v1234 = vunpack.c.0.s8 %v1233
    %v1235 = vlaneseq
    %v1236 = vshrl.u32 %v1235, 7
    %v1237 = vsub.s32 %v1234, %v1236
    %v1238 = vrot.slane %v1231, %v1237
    %v1239 = vcombine.low %v1138, %v1142
    %v1241 = vunpack.c.l.s4 1983009808
    %v1242 = vunpack.c.0.s8 %v1241
    %v1243 = vlaneseq
    %v1244 = vshrl.u32 %v1243, 7
    %v1245 = vsub.s32 %v1242, %v1244
    %v1246 = vrot.slane %v1239, %v1245
    %v1247 = vcombine.low %v1144, %v1148
    %v1249 = vunpack.c.l.s4 1983009808
    %v1250 = vunpack.c.0.s8 %v1249
    %v1251 = vlaneseq
    %v1252 = vshrl.u32 %v1251, 7
    %v1253 = vsub.s32 %v1250, %v1252
    %v1254 = vrot.slane %v1247, %v1253
    %v1255 = vcombine.low %v1146, %v1150
    %v1257 = vunpack.c.l.s4 1983009808
    %v1258 = vunpack.c.0.s8 %v1257
    %v1259 = vlaneseq
    %v1260 = vshrl.u32 %v1259, 7
    %v1261 = vsub.s32 %v1258, %v1260
    %v1262 = vrot.slane %v1255, %v1261
    %v1263 = vcombine.low %v1238, %v1246
    %v1265 = vunpack.c.l.s4 1934713408
    %v1266 = vunpack.c.0.s8 %v1265
    %v1267 = vlaneseq
    %v1268 = vshrl.u32 %v1267, 7
    %v1269 = vsub.s32 %v1266, %v1268
    %v1270 = vrot.slane %v1263, %v1269
    %v1271 = vcombine.low %v1254, %v1262
    %v1273 = vunpack.c.l.s4 1934713408
    %v1274 = vunpack.c.0.s8 %v1273
    %v1275 = vlaneseq
    %v1276 = vshrl.u32 %v1275, 7
    %v1277 = vsub.s32 %v1274, %v1276
    %v1278 = vrot.slane %v1271, %v1277
    %v1279 = vcombine.low %v1270, %v1278
    %v1280 = vcombine.high %v1270, %v1278
    %v1281 = vcombine.low %v1152, %v1156
    %v1283 = vunpack.c.l.s4 1983009808
    %v1284 = vunpack.c.0.s8 %v1283
    %v1285 = vlaneseq
    %v1286 = vshrl.u32 %v1285, 7
    %v1287 = vsub.s32 %v1284, %v1286
    %v1288 = vrot.slane %v1281, %v1287
    %v1289 = vcombine.low %v1154, %v1158
    %v1291 = vunpack.c.l.s4 1983009808
    %v1292 = vunpack.c.0.s8 %v1291
    %v1293 = vlaneseq
    %v1294 = vshrl.u32 %v1293, 7
    %v1295 = vsub.s32 %v1292, %v1294
    %v1296 = vrot.slane %v1289, %v1295
    %v1297 = vcombine.low %v1160, %v1164
    %v1299 = vunpack.c.l.s4 1983009808
    %v1300 = vunpack.c.0.s8 %v1299
    %v1301 = vlaneseq
    %v1302 = vshrl.u32 %v1301, 7
    %v1303 = vsub.s32 %v1300, %v1302
    %v1304 = vrot.slane %v1297, %v1303
    %v1305 = vcombine.low %v1162, %v1166
    %v1307 = vunpack.c.l.s4 1983009808
    %v1308 = vunpack.c.0.s8 %v1307
    %v1309 = vlaneseq
    %v1310 = vshrl.u32 %v1309, 7
    %v1311 = vsub.s32 %v1308, %v1310
    %v1312 = vrot.slane %v1305, %v1311
    %v1313 = vcombine.low %v1288, %v1296
    %v1315 = vunpack.c.l.s4 1934713408
    %v1316 = vunpack.c.0.s8 %v1315
    %v1317 = vlaneseq
    %v1318 = vshrl.u32 %v1317, 7
    %v1319 = vsub.s32 %v1316, %v1318
    %v1320 = vrot.slane %v1313, %v1319
    %v1321 = vcombine.low %v1304, %v1312
    %v1323 = vunpack.c.l.s4 1934713408
    %v1324 = vunpack.c.0.s8 %v1323
    %v1325 = vlaneseq
    %v1326 = vshrl.u32 %v1325, 7
    %v1327 = vsub.s32 %v1324, %v1326
    %v1328 = vrot.slane %v1321, %v1327
    %v1329 = vcombine.low %v1320, %v1328
    %v1330 = vcombine.high %v1320, %v1328
    %v1331 = vcombine.low %v1168, %v1172
    %v1333 = vunpack.c.l.s4 1983009808
    %v1334 = vunpack.c.0.s8 %v1333
    %v1335 = vlaneseq
    %v1336 = vshrl.u32 %v1335, 7
    %v1337 = vsub.s32 %v1334, %v1336
    %v1338 = vrot.slane %v1331, %v1337
    %v1339 = vcombine.low %v1170, %v1174
    %v1341 = vunpack.c.l.s4 1983009808
    %v1342 = vunpack.c.0.s8 %v1341
    %v1343 = vlaneseq
    %v1344 = vshrl.u32 %v1343, 7
    %v1345 = vsub.s32 %v1342, %v1344
    %v1346 = vrot.slane %v1339, %v1345
    %v1347 = vcombine.low %v1176, %v1180
    %v1349 = vunpack.c.l.s4 1983009808
    %v1350 = vunpack.c.0.s8 %v1349
    %v1351 = vlaneseq
    %v1352 = vshrl.u32 %v1351, 7
    %v1353 = vsub.s32 %v1350, %v1352
    %v1354 = vrot.slane %v1347, %v1353
    %v1355 = vcombine.low %v1178, %v1182
    %v1357 = vunpack.c.l.s4 1983009808
    %v1358 = vunpack.c.0.s8 %v1357
    %v1359 = vlaneseq
    %v1360 = vshrl.u32 %v1359, 7
    %v1361 = vsub.s32 %v1358, %v1360
    %v1362 = vrot.slane %v1355, %v1361
    %v1363 = vcombine.low %v1338, %v1346
    %v1365 = vunpack.c.l.s4 1934713408
    %v1366 = vunpack.c.0.s8 %v1365
    %v1367 = vlaneseq
    %v1368 = vshrl.u32 %v1367, 7
    %v1369 = vsub.s32 %v1366, %v1368
    %v1370 = vrot.slane %v1363, %v1369
    %v1371 = vcombine.low %v1354, %v1362
    %v1373 = vunpack.c.l.s4 1934713408
    %v1374 = vunpack.c.0.s8 %v1373
    %v1375 = vlaneseq
    %v1376 = vshrl.u32 %v1375, 7
    %v1377 = vsub.s32 %v1374, %v1376
    %v1378 = vrot.slane %v1371, %v1377
    %v1379 = vcombine.low %v1370, %v1378
    %v1380 = vcombine.high %v1370, %v1378
    %v1381 = vcombine.low %v1184, %v1188
    %v1383 = vunpack.c.l.s4 1983009808
    %v1384 = vunpack.c.0.s8 %v1383
    %v1385 = vlaneseq
    %v1386 = vshrl.u32 %v1385, 7
    %v1387 = vsub.s32 %v1384, %v1386
    %v1388 = vrot.slane %v1381, %v1387
    %v1389 = vcombine.low %v1186, %v1190
    %v1391 = vunpack.c.l.s4 1983009808
    %v1392 = vunpack.c.0.s8 %v1391
    %v1393 = vlaneseq
    %v1394 = vshrl.u32 %v1393, 7
    %v1395 = vsub.s32 %v1392, %v1394
    %v1396 = vrot.slane %v1389, %v1395
    %v1397 = vcombine.low %v1192, %v1196
    %v1399 = vunpack.c.l.s4 1983009808
    %v1400 = vunpack.c.0.s8 %v1399
    %v1401 = vlaneseq
    %v1402 = vshrl.u32 %v1401, 7
    %v1403 = vsub.s32 %v1400, %v1402
    %v1404 = vrot.slane %v1397, %v1403
    %v1405 = vcombine.low %v1194, %v1198
    %v1407 = vunpack.c.l.s4 1983009808
    %v1408 = vunpack.c.0.s8 %v1407
    %v1409 = vlaneseq
    %v1410 = vshrl.u32 %v1409, 7
    %v1411 = vsub.s32 %v1408, %v1410
    %v1412 = vrot.slane %v1405, %v1411
    %v1413 = vcombine.low %v1388, %v1396
    %v1415 = vunpack.c.l.s4 1934713408
    %v1416 = vunpack.c.0.s8 %v1415
    %v1417 = vlaneseq
    %v1418 = vshrl.u32 %v1417, 7
    %v1419 = vsub.s32 %v1416, %v1418
    %v1420 = vrot.slane %v1413, %v1419
    %v1421 = vcombine.low %v1404, %v1412
    %v1423 = vunpack.c.l.s4 1934713408
    %v1424 = vunpack.c.0.s8 %v1423
    %v1425 = vlaneseq
    %v1426 = vshrl.u32 %v1425, 7
    %v1427 = vsub.s32 %v1424, %v1426
    %v1428 = vrot.slane %v1421, %v1427
    %v1429 = vcombine.low %v1420, %v1428
    %v1430 = vcombine.high %v1420, %v1428
    %v1431 = vsel %vm433, %v1279, 0.0
    %1432 = vadd.xlane.f32.xlu0 %v1431
    %v1433 = vpop.xlane.xlu0 %1432
    %v1434 = vsel %vm433, %v1329, 0.0
    %1435 = vadd.xlane.f32.xlu0 %v1434
    %v1436 = vpop.xlane.xlu0 %1435
    %v1437 = vsel %vm433, %v1379, 0.0
    %1438 = vadd.xlane.f32.xlu0 %v1437
    %v1439 = vpop.xlane.xlu0 %1438
    %v1440 = vsel %vm433, %v1429, 0.0
    %1441 = vadd.xlane.f32.xlu0 %v1440
    %v1442 = vpop.xlane.xlu0 %1441
    %v1443 = vsel %vm433, %v1280, 0.0
    %1444 = vadd.xlane.f32.xlu0 %v1443
    %v1445 = vpop.xlane.xlu0 %1444
    %v1446 = vsel %vm433, %v1330, 0.0
    %1447 = vadd.xlane.f32.xlu0 %v1446
    %v1448 = vpop.xlane.xlu0 %1447
    %v1449 = vsel %vm433, %v1380, 0.0
    %1450 = vadd.xlane.f32.xlu0 %v1449
    %v1451 = vpop.xlane.xlu0 %1450
    %v1452 = vsel %vm433, %v1430, 0.0
    %1453 = vadd.xlane.f32.xlu0 %v1452
    %v1454 = vpop.xlane.xlu0 %1453
    %v1455 = vmul.f32 %v1433, 0.0625
    %v1456 = vmul.f32 %v1436, 0.0625
    %v1457 = vmul.f32 %v1439, 0.0625
    %v1458 = vmul.f32 %v1442, 0.0625
    %v1459 = vmul.f32 %v1445, 0.0625
    %v1460 = vmul.f32 %v1448, 0.0625
    %v1461 = vmul.f32 %v1451, 0.0625
    %v1462 = vmul.f32 %v1454, 0.0625
    %1465 = vrot.lane.b32.xlu0 %v1001, 126
    %v1466 = vpop.permute.xlu0 %1465
    %1467 = vrot.lane.b32.xlu0 %v1008, 126
    %v1468 = vpop.permute.xlu0 %1467
    %1469 = vrot.lane.b32.xlu0 %v1001, 124
    %v1470 = vpop.permute.xlu0 %1469
    %1471 = vrot.lane.b32.xlu0 %v1008, 124
    %v1472 = vpop.permute.xlu0 %1471
    %1473 = vrot.lane.b32.xlu0 %v1001, 122
    %v1474 = vpop.permute.xlu0 %1473
    %1475 = vrot.lane.b32.xlu0 %v1008, 122
    %v1476 = vpop.permute.xlu0 %1475
    %1477 = vrot.lane.b32.xlu0 %v1001, 120
    %v1478 = vpop.permute.xlu0 %1477
    %1479 = vrot.lane.b32.xlu0 %v1008, 120
    %v1480 = vpop.permute.xlu0 %1479
    %1481 = vrot.lane.b32.xlu0 %v1001, 118
    %v1482 = vpop.permute.xlu0 %1481
    %1483 = vrot.lane.b32.xlu0 %v1008, 118
    %v1484 = vpop.permute.xlu0 %1483
    %1485 = vrot.lane.b32.xlu0 %v1001, 116
    %v1486 = vpop.permute.xlu0 %1485
    %1487 = vrot.lane.b32.xlu0 %v1008, 116
    %v1488 = vpop.permute.xlu0 %1487
    %1489 = vrot.lane.b32.xlu0 %v1001, 114
    %v1490 = vpop.permute.xlu0 %1489
    %1491 = vrot.lane.b32.xlu0 %v1008, 114
    %v1492 = vpop.permute.xlu0 %1491
    %1493 = vrot.lane.b32.xlu0 %v1001, 112
    %v1494 = vpop.permute.xlu0 %1493
    %1495 = vrot.lane.b32.xlu0 %v1008, 112
    %v1496 = vpop.permute.xlu0 %1495
    %1497 = vrot.lane.b32.xlu0 %v1001, 110
    %v1498 = vpop.permute.xlu0 %1497
    %1499 = vrot.lane.b32.xlu0 %v1008, 110
    %v1500 = vpop.permute.xlu0 %1499
    %1501 = vrot.lane.b32.xlu0 %v1001, 108
    %v1502 = vpop.permute.xlu0 %1501
    %1503 = vrot.lane.b32.xlu0 %v1008, 108
    %v1504 = vpop.permute.xlu0 %1503
    %1505 = vrot.lane.b32.xlu0 %v1001, 106
    %v1506 = vpop.permute.xlu0 %1505
    %1507 = vrot.lane.b32.xlu0 %v1008, 106
    %v1508 = vpop.permute.xlu0 %1507
    %1509 = vrot.lane.b32.xlu0 %v1001, 104
    %v1510 = vpop.permute.xlu0 %1509
    %1511 = vrot.lane.b32.xlu0 %v1008, 104
    %v1512 = vpop.permute.xlu0 %1511
    %1513 = vrot.lane.b32.xlu0 %v1001, 102
    %v1514 = vpop.permute.xlu0 %1513
    %1515 = vrot.lane.b32.xlu0 %v1008, 102
    %v1516 = vpop.permute.xlu0 %1515
    %1517 = vrot.lane.b32.xlu0 %v1001, 100
    %v1518 = vpop.permute.xlu0 %1517
    %1519 = vrot.lane.b32.xlu0 %v1008, 100
    %v1520 = vpop.permute.xlu0 %1519
    %1521 = vrot.lane.b32.xlu0 %v1001, 98
    %v1522 = vpop.permute.xlu0 %1521
    %1523 = vrot.lane.b32.xlu0 %v1008, 98
    %v1524 = vpop.permute.xlu0 %1523
    %1525 = vrot.lane.b32.xlu0 %v1001, 96
    %v1526 = vpop.permute.xlu0 %1525
    %1527 = vrot.lane.b32.xlu0 %v1008, 96
    %v1528 = vpop.permute.xlu0 %1527
    %1529 = vrot.lane.b32.xlu0 %v1001, 94
    %v1530 = vpop.permute.xlu0 %1529
    %1531 = vrot.lane.b32.xlu0 %v1008, 94
    %v1532 = vpop.permute.xlu0 %1531
    %1533 = vrot.lane.b32.xlu0 %v1001, 92
    %v1534 = vpop.permute.xlu0 %1533
    %1535 = vrot.lane.b32.xlu0 %v1008, 92
    %v1536 = vpop.permute.xlu0 %1535
    %1537 = vrot.lane.b32.xlu0 %v1001, 90
    %v1538 = vpop.permute.xlu0 %1537
    %1539 = vrot.lane.b32.xlu0 %v1008, 90
    %v1540 = vpop.permute.xlu0 %1539
    %1541 = vrot.lane.b32.xlu0 %v1001, 88
    %v1542 = vpop.permute.xlu0 %1541
    %1543 = vrot.lane.b32.xlu0 %v1008, 88
    %v1544 = vpop.permute.xlu0 %1543
    %1545 = vrot.lane.b32.xlu0 %v1001, 86
    %v1546 = vpop.permute.xlu0 %1545
    %1547 = vrot.lane.b32.xlu0 %v1008, 86
    %v1548 = vpop.permute.xlu0 %1547
    %1549 = vrot.lane.b32.xlu0 %v1001, 84
    %v1550 = vpop.permute.xlu0 %1549
    %1551 = vrot.lane.b32.xlu0 %v1008, 84
    %v1552 = vpop.permute.xlu0 %1551
    %1553 = vrot.lane.b32.xlu0 %v1001, 82
    %v1554 = vpop.permute.xlu0 %1553
    %1555 = vrot.lane.b32.xlu0 %v1008, 82
    %v1556 = vpop.permute.xlu0 %1555
    %1557 = vrot.lane.b32.xlu0 %v1001, 80
    %v1558 = vpop.permute.xlu0 %1557
    %1559 = vrot.lane.b32.xlu0 %v1008, 80
    %v1560 = vpop.permute.xlu0 %1559
    %1561 = vrot.lane.b32.xlu0 %v1001, 78
    %v1562 = vpop.permute.xlu0 %1561
    %1563 = vrot.lane.b32.xlu0 %v1008, 78
    %v1564 = vpop.permute.xlu0 %1563
    %1565 = vrot.lane.b32.xlu0 %v1001, 76
    %v1566 = vpop.permute.xlu0 %1565
    %1567 = vrot.lane.b32.xlu0 %v1008, 76
    %v1568 = vpop.permute.xlu0 %1567
    %1569 = vrot.lane.b32.xlu0 %v1001, 74
    %v1570 = vpop.permute.xlu0 %1569
    %1571 = vrot.lane.b32.xlu0 %v1008, 74
    %v1572 = vpop.permute.xlu0 %1571
    %1573 = vrot.lane.b32.xlu0 %v1001, 72
    %v1574 = vpop.permute.xlu0 %1573
    %1575 = vrot.lane.b32.xlu0 %v1008, 72
    %v1576 = vpop.permute.xlu0 %1575
    %1577 = vrot.lane.b32.xlu0 %v1001, 70
    %v1578 = vpop.permute.xlu0 %1577
    %1579 = vrot.lane.b32.xlu0 %v1008, 70
    %v1580 = vpop.permute.xlu0 %1579
    %1581 = vrot.lane.b32.xlu0 %v1001, 68
    %v1582 = vpop.permute.xlu0 %1581
    %1583 = vrot.lane.b32.xlu0 %v1008, 68
    %v1584 = vpop.permute.xlu0 %1583
    %1585 = vrot.lane.b32.xlu0 %v1001, 66
    %v1586 = vpop.permute.xlu0 %1585
    %1587 = vrot.lane.b32.xlu0 %v1008, 66
    %v1588 = vpop.permute.xlu0 %1587
    %v1589 = vrot.slane %v1008, 7
    %v1590 = vsel %vm569, %v1589, %v1001
    %v1591 = vrot.slane %v1468, 7
    %v1592 = vsel %vm569, %v1591, %v1466
    %v1593 = vrot.slane %v1472, 7
    %v1594 = vsel %vm569, %v1593, %v1470
    %v1595 = vrot.slane %v1476, 7
    %v1596 = vsel %vm569, %v1595, %v1474
    %v1597 = vrot.slane %v1480, 7
    %v1598 = vsel %vm569, %v1597, %v1478
    %v1599 = vrot.slane %v1484, 7
    %v1600 = vsel %vm569, %v1599, %v1482
    %v1601 = vrot.slane %v1488, 7
    %v1602 = vsel %vm569, %v1601, %v1486
    %v1603 = vrot.slane %v1492, 7
    %v1604 = vsel %vm569, %v1603, %v1490
    %v1605 = vrot.slane %v1496, 7
    %v1606 = vsel %vm569, %v1605, %v1494
    %v1607 = vrot.slane %v1500, 7
    %v1608 = vsel %vm569, %v1607, %v1498
    %v1609 = vrot.slane %v1504, 7
    %v1610 = vsel %vm569, %v1609, %v1502
    %v1611 = vrot.slane %v1508, 7
    %v1612 = vsel %vm569, %v1611, %v1506
    %v1613 = vrot.slane %v1512, 7
    %v1614 = vsel %vm569, %v1613, %v1510
    %v1615 = vrot.slane %v1516, 7
    %v1616 = vsel %vm569, %v1615, %v1514
    %v1617 = vrot.slane %v1520, 7
    %v1618 = vsel %vm569, %v1617, %v1518
    %v1619 = vrot.slane %v1524, 7
    %v1620 = vsel %vm569, %v1619, %v1522
    %v1621 = vrot.slane %v1528, 7
    %v1622 = vsel %vm569, %v1621, %v1526
    %v1623 = vrot.slane %v1532, 7
    %v1624 = vsel %vm569, %v1623, %v1530
    %v1625 = vrot.slane %v1536, 7
    %v1626 = vsel %vm569, %v1625, %v1534
    %v1627 = vrot.slane %v1540, 7
    %v1628 = vsel %vm569, %v1627, %v1538
    %v1629 = vrot.slane %v1544, 7
    %v1630 = vsel %vm569, %v1629, %v1542
    %v1631 = vrot.slane %v1548, 7
    %v1632 = vsel %vm569, %v1631, %v1546
    %v1633 = vrot.slane %v1552, 7
    %v1634 = vsel %vm569, %v1633, %v1550
    %v1635 = vrot.slane %v1556, 7
    %v1636 = vsel %vm569, %v1635, %v1554
    %v1637 = vrot.slane %v1560, 7
    %v1638 = vsel %vm569, %v1637, %v1558
    %v1639 = vrot.slane %v1564, 7
    %v1640 = vsel %vm569, %v1639, %v1562
    %v1641 = vrot.slane %v1568, 7
    %v1642 = vsel %vm569, %v1641, %v1566
    %v1643 = vrot.slane %v1572, 7
    %v1644 = vsel %vm569, %v1643, %v1570
    %v1645 = vrot.slane %v1576, 7
    %v1646 = vsel %vm569, %v1645, %v1574
    %v1647 = vrot.slane %v1580, 7
    %v1648 = vsel %vm569, %v1647, %v1578
    %v1649 = vrot.slane %v1584, 7
    %v1650 = vsel %vm569, %v1649, %v1582
    %v1651 = vrot.slane %v1588, 7
    %v1652 = vsel %vm569, %v1651, %v1586
    %v1685 = vcombine.low %v1590, %v1594
    %v1687 = vunpack.c.l.s4 1983009808
    %v1688 = vunpack.c.0.s8 %v1687
    %v1689 = vlaneseq
    %v1690 = vshrl.u32 %v1689, 7
    %v1691 = vsub.s32 %v1688, %v1690
    %v1692 = vrot.slane %v1685, %v1691
    %v1693 = vcombine.low %v1592, %v1596
    %v1695 = vunpack.c.l.s4 1983009808
    %v1696 = vunpack.c.0.s8 %v1695
    %v1697 = vlaneseq
    %v1698 = vshrl.u32 %v1697, 7
    %v1699 = vsub.s32 %v1696, %v1698
    %v1700 = vrot.slane %v1693, %v1699
    %v1701 = vcombine.low %v1598, %v1602
    %v1703 = vunpack.c.l.s4 1983009808
    %v1704 = vunpack.c.0.s8 %v1703
    %v1705 = vlaneseq
    %v1706 = vshrl.u32 %v1705, 7
    %v1707 = vsub.s32 %v1704, %v1706
    %v1708 = vrot.slane %v1701, %v1707
    %v1709 = vcombine.low %v1600, %v1604
    %v1711 = vunpack.c.l.s4 1983009808
    %v1712 = vunpack.c.0.s8 %v1711
    %v1713 = vlaneseq
    %v1714 = vshrl.u32 %v1713, 7
    %v1715 = vsub.s32 %v1712, %v1714
    %v1716 = vrot.slane %v1709, %v1715
    %v1717 = vcombine.low %v1692, %v1700
    %v1719 = vunpack.c.l.s4 1934713408
    %v1720 = vunpack.c.0.s8 %v1719
    %v1721 = vlaneseq
    %v1722 = vshrl.u32 %v1721, 7
    %v1723 = vsub.s32 %v1720, %v1722
    %v1724 = vrot.slane %v1717, %v1723
    %v1725 = vcombine.low %v1708, %v1716
    %v1727 = vunpack.c.l.s4 1934713408
    %v1728 = vunpack.c.0.s8 %v1727
    %v1729 = vlaneseq
    %v1730 = vshrl.u32 %v1729, 7
    %v1731 = vsub.s32 %v1728, %v1730
    %v1732 = vrot.slane %v1725, %v1731
    %v1733 = vcombine.low %v1724, %v1732
    %v1734 = vcombine.high %v1724, %v1732
    %v1735 = vcombine.low %v1606, %v1610
    %v1737 = vunpack.c.l.s4 1983009808
    %v1738 = vunpack.c.0.s8 %v1737
    %v1739 = vlaneseq
    %v1740 = vshrl.u32 %v1739, 7
    %v1741 = vsub.s32 %v1738, %v1740
    %v1742 = vrot.slane %v1735, %v1741
    %v1743 = vcombine.low %v1608, %v1612
    %v1745 = vunpack.c.l.s4 1983009808
    %v1746 = vunpack.c.0.s8 %v1745
    %v1747 = vlaneseq
    %v1748 = vshrl.u32 %v1747, 7
    %v1749 = vsub.s32 %v1746, %v1748
    %v1750 = vrot.slane %v1743, %v1749
    %v1751 = vcombine.low %v1614, %v1618
    %v1753 = vunpack.c.l.s4 1983009808
    %v1754 = vunpack.c.0.s8 %v1753
    %v1755 = vlaneseq
    %v1756 = vshrl.u32 %v1755, 7
    %v1757 = vsub.s32 %v1754, %v1756
    %v1758 = vrot.slane %v1751, %v1757
    %v1759 = vcombine.low %v1616, %v1620
    %v1761 = vunpack.c.l.s4 1983009808
    %v1762 = vunpack.c.0.s8 %v1761
    %v1763 = vlaneseq
    %v1764 = vshrl.u32 %v1763, 7
    %v1765 = vsub.s32 %v1762, %v1764
    %v1766 = vrot.slane %v1759, %v1765
    %v1767 = vcombine.low %v1742, %v1750
    %v1769 = vunpack.c.l.s4 1934713408
    %v1770 = vunpack.c.0.s8 %v1769
    %v1771 = vlaneseq
    %v1772 = vshrl.u32 %v1771, 7
    %v1773 = vsub.s32 %v1770, %v1772
    %v1774 = vrot.slane %v1767, %v1773
    %v1775 = vcombine.low %v1758, %v1766
    %v1777 = vunpack.c.l.s4 1934713408
    %v1778 = vunpack.c.0.s8 %v1777
    %v1779 = vlaneseq
    %v1780 = vshrl.u32 %v1779, 7
    %v1781 = vsub.s32 %v1778, %v1780
    %v1782 = vrot.slane %v1775, %v1781
    %v1783 = vcombine.low %v1774, %v1782
    %v1784 = vcombine.high %v1774, %v1782
    %v1785 = vcombine.low %v1622, %v1626
    %v1787 = vunpack.c.l.s4 1983009808
    %v1788 = vunpack.c.0.s8 %v1787
    %v1789 = vlaneseq
    %v1790 = vshrl.u32 %v1789, 7
    %v1791 = vsub.s32 %v1788, %v1790
    %v1792 = vrot.slane %v1785, %v1791
    %v1793 = vcombine.low %v1624, %v1628
    %v1795 = vunpack.c.l.s4 1983009808
    %v1796 = vunpack.c.0.s8 %v1795
    %v1797 = vlaneseq
    %v1798 = vshrl.u32 %v1797, 7
    %v1799 = vsub.s32 %v1796, %v1798
    %v1800 = vrot.slane %v1793, %v1799
    %v1801 = vcombine.low %v1630, %v1634
    %v1803 = vunpack.c.l.s4 1983009808
    %v1804 = vunpack.c.0.s8 %v1803
    %v1805 = vlaneseq
    %v1806 = vshrl.u32 %v1805, 7
    %v1807 = vsub.s32 %v1804, %v1806
    %v1808 = vrot.slane %v1801, %v1807
    %v1809 = vcombine.low %v1632, %v1636
    %v1811 = vunpack.c.l.s4 1983009808
    %v1812 = vunpack.c.0.s8 %v1811
    %v1813 = vlaneseq
    %v1814 = vshrl.u32 %v1813, 7
    %v1815 = vsub.s32 %v1812, %v1814
    %v1816 = vrot.slane %v1809, %v1815
    %v1817 = vcombine.low %v1792, %v1800
    %v1819 = vunpack.c.l.s4 1934713408
    %v1820 = vunpack.c.0.s8 %v1819
    %v1821 = vlaneseq
    %v1822 = vshrl.u32 %v1821, 7
    %v1823 = vsub.s32 %v1820, %v1822
    %v1824 = vrot.slane %v1817, %v1823
    %v1825 = vcombine.low %v1808, %v1816
    %v1827 = vunpack.c.l.s4 1934713408
    %v1828 = vunpack.c.0.s8 %v1827
    %v1829 = vlaneseq
    %v1830 = vshrl.u32 %v1829, 7
    %v1831 = vsub.s32 %v1828, %v1830
    %v1832 = vrot.slane %v1825, %v1831
    %v1833 = vcombine.low %v1824, %v1832
    %v1834 = vcombine.high %v1824, %v1832
    %v1835 = vcombine.low %v1638, %v1642
    %v1837 = vunpack.c.l.s4 1983009808
    %v1838 = vunpack.c.0.s8 %v1837
    %v1839 = vlaneseq
    %v1840 = vshrl.u32 %v1839, 7
    %v1841 = vsub.s32 %v1838, %v1840
    %v1842 = vrot.slane %v1835, %v1841
    %v1843 = vcombine.low %v1640, %v1644
    %v1845 = vunpack.c.l.s4 1983009808
    %v1846 = vunpack.c.0.s8 %v1845
    %v1847 = vlaneseq
    %v1848 = vshrl.u32 %v1847, 7
    %v1849 = vsub.s32 %v1846, %v1848
    %v1850 = vrot.slane %v1843, %v1849
    %v1851 = vcombine.low %v1646, %v1650
    %v1853 = vunpack.c.l.s4 1983009808
    %v1854 = vunpack.c.0.s8 %v1853
    %v1855 = vlaneseq
    %v1856 = vshrl.u32 %v1855, 7
    %v1857 = vsub.s32 %v1854, %v1856
    %v1858 = vrot.slane %v1851, %v1857
    %v1859 = vcombine.low %v1648, %v1652
    %v1861 = vunpack.c.l.s4 1983009808
    %v1862 = vunpack.c.0.s8 %v1861
    %v1863 = vlaneseq
    %v1864 = vshrl.u32 %v1863, 7
    %v1865 = vsub.s32 %v1862, %v1864
    %v1866 = vrot.slane %v1859, %v1865
    %v1867 = vcombine.low %v1842, %v1850
    %v1869 = vunpack.c.l.s4 1934713408
    %v1870 = vunpack.c.0.s8 %v1869
    %v1871 = vlaneseq
    %v1872 = vshrl.u32 %v1871, 7
    %v1873 = vsub.s32 %v1870, %v1872
    %v1874 = vrot.slane %v1867, %v1873
    %v1875 = vcombine.low %v1858, %v1866
    %v1877 = vunpack.c.l.s4 1934713408
    %v1878 = vunpack.c.0.s8 %v1877
    %v1879 = vlaneseq
    %v1880 = vshrl.u32 %v1879, 7
    %v1881 = vsub.s32 %v1878, %v1880
    %v1882 = vrot.slane %v1875, %v1881
    %v1883 = vcombine.low %v1874, %v1882
    %v1884 = vcombine.high %v1874, %v1882
    %v1885 = vsel %vm433, %v1733, 0.0
    %1886 = vadd.xlane.f32.xlu0 %v1885
    %v1887 = vpop.xlane.xlu0 %1886
    %v1888 = vsel %vm433, %v1783, 0.0
    %1889 = vadd.xlane.f32.xlu0 %v1888
    %v1890 = vpop.xlane.xlu0 %1889
    %v1891 = vsel %vm433, %v1833, 0.0
    %1892 = vadd.xlane.f32.xlu0 %v1891
    %v1893 = vpop.xlane.xlu0 %1892
    %v1894 = vsel %vm433, %v1883, 0.0
    %1895 = vadd.xlane.f32.xlu0 %v1894
    %v1896 = vpop.xlane.xlu0 %1895
    %v1897 = vsel %vm433, %v1734, 0.0
    %1898 = vadd.xlane.f32.xlu0 %v1897
    %v1899 = vpop.xlane.xlu0 %1898
    %v1900 = vsel %vm433, %v1784, 0.0
    %1901 = vadd.xlane.f32.xlu0 %v1900
    %v1902 = vpop.xlane.xlu0 %1901
    %v1903 = vsel %vm433, %v1834, 0.0
    %1904 = vadd.xlane.f32.xlu0 %v1903
    %v1905 = vpop.xlane.xlu0 %1904
    %v1906 = vsel %vm433, %v1884, 0.0
    %1907 = vadd.xlane.f32.xlu0 %v1906
    %v1908 = vpop.xlane.xlu0 %1907
    %v1909 = vmul.f32 %v1887, 0.0625
    %v1910 = vmul.f32 %v1890, 0.0625
    %v1911 = vmul.f32 %v1893, 0.0625
    %v1912 = vmul.f32 %v1896, 0.0625
    %v1913 = vmul.f32 %v1899, 0.0625
    %v1914 = vmul.f32 %v1902, 0.0625
    %v1915 = vmul.f32 %v1905, 0.0625
    %v1916 = vmul.f32 %v1908, 0.0625
    %v1917 = vmul.f32 %v1455, %v1455
    %v1918 = vmul.f32 %v1456, %v1456
    %v1919 = vmul.f32 %v1457, %v1457
    %v1920 = vmul.f32 %v1458, %v1458
    %v1921 = vmul.f32 %v1459, %v1459
    %v1922 = vmul.f32 %v1460, %v1460
    %v1923 = vmul.f32 %v1461, %v1461
    %v1924 = vmul.f32 %v1462, %v1462
    %v1925 = vsub.f32 %v1909, %v1917
    %v1926 = vsub.f32 %v1910, %v1918
    %v1927 = vsub.f32 %v1911, %v1919
    %v1928 = vsub.f32 %v1912, %v1920
    %v1929 = vsub.f32 %v1913, %v1921
    %v1930 = vsub.f32 %v1914, %v1922
    %v1931 = vsub.f32 %v1915, %v1923
    %v1932 = vsub.f32 %v1916, %v1924
    %v1933 = vadd.f32 %v1925, 1e-05
    %v1934 = vadd.f32 %v1926, 1e-05
    %v1935 = vadd.f32 %v1927, 1e-05
    %v1936 = vadd.f32 %v1928, 1e-05
    %v1937 = vadd.f32 %v1929, 1e-05
    %v1938 = vadd.f32 %v1930, 1e-05
    %v1939 = vadd.f32 %v1931, 1e-05
    %v1940 = vadd.f32 %v1932, 1e-05
    %v1941 = vrsqrt.pop %v1933
    %v1942 = vrsqrt.pop %v1934
    %v1943 = vrsqrt.pop %v1935
    %v1944 = vrsqrt.pop %v1936
    %v1945 = vrsqrt.pop %v1937
    %v1946 = vrsqrt.pop %v1938
    %v1947 = vrsqrt.pop %v1939
    %v1948 = vrsqrt.pop %v1940
    %v1949 = vcombine.high %v1455, 0.0
    %v1951 = vunpack.c.l.s4 1983009808
    %v1952 = vunpack.c.0.s8 %v1951
    %v1953 = vlaneseq
    %v1954 = vshrl.u32 %v1953, 7
    %v1955 = vsub.s32 %v1952, %v1954
    %v1956 = vrot.slane %v1455, %v1955
    %v1958 = vunpack.c.l.s4 1983009808
    %v1959 = vunpack.c.0.s8 %v1958
    %v1960 = vlaneseq
    %v1961 = vshrl.u32 %v1960, 7
    %v1962 = vsub.s32 %v1959, %v1961
    %v1963 = vrot.slane %v1949, %v1962
    %v1964 = vcombine.high %v1459, 0.0
    %v1966 = vunpack.c.l.s4 1983009808
    %v1967 = vunpack.c.0.s8 %v1966
    %v1968 = vlaneseq
    %v1969 = vshrl.u32 %v1968, 7
    %v1970 = vsub.s32 %v1967, %v1969
    %v1971 = vrot.slane %v1459, %v1970
    %v1973 = vunpack.c.l.s4 1983009808
    %v1974 = vunpack.c.0.s8 %v1973
    %v1975 = vlaneseq
    %v1976 = vshrl.u32 %v1975, 7
    %v1977 = vsub.s32 %v1974, %v1976
    %v1978 = vrot.slane %v1964, %v1977
    %v1979 = vcombine.low %v1956, %v1971
    %v1980 = vcombine.high %v1956, %v1971
    %v1982 = vunpack.c.l.s4 1934713408
    %v1983 = vunpack.c.0.s8 %v1982
    %v1984 = vlaneseq
    %v1985 = vshrl.u32 %v1984, 7
    %v1986 = vsub.s32 %v1983, %v1985
    %v1987 = vrot.slane %v1979, %v1986
    %v1989 = vunpack.c.l.s4 1934713408
    %v1990 = vunpack.c.0.s8 %v1989
    %v1991 = vlaneseq
    %v1992 = vshrl.u32 %v1991, 7
    %v1993 = vsub.s32 %v1990, %v1992
    %v1994 = vrot.slane %v1980, %v1993
    %v1995 = vcombine.low %v1963, %v1978
    %v1996 = vcombine.high %v1963, %v1978
    %v1998 = vunpack.c.l.s4 1934713408
    %v1999 = vunpack.c.0.s8 %v1998
    %v2000 = vlaneseq
    %v2001 = vshrl.u32 %v2000, 7
    %v2002 = vsub.s32 %v1999, %v2001
    %v2003 = vrot.slane %v1995, %v2002
    %v2005 = vunpack.c.l.s4 1934713408
    %v2006 = vunpack.c.0.s8 %v2005
    %v2007 = vlaneseq
    %v2008 = vshrl.u32 %v2007, 7
    %v2009 = vsub.s32 %v2006, %v2008
    %v2010 = vrot.slane %v1996, %v2009
    %v2011 = vcombine.high %v1987, 0.0
    %v2012 = vcombine.high %v1994, 0.0
    %v2013 = vcombine.high %v2003, 0.0
    %v2014 = vcombine.high %v2010, 0.0
    %v2015 = vcombine.high %v1456, 0.0
    %v2017 = vunpack.c.l.s4 1983009808
    %v2018 = vunpack.c.0.s8 %v2017
    %v2019 = vlaneseq
    %v2020 = vshrl.u32 %v2019, 7
    %v2021 = vsub.s32 %v2018, %v2020
    %v2022 = vrot.slane %v1456, %v2021
    %v2024 = vunpack.c.l.s4 1983009808
    %v2025 = vunpack.c.0.s8 %v2024
    %v2026 = vlaneseq
    %v2027 = vshrl.u32 %v2026, 7
    %v2028 = vsub.s32 %v2025, %v2027
    %v2029 = vrot.slane %v2015, %v2028
    %v2030 = vcombine.high %v1460, 0.0
    %v2032 = vunpack.c.l.s4 1983009808
    %v2033 = vunpack.c.0.s8 %v2032
    %v2034 = vlaneseq
    %v2035 = vshrl.u32 %v2034, 7
    %v2036 = vsub.s32 %v2033, %v2035
    %v2037 = vrot.slane %v1460, %v2036
    %v2039 = vunpack.c.l.s4 1983009808
    %v2040 = vunpack.c.0.s8 %v2039
    %v2041 = vlaneseq
    %v2042 = vshrl.u32 %v2041, 7
    %v2043 = vsub.s32 %v2040, %v2042
    %v2044 = vrot.slane %v2030, %v2043
    %v2045 = vcombine.low %v2022, %v2037
    %v2046 = vcombine.high %v2022, %v2037
    %v2048 = vunpack.c.l.s4 1934713408
    %v2049 = vunpack.c.0.s8 %v2048
    %v2050 = vlaneseq
    %v2051 = vshrl.u32 %v2050, 7
    %v2052 = vsub.s32 %v2049, %v2051
    %v2053 = vrot.slane %v2045, %v2052
    %v2055 = vunpack.c.l.s4 1934713408
    %v2056 = vunpack.c.0.s8 %v2055
    %v2057 = vlaneseq
    %v2058 = vshrl.u32 %v2057, 7
    %v2059 = vsub.s32 %v2056, %v2058
    %v2060 = vrot.slane %v2046, %v2059
    %v2061 = vcombine.low %v2029, %v2044
    %v2062 = vcombine.high %v2029, %v2044
    %v2064 = vunpack.c.l.s4 1934713408
    %v2065 = vunpack.c.0.s8 %v2064
    %v2066 = vlaneseq
    %v2067 = vshrl.u32 %v2066, 7
    %v2068 = vsub.s32 %v2065, %v2067
    %v2069 = vrot.slane %v2061, %v2068
    %v2071 = vunpack.c.l.s4 1934713408
    %v2072 = vunpack.c.0.s8 %v2071
    %v2073 = vlaneseq
    %v2074 = vshrl.u32 %v2073, 7
    %v2075 = vsub.s32 %v2072, %v2074
    %v2076 = vrot.slane %v2062, %v2075
    %v2077 = vcombine.high %v2053, 0.0
    %v2078 = vcombine.high %v2060, 0.0
    %v2079 = vcombine.high %v2069, 0.0
    %v2080 = vcombine.high %v2076, 0.0
    %v2081 = vcombine.high %v1457, 0.0
    %v2083 = vunpack.c.l.s4 1983009808
    %v2084 = vunpack.c.0.s8 %v2083
    %v2085 = vlaneseq
    %v2086 = vshrl.u32 %v2085, 7
    %v2087 = vsub.s32 %v2084, %v2086
    %v2088 = vrot.slane %v1457, %v2087
    %v2090 = vunpack.c.l.s4 1983009808
    %v2091 = vunpack.c.0.s8 %v2090
    %v2092 = vlaneseq
    %v2093 = vshrl.u32 %v2092, 7
    %v2094 = vsub.s32 %v2091, %v2093
    %v2095 = vrot.slane %v2081, %v2094
    %v2096 = vcombine.high %v1461, 0.0
    %v2098 = vunpack.c.l.s4 1983009808
    %v2099 = vunpack.c.0.s8 %v2098
    %v2100 = vlaneseq
    %v2101 = vshrl.u32 %v2100, 7
    %v2102 = vsub.s32 %v2099, %v2101
    %v2103 = vrot.slane %v1461, %v2102
    %v2105 = vunpack.c.l.s4 1983009808
    %v2106 = vunpack.c.0.s8 %v2105
    %v2107 = vlaneseq
    %v2108 = vshrl.u32 %v2107, 7
    %v2109 = vsub.s32 %v2106, %v2108
    %v2110 = vrot.slane %v2096, %v2109
    %v2111 = vcombine.low %v2088, %v2103
    %v2112 = vcombine.high %v2088, %v2103
    %v2114 = vunpack.c.l.s4 1934713408
    %v2115 = vunpack.c.0.s8 %v2114
    %v2116 = vlaneseq
    %v2117 = vshrl.u32 %v2116, 7
    %v2118 = vsub.s32 %v2115, %v2117
    %v2119 = vrot.slane %v2111, %v2118
    %v2121 = vunpack.c.l.s4 1934713408
    %v2122 = vunpack.c.0.s8 %v2121
    %v2123 = vlaneseq
    %v2124 = vshrl.u32 %v2123, 7
    %v2125 = vsub.s32 %v2122, %v2124
    %v2126 = vrot.slane %v2112, %v2125
    %v2127 = vcombine.low %v2095, %v2110
    %v2128 = vcombine.high %v2095, %v2110
    %v2130 = vunpack.c.l.s4 1934713408
    %v2131 = vunpack.c.0.s8 %v2130
    %v2132 = vlaneseq
    %v2133 = vshrl.u32 %v2132, 7
    %v2134 = vsub.s32 %v2131, %v2133
    %v2135 = vrot.slane %v2127, %v2134
    %v2137 = vunpack.c.l.s4 1934713408
    %v2138 = vunpack.c.0.s8 %v2137
    %v2139 = vlaneseq
    %v2140 = vshrl.u32 %v2139, 7
    %v2141 = vsub.s32 %v2138, %v2140
    %v2142 = vrot.slane %v2128, %v2141
    %v2143 = vcombine.high %v2119, 0.0
    %v2144 = vcombine.high %v2126, 0.0
    %v2145 = vcombine.high %v2135, 0.0
    %v2146 = vcombine.high %v2142, 0.0
    %v2147 = vcombine.high %v1458, 0.0
    %v2149 = vunpack.c.l.s4 1983009808
    %v2150 = vunpack.c.0.s8 %v2149
    %v2151 = vlaneseq
    %v2152 = vshrl.u32 %v2151, 7
    %v2153 = vsub.s32 %v2150, %v2152
    %v2154 = vrot.slane %v1458, %v2153
    %v2156 = vunpack.c.l.s4 1983009808
    %v2157 = vunpack.c.0.s8 %v2156
    %v2158 = vlaneseq
    %v2159 = vshrl.u32 %v2158, 7
    %v2160 = vsub.s32 %v2157, %v2159
    %v2161 = vrot.slane %v2147, %v2160
    %v2162 = vcombine.high %v1462, 0.0
    %v2164 = vunpack.c.l.s4 1983009808
    %v2165 = vunpack.c.0.s8 %v2164
    %v2166 = vlaneseq
    %v2167 = vshrl.u32 %v2166, 7
    %v2168 = vsub.s32 %v2165, %v2167
    %v2169 = vrot.slane %v1462, %v2168
    %v2171 = vunpack.c.l.s4 1983009808
    %v2172 = vunpack.c.0.s8 %v2171
    %v2173 = vlaneseq
    %v2174 = vshrl.u32 %v2173, 7
    %v2175 = vsub.s32 %v2172, %v2174
    %v2176 = vrot.slane %v2162, %v2175
    %v2177 = vcombine.low %v2154, %v2169
    %v2178 = vcombine.high %v2154, %v2169
    %v2180 = vunpack.c.l.s4 1934713408
    %v2181 = vunpack.c.0.s8 %v2180
    %v2182 = vlaneseq
    %v2183 = vshrl.u32 %v2182, 7
    %v2184 = vsub.s32 %v2181, %v2183
    %v2185 = vrot.slane %v2177, %v2184
    %v2187 = vunpack.c.l.s4 1934713408
    %v2188 = vunpack.c.0.s8 %v2187
    %v2189 = vlaneseq
    %v2190 = vshrl.u32 %v2189, 7
    %v2191 = vsub.s32 %v2188, %v2190
    %v2192 = vrot.slane %v2178, %v2191
    %v2193 = vcombine.low %v2161, %v2176
    %v2194 = vcombine.high %v2161, %v2176
    %v2196 = vunpack.c.l.s4 1934713408
    %v2197 = vunpack.c.0.s8 %v2196
    %v2198 = vlaneseq
    %v2199 = vshrl.u32 %v2198, 7
    %v2200 = vsub.s32 %v2197, %v2199
    %v2201 = vrot.slane %v2193, %v2200
    %v2203 = vunpack.c.l.s4 1934713408
    %v2204 = vunpack.c.0.s8 %v2203
    %v2205 = vlaneseq
    %v2206 = vshrl.u32 %v2205, 7
    %v2207 = vsub.s32 %v2204, %v2206
    %v2208 = vrot.slane %v2194, %v2207
    %v2209 = vcombine.high %v2185, 0.0
    %v2210 = vcombine.high %v2192, 0.0
    %v2211 = vcombine.high %v2201, 0.0
    %v2212 = vcombine.high %v2208, 0.0
    %2214 = vrot.lane.b32.xlu0 %v2011, 2
    %v2215 = vpop.permute.xlu0 %2214
    %2218 = vrot.lane.b32.xlu0 %v1994, 4
    %v2219 = vpop.permute.xlu0 %2218
    %2222 = vrot.lane.b32.xlu0 %v2012, 6
    %v2223 = vpop.permute.xlu0 %2222
    %2226 = vrot.lane.b32.xlu0 %v2003, 8
    %v2227 = vpop.permute.xlu0 %2226
    %2230 = vrot.lane.b32.xlu0 %v2013, 10
    %v2231 = vpop.permute.xlu0 %2230
    %2234 = vrot.lane.b32.xlu0 %v2010, 12
    %v2235 = vpop.permute.xlu0 %2234
    %2238 = vrot.lane.b32.xlu0 %v2014, 14
    %v2239 = vpop.permute.xlu0 %2238
    %2242 = vrot.lane.b32.xlu0 %v2053, 16
    %v2243 = vpop.permute.xlu0 %2242
    %2246 = vrot.lane.b32.xlu0 %v2077, 18
    %v2247 = vpop.permute.xlu0 %2246
    %2250 = vrot.lane.b32.xlu0 %v2060, 20
    %v2251 = vpop.permute.xlu0 %2250
    %2254 = vrot.lane.b32.xlu0 %v2078, 22
    %v2255 = vpop.permute.xlu0 %2254
    %2258 = vrot.lane.b32.xlu0 %v2069, 24
    %v2259 = vpop.permute.xlu0 %2258
    %2262 = vrot.lane.b32.xlu0 %v2079, 26
    %v2263 = vpop.permute.xlu0 %2262
    %2266 = vrot.lane.b32.xlu0 %v2076, 28
    %v2267 = vpop.permute.xlu0 %2266
    %2270 = vrot.lane.b32.xlu0 %v2080, 30
    %v2271 = vpop.permute.xlu0 %2270
    %2274 = vrot.lane.b32.xlu0 %v2119, 32
    %v2275 = vpop.permute.xlu0 %2274
    %2278 = vrot.lane.b32.xlu0 %v2143, 34
    %v2279 = vpop.permute.xlu0 %2278
    %2282 = vrot.lane.b32.xlu0 %v2126, 36
    %v2283 = vpop.permute.xlu0 %2282
    %2286 = vrot.lane.b32.xlu0 %v2144, 38
    %v2287 = vpop.permute.xlu0 %2286
    %2290 = vrot.lane.b32.xlu0 %v2135, 40
    %v2291 = vpop.permute.xlu0 %2290
    %2294 = vrot.lane.b32.xlu0 %v2145, 42
    %v2295 = vpop.permute.xlu0 %2294
    %2298 = vrot.lane.b32.xlu0 %v2142, 44
    %v2299 = vpop.permute.xlu0 %2298
    %2302 = vrot.lane.b32.xlu0 %v2146, 46
    %v2303 = vpop.permute.xlu0 %2302
    %2306 = vrot.lane.b32.xlu0 %v2185, 48
    %v2307 = vpop.permute.xlu0 %2306
    %2310 = vrot.lane.b32.xlu0 %v2209, 50
    %v2311 = vpop.permute.xlu0 %2310
    %2314 = vrot.lane.b32.xlu0 %v2192, 52
    %v2315 = vpop.permute.xlu0 %2314
    %2318 = vrot.lane.b32.xlu0 %v2210, 54
    %v2319 = vpop.permute.xlu0 %2318
    %2322 = vrot.lane.b32.xlu0 %v2201, 56
    %v2323 = vpop.permute.xlu0 %2322
    %2326 = vrot.lane.b32.xlu0 %v2211, 58
    %v2327 = vpop.permute.xlu0 %2326
    %2330 = vrot.lane.b32.xlu0 %v2208, 60
    %v2331 = vpop.permute.xlu0 %2330
    %2334 = vrot.lane.b32.xlu0 %v2212, 62
    %v2335 = vpop.permute.xlu0 %2334
    %v2337 = vsel %vm433, %v1987, %v2215
    %vm2338 = vcmask 31744
    %v2339 = vsel %vm2338, %v2337, %v2219
    %vm2340 = vcmask 48128
    %v2341 = vsel %vm2340, %v2339, %v2223
    %v2342 = vsel %vm724, %v2341, %v2227
    %vm2343 = vcmask 80896
    %v2344 = vsel %vm2343, %v2342, %v2231
    %vm2345 = vcmask 97280
    %v2346 = vsel %vm2345, %v2344, %v2235
    %vm2347 = vcmask 113664
    %v2348 = vsel %vm2347, %v2346, %v2239
    %v2349 = vsel %vm726, %v2348, %v2243
    %vm2350 = vcmask 146432
    %v2351 = vsel %vm2350, %v2349, %v2247
    %vm2352 = vcmask 162816
    %v2353 = vsel %vm2352, %v2351, %v2251
    %vm2354 = vcmask 179200
    %v2355 = vsel %vm2354, %v2353, %v2255
    %v2356 = vsel %vm728, %v2355, %v2259
    %vm2357 = vcmask 211968
    %v2358 = vsel %vm2357, %v2356, %v2263
    %vm2359 = vcmask 228352
    %v2360 = vsel %vm2359, %v2358, %v2267
    %vm2361 = vcmask 244736
    %v2362 = vsel %vm2361, %v2360, %v2271
    %v2363 = vsel %vm523, %v2362, %v2275
    %vm2364 = vcmask 277504
    %v2365 = vsel %vm2364, %v2363, %v2279
    %vm2366 = vcmask 293888
    %v2367 = vsel %vm2366, %v2365, %v2283
    %vm2368 = vcmask 310272
    %v2369 = vsel %vm2368, %v2367, %v2287
    %vm2370 = vcmask 326656
    %v2371 = vsel %vm2370, %v2369, %v2291
    %vm2372 = vcmask 343040
    %v2373 = vsel %vm2372, %v2371, %v2295
    %vm2374 = vcmask 359424
    %v2375 = vsel %vm2374, %v2373, %v2299
    %vm2376 = vcmask 375808
    %v2377 = vsel %vm2376, %v2375, %v2303
    %vm2378 = vcmask 392192
    %v2379 = vsel %vm2378, %v2377, %v2307
    %vm2380 = vcmask 408576
    %v2381 = vsel %vm2380, %v2379, %v2311
    %vm2382 = vcmask 424960
    %v2383 = vsel %vm2382, %v2381, %v2315
    %vm2384 = vcmask 441344
    %v2385 = vsel %vm2384, %v2383, %v2319
    %vm2386 = vcmask 457728
    %v2387 = vsel %vm2386, %v2385, %v2323
    %vm2388 = vcmask 474112
    %v2389 = vsel %vm2388, %v2387, %v2327
    %vm2390 = vcmask 490496
    %v2391 = vsel %vm2390, %v2389, %v2331
    %vm2392 = vcmask 506880
    %v2393 = vsel %vm2392, %v2391, %v2335
    %v2394 = vcombine.high %v1941, 0.0
    %v2396 = vunpack.c.l.s4 1983009808
    %v2397 = vunpack.c.0.s8 %v2396
    %v2398 = vlaneseq
    %v2399 = vshrl.u32 %v2398, 7
    %v2400 = vsub.s32 %v2397, %v2399
    %v2401 = vrot.slane %v1941, %v2400
    %v2403 = vunpack.c.l.s4 1983009808
    %v2404 = vunpack.c.0.s8 %v2403
    %v2405 = vlaneseq
    %v2406 = vshrl.u32 %v2405, 7
    %v2407 = vsub.s32 %v2404, %v2406
    %v2408 = vrot.slane %v2394, %v2407
    %v2409 = vcombine.high %v1945, 0.0
    %v2411 = vunpack.c.l.s4 1983009808
    %v2412 = vunpack.c.0.s8 %v2411
    %v2413 = vlaneseq
    %v2414 = vshrl.u32 %v2413, 7
    %v2415 = vsub.s32 %v2412, %v2414
    %v2416 = vrot.slane %v1945, %v2415
    %v2418 = vunpack.c.l.s4 1983009808
    %v2419 = vunpack.c.0.s8 %v2418
    %v2420 = vlaneseq
    %v2421 = vshrl.u32 %v2420, 7
    %v2422 = vsub.s32 %v2419, %v2421
    %v2423 = vrot.slane %v2409, %v2422
    %v2424 = vcombine.low %v2401, %v2416
    %v2425 = vcombine.high %v2401, %v2416
    %v2427 = vunpack.c.l.s4 1934713408
    %v2428 = vunpack.c.0.s8 %v2427
    %v2429 = vlaneseq
    %v2430 = vshrl.u32 %v2429, 7
    %v2431 = vsub.s32 %v2428, %v2430
    %v2432 = vrot.slane %v2424, %v2431
    %v2434 = vunpack.c.l.s4 1934713408
    %v2435 = vunpack.c.0.s8 %v2434
    %v2436 = vlaneseq
    %v2437 = vshrl.u32 %v2436, 7
    %v2438 = vsub.s32 %v2435, %v2437
    %v2439 = vrot.slane %v2425, %v2438
    %v2440 = vcombine.low %v2408, %v2423
    %v2441 = vcombine.high %v2408, %v2423
    %v2443 = vunpack.c.l.s4 1934713408
    %v2444 = vunpack.c.0.s8 %v2443
    %v2445 = vlaneseq
    %v2446 = vshrl.u32 %v2445, 7
    %v2447 = vsub.s32 %v2444, %v2446
    %v2448 = vrot.slane %v2440, %v2447
    %v2450 = vunpack.c.l.s4 1934713408
    %v2451 = vunpack.c.0.s8 %v2450
    %v2452 = vlaneseq
    %v2453 = vshrl.u32 %v2452, 7
    %v2454 = vsub.s32 %v2451, %v2453
    %v2455 = vrot.slane %v2441, %v2454
    %v2456 = vcombine.high %v2432, 0.0
    %v2457 = vcombine.high %v2439, 0.0
    %v2458 = vcombine.high %v2448, 0.0
    %v2459 = vcombine.high %v2455, 0.0
    %v2460 = vcombine.high %v1942, 0.0
    %v2462 = vunpack.c.l.s4 1983009808
    %v2463 = vunpack.c.0.s8 %v2462
    %v2464 = vlaneseq
    %v2465 = vshrl.u32 %v2464, 7
    %v2466 = vsub.s32 %v2463, %v2465
    %v2467 = vrot.slane %v1942, %v2466
    %v2469 = vunpack.c.l.s4 1983009808
    %v2470 = vunpack.c.0.s8 %v2469
    %v2471 = vlaneseq
    %v2472 = vshrl.u32 %v2471, 7
    %v2473 = vsub.s32 %v2470, %v2472
    %v2474 = vrot.slane %v2460, %v2473
    %v2475 = vcombine.high %v1946, 0.0
    %v2477 = vunpack.c.l.s4 1983009808
    %v2478 = vunpack.c.0.s8 %v2477
    %v2479 = vlaneseq
    %v2480 = vshrl.u32 %v2479, 7
    %v2481 = vsub.s32 %v2478, %v2480
    %v2482 = vrot.slane %v1946, %v2481
    %v2484 = vunpack.c.l.s4 1983009808
    %v2485 = vunpack.c.0.s8 %v2484
    %v2486 = vlaneseq
    %v2487 = vshrl.u32 %v2486, 7
    %v2488 = vsub.s32 %v2485, %v2487
    %v2489 = vrot.slane %v2475, %v2488
    %v2490 = vcombine.low %v2467, %v2482
    %v2491 = vcombine.high %v2467, %v2482
    %v2493 = vunpack.c.l.s4 1934713408
    %v2494 = vunpack.c.0.s8 %v2493
    %v2495 = vlaneseq
    %v2496 = vshrl.u32 %v2495, 7
    %v2497 = vsub.s32 %v2494, %v2496
    %v2498 = vrot.slane %v2490, %v2497
    %v2500 = vunpack.c.l.s4 1934713408
    %v2501 = vunpack.c.0.s8 %v2500
    %v2502 = vlaneseq
    %v2503 = vshrl.u32 %v2502, 7
    %v2504 = vsub.s32 %v2501, %v2503
    %v2505 = vrot.slane %v2491, %v2504
    %v2506 = vcombine.low %v2474, %v2489
    %v2507 = vcombine.high %v2474, %v2489
    %v2509 = vunpack.c.l.s4 1934713408
    %v2510 = vunpack.c.0.s8 %v2509
    %v2511 = vlaneseq
    %v2512 = vshrl.u32 %v2511, 7
    %v2513 = vsub.s32 %v2510, %v2512
    %v2514 = vrot.slane %v2506, %v2513
    %v2516 = vunpack.c.l.s4 1934713408
    %v2517 = vunpack.c.0.s8 %v2516
    %v2518 = vlaneseq
    %v2519 = vshrl.u32 %v2518, 7
    %v2520 = vsub.s32 %v2517, %v2519
    %v2521 = vrot.slane %v2507, %v2520
    %v2522 = vcombine.high %v2498, 0.0
    %v2523 = vcombine.high %v2505, 0.0
    %v2524 = vcombine.high %v2514, 0.0
    %v2525 = vcombine.high %v2521, 0.0
    %v2526 = vcombine.high %v1943, 0.0
    %v2528 = vunpack.c.l.s4 1983009808
    %v2529 = vunpack.c.0.s8 %v2528
    %v2530 = vlaneseq
    %v2531 = vshrl.u32 %v2530, 7
    %v2532 = vsub.s32 %v2529, %v2531
    %v2533 = vrot.slane %v1943, %v2532
    %v2535 = vunpack.c.l.s4 1983009808
    %v2536 = vunpack.c.0.s8 %v2535
    %v2537 = vlaneseq
    %v2538 = vshrl.u32 %v2537, 7
    %v2539 = vsub.s32 %v2536, %v2538
    %v2540 = vrot.slane %v2526, %v2539
    %v2541 = vcombine.high %v1947, 0.0
    %v2543 = vunpack.c.l.s4 1983009808
    %v2544 = vunpack.c.0.s8 %v2543
    %v2545 = vlaneseq
    %v2546 = vshrl.u32 %v2545, 7
    %v2547 = vsub.s32 %v2544, %v2546
    %v2548 = vrot.slane %v1947, %v2547
    %v2550 = vunpack.c.l.s4 1983009808
    %v2551 = vunpack.c.0.s8 %v2550
    %v2552 = vlaneseq
    %v2553 = vshrl.u32 %v2552, 7
    %v2554 = vsub.s32 %v2551, %v2553
    %v2555 = vrot.slane %v2541, %v2554
    %v2556 = vcombine.low %v2533, %v2548
    %v2557 = vcombine.high %v2533, %v2548
    %v2559 = vunpack.c.l.s4 1934713408
    %v2560 = vunpack.c.0.s8 %v2559
    %v2561 = vlaneseq
    %v2562 = vshrl.u32 %v2561, 7
    %v2563 = vsub.s32 %v2560, %v2562
    %v2564 = vrot.slane %v2556, %v2563
    %v2566 = vunpack.c.l.s4 1934713408
    %v2567 = vunpack.c.0.s8 %v2566
    %v2568 = vlaneseq
    %v2569 = vshrl.u32 %v2568, 7
    %v2570 = vsub.s32 %v2567, %v2569
    %v2571 = vrot.slane %v2557, %v2570
    %v2572 = vcombine.low %v2540, %v2555
    %v2573 = vcombine.high %v2540, %v2555
    %v2575 = vunpack.c.l.s4 1934713408
    %v2576 = vunpack.c.0.s8 %v2575
    %v2577 = vlaneseq
    %v2578 = vshrl.u32 %v2577, 7
    %v2579 = vsub.s32 %v2576, %v2578
    %v2580 = vrot.slane %v2572, %v2579
    %v2582 = vunpack.c.l.s4 1934713408
    %v2583 = vunpack.c.0.s8 %v2582
    %v2584 = vlaneseq
    %v2585 = vshrl.u32 %v2584, 7
    %v2586 = vsub.s32 %v2583, %v2585
    %v2587 = vrot.slane %v2573, %v2586
    %v2588 = vcombine.high %v2564, 0.0
    %v2589 = vcombine.high %v2571, 0.0
    %v2590 = vcombine.high %v2580, 0.0
    %v2591 = vcombine.high %v2587, 0.0
    %v2592 = vcombine.high %v1944, 0.0
    %v2594 = vunpack.c.l.s4 1983009808
    %v2595 = vunpack.c.0.s8 %v2594
    %v2596 = vlaneseq
    %v2597 = vshrl.u32 %v2596, 7
    %v2598 = vsub.s32 %v2595, %v2597
    %v2599 = vrot.slane %v1944, %v2598
    %v2601 = vunpack.c.l.s4 1983009808
    %v2602 = vunpack.c.0.s8 %v2601
    %v2603 = vlaneseq
    %v2604 = vshrl.u32 %v2603, 7
    %v2605 = vsub.s32 %v2602, %v2604
    %v2606 = vrot.slane %v2592, %v2605
    %v2607 = vcombine.high %v1948, 0.0
    %v2609 = vunpack.c.l.s4 1983009808
    %v2610 = vunpack.c.0.s8 %v2609
    %v2611 = vlaneseq
    %v2612 = vshrl.u32 %v2611, 7
    %v2613 = vsub.s32 %v2610, %v2612
    %v2614 = vrot.slane %v1948, %v2613
    %v2616 = vunpack.c.l.s4 1983009808
    %v2617 = vunpack.c.0.s8 %v2616
    %v2618 = vlaneseq
    %v2619 = vshrl.u32 %v2618, 7
    %v2620 = vsub.s32 %v2617, %v2619
    %v2621 = vrot.slane %v2607, %v2620
    %v2622 = vcombine.low %v2599, %v2614
    %v2623 = vcombine.high %v2599, %v2614
    %v2625 = vunpack.c.l.s4 1934713408
    %v2626 = vunpack.c.0.s8 %v2625
    %v2627 = vlaneseq
    %v2628 = vshrl.u32 %v2627, 7
    %v2629 = vsub.s32 %v2626, %v2628
    %v2630 = vrot.slane %v2622, %v2629
    %v2632 = vunpack.c.l.s4 1934713408
    %v2633 = vunpack.c.0.s8 %v2632
    %v2634 = vlaneseq
    %v2635 = vshrl.u32 %v2634, 7
    %v2636 = vsub.s32 %v2633, %v2635
    %v2637 = vrot.slane %v2623, %v2636
    %v2638 = vcombine.low %v2606, %v2621
    %v2639 = vcombine.high %v2606, %v2621
    %v2641 = vunpack.c.l.s4 1934713408
    %v2642 = vunpack.c.0.s8 %v2641
    %v2643 = vlaneseq
    %v2644 = vshrl.u32 %v2643, 7
    %v2645 = vsub.s32 %v2642, %v2644
    %v2646 = vrot.slane %v2638, %v2645
    %v2648 = vunpack.c.l.s4 1934713408
    %v2649 = vunpack.c.0.s8 %v2648
    %v2650 = vlaneseq
    %v2651 = vshrl.u32 %v2650, 7
    %v2652 = vsub.s32 %v2649, %v2651
    %v2653 = vrot.slane %v2639, %v2652
    %v2654 = vcombine.high %v2630, 0.0
    %v2655 = vcombine.high %v2637, 0.0
    %v2656 = vcombine.high %v2646, 0.0
    %v2657 = vcombine.high %v2653, 0.0
    %2659 = vrot.lane.b32.xlu0 %v2456, 2
    %v2660 = vpop.permute.xlu0 %2659
    %2663 = vrot.lane.b32.xlu0 %v2439, 4
    %v2664 = vpop.permute.xlu0 %2663
    %2667 = vrot.lane.b32.xlu0 %v2457, 6
    %v2668 = vpop.permute.xlu0 %2667
    %2671 = vrot.lane.b32.xlu0 %v2448, 8
    %v2672 = vpop.permute.xlu0 %2671
    %2675 = vrot.lane.b32.xlu0 %v2458, 10
    %v2676 = vpop.permute.xlu0 %2675
    %2679 = vrot.lane.b32.xlu0 %v2455, 12
    %v2680 = vpop.permute.xlu0 %2679
    %2683 = vrot.lane.b32.xlu0 %v2459, 14
    %v2684 = vpop.permute.xlu0 %2683
    %2687 = vrot.lane.b32.xlu0 %v2498, 16
    %v2688 = vpop.permute.xlu0 %2687
    %2691 = vrot.lane.b32.xlu0 %v2522, 18
    %v2692 = vpop.permute.xlu0 %2691
    %2695 = vrot.lane.b32.xlu0 %v2505, 20
    %v2696 = vpop.permute.xlu0 %2695
    %2699 = vrot.lane.b32.xlu0 %v2523, 22
    %v2700 = vpop.permute.xlu0 %2699
    %2703 = vrot.lane.b32.xlu0 %v2514, 24
    %v2704 = vpop.permute.xlu0 %2703
    %2707 = vrot.lane.b32.xlu0 %v2524, 26
    %v2708 = vpop.permute.xlu0 %2707
    %2711 = vrot.lane.b32.xlu0 %v2521, 28
    %v2712 = vpop.permute.xlu0 %2711
    %2715 = vrot.lane.b32.xlu0 %v2525, 30
    %v2716 = vpop.permute.xlu0 %2715
    %2719 = vrot.lane.b32.xlu0 %v2564, 32
    %v2720 = vpop.permute.xlu0 %2719
    %2723 = vrot.lane.b32.xlu0 %v2588, 34
    %v2724 = vpop.permute.xlu0 %2723
    %2727 = vrot.lane.b32.xlu0 %v2571, 36
    %v2728 = vpop.permute.xlu0 %2727
    %2731 = vrot.lane.b32.xlu0 %v2589, 38
    %v2732 = vpop.permute.xlu0 %2731
    %2735 = vrot.lane.b32.xlu0 %v2580, 40
    %v2736 = vpop.permute.xlu0 %2735
    %2739 = vrot.lane.b32.xlu0 %v2590, 42
    %v2740 = vpop.permute.xlu0 %2739
    %2743 = vrot.lane.b32.xlu0 %v2587, 44
    %v2744 = vpop.permute.xlu0 %2743
    %2747 = vrot.lane.b32.xlu0 %v2591, 46
    %v2748 = vpop.permute.xlu0 %2747
    %2751 = vrot.lane.b32.xlu0 %v2630, 48
    %v2752 = vpop.permute.xlu0 %2751
    %2755 = vrot.lane.b32.xlu0 %v2654, 50
    %v2756 = vpop.permute.xlu0 %2755
    %2759 = vrot.lane.b32.xlu0 %v2637, 52
    %v2760 = vpop.permute.xlu0 %2759
    %2763 = vrot.lane.b32.xlu0 %v2655, 54
    %v2764 = vpop.permute.xlu0 %2763
    %2767 = vrot.lane.b32.xlu0 %v2646, 56
    %v2768 = vpop.permute.xlu0 %2767
    %2771 = vrot.lane.b32.xlu0 %v2656, 58
    %v2772 = vpop.permute.xlu0 %2771
    %2775 = vrot.lane.b32.xlu0 %v2653, 60
    %v2776 = vpop.permute.xlu0 %2775
    %2779 = vrot.lane.b32.xlu0 %v2657, 62
    %v2780 = vpop.permute.xlu0 %2779
    %v2782 = vsel %vm433, %v2432, %v2660
    %v2783 = vsel %vm2338, %v2782, %v2664
    %v2784 = vsel %vm2340, %v2783, %v2668
    %v2785 = vsel %vm724, %v2784, %v2672
    %v2786 = vsel %vm2343, %v2785, %v2676
    %v2787 = vsel %vm2345, %v2786, %v2680
    %v2788 = vsel %vm2347, %v2787, %v2684
    %v2789 = vsel %vm726, %v2788, %v2688
    %v2790 = vsel %vm2350, %v2789, %v2692
    %v2791 = vsel %vm2352, %v2790, %v2696
    %v2792 = vsel %vm2354, %v2791, %v2700
    %v2793 = vsel %vm728, %v2792, %v2704
    %v2794 = vsel %vm2357, %v2793, %v2708
    %v2795 = vsel %vm2359, %v2794, %v2712
    %v2796 = vsel %vm2361, %v2795, %v2716
    %v2797 = vsel %vm523, %v2796, %v2720
    %v2798 = vsel %vm2364, %v2797, %v2724
    %v2799 = vsel %vm2366, %v2798, %v2728
    %v2800 = vsel %vm2368, %v2799, %v2732
    %v2801 = vsel %vm2370, %v2800, %v2736
    %v2802 = vsel %vm2372, %v2801, %v2740
    %v2803 = vsel %vm2374, %v2802, %v2744
    %v2804 = vsel %vm2376, %v2803, %v2748
    %v2805 = vsel %vm2378, %v2804, %v2752
    %v2806 = vsel %vm2380, %v2805, %v2756
    %v2807 = vsel %vm2382, %v2806, %v2760
    %v2808 = vsel %vm2384, %v2807, %v2764
    %v2809 = vsel %vm2386, %v2808, %v2768
    %v2810 = vsel %vm2388, %v2809, %v2772
    %v2811 = vsel %vm2390, %v2810, %v2776
    %v2812 = vsel %vm2392, %v2811, %v2780
    %v2814 = vlaneseq
    %v2815 = vshrl.u32 %v2814, 7
    %v2816 = vsub.s32 0, %v2815
    %v2817 = vrot.slane %v976, %v2816
    %v2819 = vmul.f32 %v2812, %v2817
    %v2820 = vmul.f32 %v2393, %v2819
    %v2822 = vlaneseq
    %v2823 = vshrl.u32 %v2822, 7
    %v2824 = vsub.s32 0, %v2823
    %v2825 = vrot.slane %v977, %v2824
    %v2827 = vsub.f32 %v2825, %v2820
    %v2830 = vunpack.c.l.s4 1966171168
    %v2831 = vunpack.c.0.s8 %v2830
    %v2832 = vlaneseq
    %v2833 = vshrl.u32 %v2832, 7
    %v2834 = vsub.s32 %v2831, %v2833
    %v2835 = vrot.slane %v2819, %v2834
    %v2836 = vcombine.high %v2835, %v2835
    %v2838 = vunpack.c.l.s4 1966171168
    %v2839 = vunpack.c.0.s8 %v2838
    %v2840 = vlaneseq
    %v2841 = vshrl.u32 %v2840, 7
    %v2842 = vsub.s32 %v2839, %v2841
    %v2843 = vrot.slane %v2835, %v2842
    %v2845 = vunpack.c.l.s4 1966171168
    %v2846 = vunpack.c.0.s8 %v2845
    %v2847 = vlaneseq
    %v2848 = vshrl.u32 %v2847, 7
    %v2849 = vsub.s32 %v2846, %v2848
    %v2850 = vrot.slane %v2836, %v2849
    %v2851 = vlaneseq
    %v2852 = vshrl.u32 %v2851, 7
    %v2853 = vsub.s32 0, %v2852
    %v2854 = vrot.slane %v2843, %v2853
    %v2855 = vlaneseq
    %v2856 = vshrl.u32 %v2855, 7
    %v2857 = vsub.s32 0, %v2856
    %v2858 = vrot.slane %v2850, %v2857
    %v2861 = vmul.f32 %v974, %v2854
    %v2862 = vmul.f32 %v975, %v2858
    %v2865 = vunpack.c.l.s4 1966171168
    %v2866 = vunpack.c.0.s8 %v2865
    %v2867 = vlaneseq
    %v2868 = vshrl.u32 %v2867, 7
    %v2869 = vsub.s32 %v2866, %v2868
    %v2870 = vrot.slane %v2827, %v2869
    %v2871 = vcombine.high %v2870, %v2870
    %v2873 = vunpack.c.l.s4 1966171168
    %v2874 = vunpack.c.0.s8 %v2873
    %v2875 = vlaneseq
    %v2876 = vshrl.u32 %v2875, 7
    %v2877 = vsub.s32 %v2874, %v2876
    %v2878 = vrot.slane %v2870, %v2877
    %v2880 = vunpack.c.l.s4 1966171168
    %v2881 = vunpack.c.0.s8 %v2880
    %v2882 = vlaneseq
    %v2883 = vshrl.u32 %v2882, 7
    %v2884 = vsub.s32 %v2881, %v2883
    %v2885 = vrot.slane %v2871, %v2884
    %v2886 = vlaneseq
    %v2887 = vshrl.u32 %v2886, 7
    %v2888 = vsub.s32 0, %v2887
    %v2889 = vrot.slane %v2878, %v2888
    %v2890 = vlaneseq
    %v2891 = vshrl.u32 %v2890, 7
    %v2892 = vsub.s32 0, %v2891
    %v2893 = vrot.slane %v2885, %v2892
    %v2896 = vadd.f32 %v2861, %v2889
    %v2897 = vadd.f32 %v2862, %v2893
    %v2898 = vsub.f32 0.0, %v2896
    %v2899 = vsub.f32 0.0, %v2897
    %v2900 = vmul.f32 %v2898, 1.442695
    %v2901 = vpow.pop %v2900
    %v2902 = vmul.f32 %v2899, 1.442695
    %v2903 = vpow.pop %v2902
    %v2904 = vadd.f32 %v2901, 1.0
    %v2905 = vadd.f32 %v2903, 1.0
    %v2906 = vrcp.pop %v2904
    %v2907 = vrcp.pop %v2905
    %v2908 = vmul.f32 %v2896, %v2906
    %v2909 = vmul.f32 %v2897, %v2907
    %v2910 = vld [vmem:[%s15] sm:$0xff]
    %v2911 = vld [vmem:[%s15 + $0x8] sm:$0xff]
    %v2912 = vld [vmem:[%s15 + $0x10] sm:$0xff]
    %v2913 = vld [vmem:[%s15 + $0x18] sm:$0xff]
    %v2914 = vld [vmem:[%s15 + $0x20] sm:$0xff]
    %v2915 = vld [vmem:[%s15 + $0x28] sm:$0xff]
    %v2916 = vld [vmem:[%s15 + $0x30] sm:$0xff]
    %v2917 = vld [vmem:[%s15 + $0x38] sm:$0xff]
    %v2918 = vld [vmem:[%s16] sm:$0x1]
    %v2920 = vlaneseq
    %v2921 = vshrl.u32 %v2920, 7
    %v2922 = vsub.s32 0, %v2921
    %v2923 = vrot.slane %v2918, %v2922
    %v2926 = vsel %vm978, %v2908, 0
    %v2929 = vsel %vm978, %v2909, 0
    %2931 = vmatprep.subr.mxu0 0.0
    %2932 = vmatpush1.msra.mxu0 0.0
    %2933 = vmatprep.subr.mxu0 0.0
    %2934 = vmatpush1.msra.mxu0 0.0
    %2935 = vmatprep.subr.mxu0 0.0
    %2936 = vmatpush1.msra.mxu0 0.0
    %2937 = vmatprep.subr.mxu0 0.0
    %2938 = vmatpush1.msra.mxu0 0.0
    %2939 = vmatprep.subr.mxu0 0.0
    %2940 = vmatpush1.msra.mxu0 0.0
    %2941 = vmatprep.subr.mxu0 0.0
    %2942 = vmatpush1.msra.mxu0 0.0
    %2943 = vmatprep.subr.mxu0 0.0
    %2944 = vmatpush1.msra.mxu0 0.0
    %2945 = vmatprep.subr.mxu0 0.0
    %2946 = vmatpush1.msra.mxu0 0.0
    %2947 = vmatprep.subr.mxu0 0.0
    %2948 = vmatpush1.msra.mxu0 %v2917
    %2949 = vmatprep.subr.mxu0 0.0
    %2950 = vmatpush1.msra.mxu0 %v2916
    %2951 = vmatprep.subr.mxu0 0.0
    %2952 = vmatpush1.msra.mxu0 %v2915
    %2953 = vmatprep.subr.mxu0 0.0
    %2954 = vmatpush1.msra.mxu0 %v2914
    %2955 = vmatprep.subr.mxu0 0.0
    %2956 = vmatpush1.msra.mxu0 %v2913
    %2957 = vmatprep.subr.mxu0 0.0
    %2958 = vmatpush1.msra.mxu0 %v2912
    %2959 = vmatprep.subr.mxu0 0.0
    %2960 = vmatpush1.msra.mxu0 %v2911
    %2961 = vmatprep.subr.mxu0 0.0
    %2962 = vmatpush1.msra.mxu0 %v2910
    %2963 = vmatprep.subr.mxu0 0.0
    %2964 = vmatpush2.msra.mxu0 0.0
    %2965 = vmatprep.subr.mxu0 0.0
    %2966 = vmatpush2.msra.mxu0 0.0
    %2967 = vmatprep.subr.mxu0 0.0
    %2968 = vmatpush2.msra.mxu0 0.0
    %2969 = vmatprep.subr.mxu0 0.0
    %2970 = vmatpush2.msra.mxu0 0.0
    %2971 = vmatprep.subr.mxu0 0.0
    %2972 = vmatpush2.msra.mxu0 0.0
    %2973 = vmatprep.subr.mxu0 0.0
    %2974 = vmatpush2.msra.mxu0 0.0
    %2975 = vmatprep.subr.mxu0 0.0
    %2976 = vmatpush2.msra.mxu0 0.0
    %2977 = vmatprep.subr.mxu0 0.0
    %2978 = vmatpush2.msra.mxu0 0.0
    %2979 = vmatprep.subr.mxu0 0.0
    %2980 = vmatpush2.msra.mxu0 0.0
    %2981 = vmatprep.subr.mxu0 0.0
    %2982 = vmatpush2.msra.mxu0 0.0
    %2983 = vmatprep.subr.mxu0 0.0
    %2984 = vmatpush2.msra.mxu0 0.0
    %2985 = vmatprep.subr.mxu0 0.0
    %2986 = vmatpush2.msra.mxu0 0.0
    %2987 = vmatprep.subr.mxu0 0.0
    %2988 = vmatpush2.msra.mxu0 0.0
    %2989 = vmatprep.subr.mxu0 0.0
    %2990 = vmatpush2.msra.mxu0 0.0
    %2991 = vmatprep.subr.mxu0 0.0
    %2992 = vmatpush2.msra.mxu0 0.0
    %2993 = vmatprep.subr.mxu0 0.0
    %2994 = vmatpush2.msra.mxu0 0.0
    %2995 = vmatprep.mubr.f32.mxu0 0.0
    %2996 = vmatmul.mubr.f32.gmra.mxu0 %v2926
    %v2997 = vpop.f32.mrf.mxu0
    %v2998 = vadd.f32 %v2923, %v2997
    %v2999 = vpop.f32.mrf.mxu0
    %3000 = vmatprep.mubr.f32.mxu0 0.0
    %3001 = vmatmul.mubr.f32.gmra.mxu0 %v2929
    %v3002 = vpop.f32.mrf.mxu0
    %v3003 = vadd.f32 %v2923, %v3002
    %v3004 = vpop.f32.mrf.mxu0
    %3005 = vdwg.mxu0
    %3006 = vrot.lane.b32.xlu0 %v416, 32
    %v3007 = vpop.permute.xlu0 %3006
    %3008 = vrot.lane.b32.xlu0 %v420, 32
    %v3009 = vpop.permute.xlu0 %3008
    %v3012 = vadd.f32 %v2998, %v3007
    %v3013 = vadd.f32 %v3003, %v3009
    %v3014 = vld [vmem:[%s17] sm:$0x1]
    %v3015 = vld [vmem:[%s18] sm:$0x1]
    %v3016 = vsel %vm523, %v3012, 0.0
    %v3017 = vrot.slane %v3016, 4
    %v3018 = vadd.f32 %v3016, %v3017
    %v3019 = vrot.slane %v3018, 2
    %v3020 = vadd.f32 %v3018, %v3019
    %v3021 = vrot.slane %v3020, 1
    %v3022 = vadd.f32 %v3020, %v3021
    %v3023 = vsel %vm523, %v3013, 0.0
    %v3024 = vrot.slane %v3023, 4
    %v3025 = vadd.f32 %v3023, %v3024
    %v3026 = vrot.slane %v3025, 2
    %v3027 = vadd.f32 %v3025, %v3026
    %v3028 = vrot.slane %v3027, 1
    %v3029 = vadd.f32 %v3027, %v3028
    %v3030 = vmul.f32 %v3012, %v3012
    %v3031 = vmul.f32 %v3013, %v3013
    %v3032 = vsel %vm523, %v3030, 0.0
    %v3033 = vrot.slane %v3032, 4
    %v3034 = vadd.f32 %v3032, %v3033
    %v3035 = vrot.slane %v3034, 2
    %v3036 = vadd.f32 %v3034, %v3035
    %v3037 = vrot.slane %v3036, 1
    %v3038 = vadd.f32 %v3036, %v3037
    %v3039 = vsel %vm523, %v3031, 0.0
    %v3040 = vrot.slane %v3039, 4
    %v3041 = vadd.f32 %v3039, %v3040
    %v3042 = vrot.slane %v3041, 2
    %v3043 = vadd.f32 %v3041, %v3042
    %v3044 = vrot.slane %v3043, 1
    %v3045 = vadd.f32 %v3043, %v3044
    %3048 = vrot.lane.b32.xlu0 %v3022, 120
    %v3049 = vpop.permute.xlu0 %3048
    %3050 = vrot.lane.b32.xlu0 %v3029, 120
    %v3051 = vpop.permute.xlu0 %3050
    %3052 = vrot.lane.b32.xlu0 %v3022, 112
    %v3053 = vpop.permute.xlu0 %3052
    %3054 = vrot.lane.b32.xlu0 %v3029, 112
    %v3055 = vpop.permute.xlu0 %3054
    %3056 = vrot.lane.b32.xlu0 %v3022, 104
    %v3057 = vpop.permute.xlu0 %3056
    %3058 = vrot.lane.b32.xlu0 %v3029, 104
    %v3059 = vpop.permute.xlu0 %3058
    %v3060 = vrot.slane %v3029, 7
    %v3061 = vsel %vm569, %v3060, %v3022
    %v3062 = vrot.slane %v3051, 7
    %v3063 = vsel %vm569, %v3062, %v3049
    %v3064 = vrot.slane %v3055, 7
    %v3065 = vsel %vm569, %v3064, %v3053
    %v3066 = vrot.slane %v3059, 7
    %v3067 = vsel %vm569, %v3066, %v3057
    %v3072 = vcombine.low %v3061, %v3065
    %v3074 = vunpack.c.l.s4 1983009808
    %v3075 = vunpack.c.0.s8 %v3074
    %v3076 = vlaneseq
    %v3077 = vshrl.u32 %v3076, 7
    %v3078 = vsub.s32 %v3075, %v3077
    %v3079 = vrot.slane %v3072, %v3078
    %v3080 = vcombine.low %v3063, %v3067
    %v3082 = vunpack.c.l.s4 1983009808
    %v3083 = vunpack.c.0.s8 %v3082
    %v3084 = vlaneseq
    %v3085 = vshrl.u32 %v3084, 7
    %v3086 = vsub.s32 %v3083, %v3085
    %v3087 = vrot.slane %v3080, %v3086
    %v3088 = vcombine.low %v3079, %v3087
    %v3090 = vunpack.c.l.s4 1934713408
    %v3091 = vunpack.c.0.s8 %v3090
    %v3092 = vlaneseq
    %v3093 = vshrl.u32 %v3092, 7
    %v3094 = vsub.s32 %v3091, %v3093
    %v3095 = vrot.slane %v3088, %v3094
    %v3096 = vcombine.high %v3095, 0.0
    %v3097 = vsel %vm606, %v3095, 0.0
    %3098 = vadd.xlane.f32.xlu0 %v3097
    %v3099 = vpop.xlane.xlu0 %3098
    %v3100 = vsel %vm606, %v3096, 0.0
    %3101 = vadd.xlane.f32.xlu0 %v3100
    %v3102 = vpop.xlane.xlu0 %3101
    %v3103 = vmul.f32 %v3099, 0.015625
    %v3104 = vmul.f32 %v3102, 0.015625
    %3107 = vrot.lane.b32.xlu0 %v3038, 120
    %v3108 = vpop.permute.xlu0 %3107
    %3109 = vrot.lane.b32.xlu0 %v3045, 120
    %v3110 = vpop.permute.xlu0 %3109
    %3111 = vrot.lane.b32.xlu0 %v3038, 112
    %v3112 = vpop.permute.xlu0 %3111
    %3113 = vrot.lane.b32.xlu0 %v3045, 112
    %v3114 = vpop.permute.xlu0 %3113
    %3115 = vrot.lane.b32.xlu0 %v3038, 104
    %v3116 = vpop.permute.xlu0 %3115
    %3117 = vrot.lane.b32.xlu0 %v3045, 104
    %v3118 = vpop.permute.xlu0 %3117
    %v3119 = vrot.slane %v3045, 7
    %v3120 = vsel %vm569, %v3119, %v3038
    %v3121 = vrot.slane %v3110, 7
    %v3122 = vsel %vm569, %v3121, %v3108
    %v3123 = vrot.slane %v3114, 7
    %v3124 = vsel %vm569, %v3123, %v3112
    %v3125 = vrot.slane %v3118, 7
    %v3126 = vsel %vm569, %v3125, %v3116
    %v3131 = vcombine.low %v3120, %v3124
    %v3133 = vunpack.c.l.s4 1983009808
    %v3134 = vunpack.c.0.s8 %v3133
    %v3135 = vlaneseq
    %v3136 = vshrl.u32 %v3135, 7
    %v3137 = vsub.s32 %v3134, %v3136
    %v3138 = vrot.slane %v3131, %v3137
    %v3139 = vcombine.low %v3122, %v3126
    %v3141 = vunpack.c.l.s4 1983009808
    %v3142 = vunpack.c.0.s8 %v3141
    %v3143 = vlaneseq
    %v3144 = vshrl.u32 %v3143, 7
    %v3145 = vsub.s32 %v3142, %v3144
    %v3146 = vrot.slane %v3139, %v3145
    %v3147 = vcombine.low %v3138, %v3146
    %v3149 = vunpack.c.l.s4 1934713408
    %v3150 = vunpack.c.0.s8 %v3149
    %v3151 = vlaneseq
    %v3152 = vshrl.u32 %v3151, 7
    %v3153 = vsub.s32 %v3150, %v3152
    %v3154 = vrot.slane %v3147, %v3153
    %v3155 = vcombine.high %v3154, 0.0
    %v3156 = vsel %vm606, %v3154, 0.0
    %3157 = vadd.xlane.f32.xlu0 %v3156
    %v3158 = vpop.xlane.xlu0 %3157
    %v3159 = vsel %vm606, %v3155, 0.0
    %3160 = vadd.xlane.f32.xlu0 %v3159
    %v3161 = vpop.xlane.xlu0 %3160
    %v3162 = vmul.f32 %v3158, 0.015625
    %v3163 = vmul.f32 %v3161, 0.015625
    %v3164 = vmul.f32 %v3103, %v3103
    %v3165 = vmul.f32 %v3104, %v3104
    %v3166 = vsub.f32 %v3162, %v3164
    %v3167 = vsub.f32 %v3163, %v3165
    %v3168 = vadd.f32 %v3166, 1e-05
    %v3169 = vadd.f32 %v3167, 1e-05
    %v3171 = vunpack.c.l.s4 1983009808
    %v3172 = vunpack.c.0.s8 %v3171
    %v3173 = vlaneseq
    %v3174 = vshrl.u32 %v3173, 7
    %v3175 = vsub.s32 %v3172, %v3174
    %v3176 = vrot.slane %v3103, %v3175
    %v3178 = vunpack.c.l.s4 1983009808
    %v3179 = vunpack.c.0.s8 %v3178
    %v3180 = vlaneseq
    %v3181 = vshrl.u32 %v3180, 7
    %v3182 = vsub.s32 %v3179, %v3181
    %v3183 = vrot.slane %v3104, %v3182
    %v3184 = vcombine.low %v3176, %v3183
    %v3185 = vcombine.high %v3176, %v3183
    %v3187 = vunpack.c.l.s4 1934713408
    %v3188 = vunpack.c.0.s8 %v3187
    %v3189 = vlaneseq
    %v3190 = vshrl.u32 %v3189, 7
    %v3191 = vsub.s32 %v3188, %v3190
    %v3192 = vrot.slane %v3184, %v3191
    %v3194 = vunpack.c.l.s4 1934713408
    %v3195 = vunpack.c.0.s8 %v3194
    %v3196 = vlaneseq
    %v3197 = vshrl.u32 %v3196, 7
    %v3198 = vsub.s32 %v3195, %v3197
    %v3199 = vrot.slane %v3185, %v3198
    %v3200 = vcombine.high %v3192, 0.0
    %v3201 = vcombine.high %v3199, 0.0
    %3203 = vrot.lane.b32.xlu0 %v3200, 8
    %v3204 = vpop.permute.xlu0 %3203
    %3207 = vrot.lane.b32.xlu0 %v3199, 16
    %v3208 = vpop.permute.xlu0 %3207
    %3211 = vrot.lane.b32.xlu0 %v3201, 24
    %v3212 = vpop.permute.xlu0 %3211
    %v3214 = vsel %vm724, %v3192, %v3204
    %v3215 = vsel %vm726, %v3214, %v3208
    %v3216 = vsel %vm728, %v3215, %v3212
    %v3217 = vrsqrt.pop %v3168
    %v3219 = vunpack.c.l.s4 1983009808
    %v3220 = vunpack.c.0.s8 %v3219
    %v3221 = vlaneseq
    %v3222 = vshrl.u32 %v3221, 7
    %v3223 = vsub.s32 %v3220, %v3222
    %v3224 = vrot.slane %v3217, %v3223
    %v3225 = vrsqrt.pop %v3169
    %v3227 = vunpack.c.l.s4 1983009808
    %v3228 = vunpack.c.0.s8 %v3227
    %v3229 = vlaneseq
    %v3230 = vshrl.u32 %v3229, 7
    %v3231 = vsub.s32 %v3228, %v3230
    %v3232 = vrot.slane %v3225, %v3231
    %v3233 = vcombine.low %v3224, %v3232
    %v3234 = vcombine.high %v3224, %v3232
    %v3236 = vunpack.c.l.s4 1934713408
    %v3237 = vunpack.c.0.s8 %v3236
    %v3238 = vlaneseq
    %v3239 = vshrl.u32 %v3238, 7
    %v3240 = vsub.s32 %v3237, %v3239
    %v3241 = vrot.slane %v3233, %v3240
    %v3243 = vunpack.c.l.s4 1934713408
    %v3244 = vunpack.c.0.s8 %v3243
    %v3245 = vlaneseq
    %v3246 = vshrl.u32 %v3245, 7
    %v3247 = vsub.s32 %v3244, %v3246
    %v3248 = vrot.slane %v3234, %v3247
    %v3249 = vcombine.high %v3241, 0.0
    %v3250 = vcombine.high %v3248, 0.0
    %3252 = vrot.lane.b32.xlu0 %v3249, 8
    %v3253 = vpop.permute.xlu0 %3252
    %3256 = vrot.lane.b32.xlu0 %v3248, 16
    %v3257 = vpop.permute.xlu0 %3256
    %3260 = vrot.lane.b32.xlu0 %v3250, 24
    %v3261 = vpop.permute.xlu0 %3260
    %v3263 = vsel %vm724, %v3241, %v3253
    %v3264 = vsel %vm726, %v3263, %v3257
    %v3265 = vsel %vm728, %v3264, %v3261
    %v3267 = vlaneseq
    %v3268 = vshrl.u32 %v3267, 7
    %v3269 = vsub.s32 0, %v3268
    %v3270 = vrot.slane %v3014, %v3269
    %v3272 = vmul.f32 %v3265, %v3270
    %v3273 = vmul.f32 %v3216, %v3272
    %v3275 = vlaneseq
    %v3276 = vshrl.u32 %v3275, 7
    %v3277 = vsub.s32 0, %v3276
    %v3278 = vrot.slane %v3015, %v3277
    %v3280 = vsub.f32 %v3278, %v3273
    %v3283 = vunpack.c.l.s4 1966171168
    %v3284 = vunpack.c.0.s8 %v3283
    %v3285 = vlaneseq
    %v3286 = vshrl.u32 %v3285, 7
    %v3287 = vsub.s32 %v3284, %v3286
    %v3288 = vrot.slane %v3272, %v3287
    %v3289 = vcombine.high %v3288, %v3288
    %v3291 = vunpack.c.l.s4 1966171168
    %v3292 = vunpack.c.0.s8 %v3291
    %v3293 = vlaneseq
    %v3294 = vshrl.u32 %v3293, 7
    %v3295 = vsub.s32 %v3292, %v3294
    %v3296 = vrot.slane %v3288, %v3295
    %v3298 = vunpack.c.l.s4 1966171168
    %v3299 = vunpack.c.0.s8 %v3298
    %v3300 = vlaneseq
    %v3301 = vshrl.u32 %v3300, 7
    %v3302 = vsub.s32 %v3299, %v3301
    %v3303 = vrot.slane %v3289, %v3302
    %v3304 = vlaneseq
    %v3305 = vshrl.u32 %v3304, 7
    %v3306 = vsub.s32 0, %v3305
    %v3307 = vrot.slane %v3296, %v3306
    %v3308 = vlaneseq
    %v3309 = vshrl.u32 %v3308, 7
    %v3310 = vsub.s32 0, %v3309
    %v3311 = vrot.slane %v3303, %v3310
    %v3314 = vmul.f32 %v3012, %v3307
    %v3315 = vmul.f32 %v3013, %v3311
    %v3318 = vunpack.c.l.s4 1966171168
    %v3319 = vunpack.c.0.s8 %v3318
    %v3320 = vlaneseq
    %v3321 = vshrl.u32 %v3320, 7
    %v3322 = vsub.s32 %v3319, %v3321
    %v3323 = vrot.slane %v3280, %v3322
    %v3324 = vcombine.high %v3323, %v3323
    %v3326 = vunpack.c.l.s4 1966171168
    %v3327 = vunpack.c.0.s8 %v3326
    %v3328 = vlaneseq
    %v3329 = vshrl.u32 %v3328, 7
    %v3330 = vsub.s32 %v3327, %v3329
    %v3331 = vrot.slane %v3323, %v3330
    %v3333 = vunpack.c.l.s4 1966171168
    %v3334 = vunpack.c.0.s8 %v3333
    %v3335 = vlaneseq
    %v3336 = vshrl.u32 %v3335, 7
    %v3337 = vsub.s32 %v3334, %v3336
    %v3338 = vrot.slane %v3324, %v3337
    %v3339 = vlaneseq
    %v3340 = vshrl.u32 %v3339, 7
    %v3341 = vsub.s32 0, %v3340
    %v3342 = vrot.slane %v3331, %v3341
    %v3343 = vlaneseq
    %v3344 = vshrl.u32 %v3343, 7
    %v3345 = vsub.s32 0, %v3344
    %v3346 = vrot.slane %v3338, %v3345
    %v3349 = vadd.f32 %v3314, %v3342
    %v3350 = vadd.f32 %v3315, %v3346
    %v3351 = vsub.f32 0.0, %v3349
    %v3352 = vsub.f32 0.0, %v3350
    %v3353 = vmul.f32 %v3351, 1.442695
    %v3354 = vpow.pop %v3353
    %v3355 = vmul.f32 %v3352, 1.442695
    %v3356 = vpow.pop %v3355
    %v3357 = vadd.f32 %v3354, 1.0
    %v3358 = vadd.f32 %v3356, 1.0
    %v3359 = vrcp.pop %v3357
    %v3360 = vrcp.pop %v3358
    %v3361 = vmul.f32 %v3349, %v3359
    %v3362 = vmul.f32 %v3350, %v3360
    %v3363 = vld [vmem:[%s19] sm:$0xff]
    %v3364 = vld [vmem:[%s19 + $0x8] sm:$0xff]
    %v3365 = vld [vmem:[%s19 + $0x10] sm:$0xff]
    %v3366 = vld [vmem:[%s19 + $0x18] sm:$0xff]
    %v3367 = vld [vmem:[%s20] sm:$0xff]
    %v3368 = vld [vmem:[%s20 + $0x8] sm:$0xff]
    %v3369 = vld [vmem:[%s20 + $0x10] sm:$0xff]
    %v3370 = vld [vmem:[%s20 + $0x18] sm:$0xff]
    %v3372 = vsel %vm523, %v3361, 0
    %v3375 = vsel %vm523, %v3362, 0
    %3377 = vmatprep.subr.mxu0 0.0
    %3378 = vmatpush1.msra.mxu0 0.0
    %3379 = vmatprep.subr.mxu0 0.0
    %3380 = vmatpush1.msra.mxu0 0.0
    %3381 = vmatprep.subr.mxu0 0.0
    %3382 = vmatpush1.msra.mxu0 0.0
    %3383 = vmatprep.subr.mxu0 0.0
    %3384 = vmatpush1.msra.mxu0 0.0
    %3385 = vmatprep.subr.mxu0 0.0
    %3386 = vmatpush1.msra.mxu0 0.0
    %3387 = vmatprep.subr.mxu0 0.0
    %3388 = vmatpush1.msra.mxu0 0.0
    %3389 = vmatprep.subr.mxu0 0.0
    %3390 = vmatpush1.msra.mxu0 0.0
    %3391 = vmatprep.subr.mxu0 0.0
    %3392 = vmatpush1.msra.mxu0 0.0
    %3393 = vmatprep.subr.mxu0 0.0
    %3394 = vmatpush1.msra.mxu0 0.0
    %3395 = vmatprep.subr.mxu0 0.0
    %3396 = vmatpush1.msra.mxu0 0.0
    %3397 = vmatprep.subr.mxu0 0.0
    %3398 = vmatpush1.msra.mxu0 0.0
    %3399 = vmatprep.subr.mxu0 0.0
    %3400 = vmatpush1.msra.mxu0 0.0
    %3401 = vmatprep.subr.mxu0 0.0
    %3402 = vmatpush1.msra.mxu0 %v3370
    %3403 = vmatprep.subr.mxu0 0.0
    %3404 = vmatpush1.msra.mxu0 %v3369
    %3405 = vmatprep.subr.mxu0 0.0
    %3406 = vmatpush1.msra.mxu0 %v3368
    %3407 = vmatprep.subr.mxu0 0.0
    %3408 = vmatpush1.msra.mxu0 %v3367
    %3409 = vmatprep.subr.mxu0 0.0
    %3410 = vmatpush2.msra.mxu0 0.0
    %3411 = vmatprep.subr.mxu0 0.0
    %3412 = vmatpush2.msra.mxu0 0.0
    %3413 = vmatprep.subr.mxu0 0.0
    %3414 = vmatpush2.msra.mxu0 0.0
    %3415 = vmatprep.subr.mxu0 0.0
    %3416 = vmatpush2.msra.mxu0 0.0
    %3417 = vmatprep.subr.mxu0 0.0
    %3418 = vmatpush2.msra.mxu0 0.0
    %3419 = vmatprep.subr.mxu0 0.0
    %3420 = vmatpush2.msra.mxu0 0.0
    %3421 = vmatprep.subr.mxu0 0.0
    %3422 = vmatpush2.msra.mxu0 0.0
    %3423 = vmatprep.subr.mxu0 0.0
    %3424 = vmatpush2.msra.mxu0 0.0
    %3425 = vmatprep.subr.mxu0 0.0
    %3426 = vmatpush2.msra.mxu0 0.0
    %3427 = vmatprep.subr.mxu0 0.0
    %3428 = vmatpush2.msra.mxu0 0.0
    %3429 = vmatprep.subr.mxu0 0.0
    %3430 = vmatpush2.msra.mxu0 0.0
    %3431 = vmatprep.subr.mxu0 0.0
    %3432 = vmatpush2.msra.mxu0 0.0
    %3433 = vmatprep.subr.mxu0 0.0
    %3434 = vmatpush2.msra.mxu0 0.0
    %3435 = vmatprep.subr.mxu0 0.0
    %3436 = vmatpush2.msra.mxu0 0.0
    %3437 = vmatprep.subr.mxu0 0.0
    %3438 = vmatpush2.msra.mxu0 0.0
    %3439 = vmatprep.subr.mxu0 0.0
    %3440 = vmatpush2.msra.mxu0 0.0
    %3441 = vmatprep.mubr.f32.mxu0 0.0
    %3442 = vmatmul.mubr.f32.gmra.mxu0 %v3372
    %v3443 = vpop.f32.mrf.mxu0
    %v3444 = vadd.f32 0.0, %v3443
    %v3445 = vpop.f32.mrf.mxu0
    %3446 = vmatprep.mubr.f32.mxu0 0.0
    %3447 = vmatmul.mubr.f32.gmra.mxu0 %v3375
    %v3448 = vpop.f32.mrf.mxu0
    %v3449 = vadd.f32 0.0, %v3448
    %v3450 = vpop.f32.mrf.mxu0
    %3451 = vdwg.mxu0
    %3452 = vmatprep.subr.mxu0 0.0
    %3453 = vmatpush1.msra.mxu0 0.0
    %3454 = vmatprep.subr.mxu0 0.0
    %3455 = vmatpush1.msra.mxu0 0.0
    %3456 = vmatprep.subr.mxu0 0.0
    %3457 = vmatpush1.msra.mxu0 0.0
    %3458 = vmatprep.subr.mxu0 0.0
    %3459 = vmatpush1.msra.mxu0 0.0
    %3460 = vmatprep.subr.mxu0 0.0
    %3461 = vmatpush1.msra.mxu0 0.0
    %3462 = vmatprep.subr.mxu0 0.0
    %3463 = vmatpush1.msra.mxu0 0.0
    %3464 = vmatprep.subr.mxu0 0.0
    %3465 = vmatpush1.msra.mxu0 0.0
    %3466 = vmatprep.subr.mxu0 0.0
    %3467 = vmatpush1.msra.mxu0 0.0
    %3468 = vmatprep.subr.mxu0 0.0
    %3469 = vmatpush1.msra.mxu0 0.0
    %3470 = vmatprep.subr.mxu0 0.0
    %3471 = vmatpush1.msra.mxu0 0.0
    %3472 = vmatprep.subr.mxu0 0.0
    %3473 = vmatpush1.msra.mxu0 0.0
    %3474 = vmatprep.subr.mxu0 0.0
    %3475 = vmatpush1.msra.mxu0 0.0
    %3476 = vmatprep.subr.mxu0 0.0
    %3477 = vmatpush1.msra.mxu0 %v3366
    %3478 = vmatprep.subr.mxu0 0.0
    %3479 = vmatpush1.msra.mxu0 %v3365
    %3480 = vmatprep.subr.mxu0 0.0
    %3481 = vmatpush1.msra.mxu0 %v3364
    %3482 = vmatprep.subr.mxu0 0.0
    %3483 = vmatpush1.msra.mxu0 %v3363
    %3484 = vmatprep.subr.mxu0 0.0
    %3485 = vmatpush2.msra.mxu0 0.0
    %3486 = vmatprep.subr.mxu0 0.0
    %3487 = vmatpush2.msra.mxu0 0.0
    %3488 = vmatprep.subr.mxu0 0.0
    %3489 = vmatpush2.msra.mxu0 0.0
    %3490 = vmatprep.subr.mxu0 0.0
    %3491 = vmatpush2.msra.mxu0 0.0
    %3492 = vmatprep.subr.mxu0 0.0
    %3493 = vmatpush2.msra.mxu0 0.0
    %3494 = vmatprep.subr.mxu0 0.0
    %3495 = vmatpush2.msra.mxu0 0.0
    %3496 = vmatprep.subr.mxu0 0.0
    %3497 = vmatpush2.msra.mxu0 0.0
    %3498 = vmatprep.subr.mxu0 0.0
    %3499 = vmatpush2.msra.mxu0 0.0
    %3500 = vmatprep.subr.mxu0 0.0
    %3501 = vmatpush2.msra.mxu0 0.0
    %3502 = vmatprep.subr.mxu0 0.0
    %3503 = vmatpush2.msra.mxu0 0.0
    %3504 = vmatprep.subr.mxu0 0.0
    %3505 = vmatpush2.msra.mxu0 0.0
    %3506 = vmatprep.subr.mxu0 0.0
    %3507 = vmatpush2.msra.mxu0 0.0
    %3508 = vmatprep.subr.mxu0 0.0
    %3509 = vmatpush2.msra.mxu0 0.0
    %3510 = vmatprep.subr.mxu0 0.0
    %3511 = vmatpush2.msra.mxu0 0.0
    %3512 = vmatprep.subr.mxu0 0.0
    %3513 = vmatpush2.msra.mxu0 0.0
    %3514 = vmatprep.subr.mxu0 0.0
    %3515 = vmatpush2.msra.mxu0 0.0
    %3516 = vmatprep.mubr.f32.mxu0 0.0
    %3517 = vmatmul.mubr.f32.gmra.mxu0 %v888
    %v3518 = vpop.f32.mrf.mxu0
    %v3519 = vadd.f32 %v3444, %v3518
    %v3520 = vpop.f32.mrf.mxu0
    %3521 = vmatprep.mubr.f32.mxu0 0.0
    %3522 = vmatmul.mubr.f32.gmra.mxu0 %v891
    %v3523 = vpop.f32.mrf.mxu0
    %v3524 = vadd.f32 %v3449, %v3523
    %v3525 = vpop.f32.mrf.mxu0
    %3526 = vdwg.mxu0
    %3527 = vst.msk [vmem:[%s21] sm:$0xff] %vm433, %v3519
    %3528 = vst.msk [vmem:[%s21 + $0x8] sm:$0xff] %vm433, %v3524
    // Predicated region
    $region94: #{tpu_custom_call.1} parent=1 // pred_check
      _
    $region95: #{tpu_custom_call.1} parent=1 // pred_check_branch
      %3530 = sbr.rel (0) target = $region97
    $region96: #{tpu_custom_call.1} parent=1 // pred_region
      _
    $region97: #{tpu_custom_call.1} parent=1 // pred_fallthru
      _
    // Predicated region
    $region98: #{tpu_custom_call.1} parent=1 // pred_check
      _
    $region99: #{tpu_custom_call.1} parent=1 // pred_check_branch
      %3532 = sbr.rel (0) target = $region101
    $region100: #{tpu_custom_call.1} parent=1 // pred_region
      _
    $region101: #{tpu_custom_call.1} parent=1 // pred_fallthru
      _
    %3533 = vsyncpa [#allocation3], 1
    %3534 = vsyncpa [#allocation5], 1

</llo_original>
